<compile_context>
chip_gen: v6e
topology: v6e:2x2x1
jax: 0.10.0
libtpu: 0.0.40
codegen_flags: <defaults>
</compile_context>

<pallas_src>
import functools

import jax
import jax.numpy as jnp
from jax.experimental import pallas as pl
from jax.experimental.pallas import tpu as pltpu


def _round_up(x, m):
    return ((x + m - 1) // m) * m


def _pick_tm(m, tm_max):
    """M-tile: multiple of 8, <= tm_max, and (when m is large enough) sized so
    the grid has >= 2 steps so the 'parallel' axis can use both v7x cores."""
    if m <= 8:
        return 8
    half = _round_up(-(-m // 2), 8)
    return max(8, min(tm_max, half))


# ---------------------------------------------------------------------------
# Pallas kernels
# ---------------------------------------------------------------------------

def _linear_kernel(x_ref, w_ref, b_ref, o_ref, *, apply_relu):
    # One M-tile of y = relu?(x @ w + b); bf16 operands on the MXU, f32 acc.
    a = x_ref[...].astype(jnp.bfloat16)
    w = w_ref[...].astype(jnp.bfloat16)
    y = jnp.dot(a, w, preferred_element_type=jnp.float32)
    y = y + b_ref[...]
    if apply_relu:
        y = jnp.maximum(y, 0.0)
    o_ref[...] = y


def pallas_linear(x, w, b, *, relu, tm_max=2048):
    """y = relu?(x @ w + b).  x:(M,K), w:(K,N), b:(N,), all float32.

    No padded copies of x/w/b along K or N (full-dim blocks).  Only the M axis
    is tiled; a tiny row-pad to a multiple of 8 is applied when needed (only
    triggers for the small FC matrices here)."""
    M, K = x.shape
    N = w.shape[1]

    Mp = _round_up(max(M, 8), 8)
    if Mp != M:
        x = jnp.zeros((Mp, K), x.dtype).at[:M, :].set(x)

    tm = _pick_tm(Mp, tm_max)
    grid = pl.cdiv(Mp, tm)

    out = pl.pallas_call(
        functools.partial(_linear_kernel, apply_relu=relu),
        out_shape=jax.ShapeDtypeStruct((Mp, N), jnp.float32),
        grid_spec=pltpu.PrefetchScalarGridSpec(
            num_scalar_prefetch=0,
            grid=(grid,),
            in_specs=[
                pl.BlockSpec((tm, K), lambda i: (i, 0)),   # activations
                pl.BlockSpec((K, N), lambda i: (0, 0)),    # weight (resident)
                pl.BlockSpec((1, N), lambda i: (0, 0)),    # bias
            ],
            out_specs=pl.BlockSpec((tm, N), lambda i: (i, 0)),
        ),
        compiler_params=pltpu.CompilerParams(
            dimension_semantics=("parallel",)),
    )(x, w, b.reshape(1, N))
    return out[:M] if Mp != M else out


def _maxpool_kernel(a_ref, b_ref, c_ref, d_ref, o_ref):
    o_ref[...] = jnp.maximum(jnp.maximum(a_ref[...], b_ref[...]),
                             jnp.maximum(c_ref[...], d_ref[...]))


def pallas_maxpool2x2(x):
    """MaxPool2d(2, 2) on NHWC input with even H, W.

    The four window corners are passed as separate, un-padded (N*OH, OW, C)
    arrays (leading dim carries no alignment constraint; OW/C are full-dim
    blocks), avoiding the channel-pad-to-128 and corner-stack HBM round trip.
    """
    n, h, w, c = x.shape
    oh, ow = h // 2, w // 2
    corners = [
        x[:, i::2, j::2, :].reshape(n * oh, ow, c)
        for i in (0, 1) for j in (0, 1)
    ]
    rows = n * oh
    tb = max(1, -(-rows // 2))          # ~2 grid steps -> both v7x cores busy
    grid = pl.cdiv(rows, tb)
    spec = pl.BlockSpec((tb, ow, c), lambda i: (i, 0, 0))

    out = pl.pallas_call(
        _maxpool_kernel,
        out_shape=jax.ShapeDtypeStruct((rows, ow, c), jnp.float32),
        grid_spec=pltpu.PrefetchScalarGridSpec(
            num_scalar_prefetch=0,
            grid=(grid,),
            in_specs=[spec] * 4,
            out_specs=spec,
        ),
        compiler_params=pltpu.CompilerParams(
            dimension_semantics=("parallel",)),
    )(*corners)
    return out.reshape(n, oh, ow, c)


# ---------------------------------------------------------------------------
# Conv-as-GEMM glue (im2col is pure data movement; GEMM runs in Pallas)
# ---------------------------------------------------------------------------

def _im2col(x, kh, kw, stride):
    """x: (N,H,W,C) -> (N,OH,OW,kh*kw*C), patch flatten order = (kh, kw, C)."""
    n, h, w, c = x.shape
    oh = (h - kh) // stride + 1
    ow = (w - kw) // stride + 1
    cols = []
    for i in range(kh):
        for j in range(kw):
            cols.append(
                x[:, i:i + stride * (oh - 1) + 1:stride,
                  j:j + stride * (ow - 1) + 1:stride, :]
            )
    p = jnp.stack(cols, axis=3)  # (N, OH, OW, kh*kw, C)
    return p.reshape(n, oh, ow, kh * kw * c), oh, ow


def conv2d_relu(x_nhwc, w_oihw, b, stride):
    co, ci, kh, kw = w_oihw.shape
    patches, oh, ow = _im2col(x_nhwc, kh, kw, stride)
    n = x_nhwc.shape[0]
    x2d = patches.reshape(n * oh * ow, kh * kw * ci)
    # OIHW -> (KH, KW, Cin, Cout) -> ((kh*kw*Cin), Cout), matching patch order.
    w2d = jnp.transpose(w_oihw, (2, 3, 1, 0)).reshape(kh * kw * ci, co)
    y = pallas_linear(x2d, w2d, b, relu=True, tm_max=2048)
    return y.reshape(n, oh, ow, co)


# ---------------------------------------------------------------------------
# Forward pass (matches Emoji_Classifier.forward)
# ---------------------------------------------------------------------------

def emoji_classifier_forward(params, x_nchw):
    n = x_nchw.shape[0]
    x = jnp.transpose(x_nchw, (0, 2, 3, 1))                              # NHWC
    x = conv2d_relu(x, params["conv1_w"], params["conv1_b"], stride=2)   # (N,110,110,10)
    x = pallas_maxpool2x2(x)                                             # (N, 55, 55,10)
    x = conv2d_relu(x, params["conv2_w"], params["conv2_b"], stride=2)   # (N, 26, 26,26)
    x = pallas_maxpool2x2(x)                                             # (N, 13, 13,26)
    # torch flattens NCHW: transpose back before view(-1, 26*13*13)
    x = jnp.transpose(x, (0, 3, 1, 2)).reshape(n, 26 * 13 * 13)
    # FC layers: tiny M -> tiny tile (batch rounded to 8), no VMEM pressure.
    x = pallas_linear(x, params["fc1_w"], params["fc1_b"], relu=True)    # (N, 120)
    x = pallas_linear(x, params["fc2_w"], params["fc2_b"], relu=False)   # (N, 8)
    # torch's x.squeeze(1) is a no-op here (dim 1 has size 8)
    return x


# Pure-JAX f32 reference (for correctness check only; kernel uses bf16 MXU
# operands, so tolerance is set to bf16 level).
def reference_forward(params, x_nchw):
    def conv(x, w, b):
        y = jax.lax.conv_general_dilated(
            x, w, window_strides=(2, 2), padding="VALID",
            dimension_numbers=("NCHW", "OIHW", "NCHW"),
            precision=jax.lax.Precision.HIGHEST)
        return jnp.maximum(y + b[None, :, None, None], 0.0)

    def pool(y):
        n, c, h, w = y.shape
        return y.reshape(n, c, h // 2, 2, w // 2, 2).max(axis=(3, 5))

    y = pool(conv(x_nchw, params["conv1_w"], params["conv1_b"]))
    y = pool(conv(y, params["conv2_w"], params["conv2_b"]))
    y = y.reshape(y.shape[0], -1)
    y = jnp.maximum(
        jnp.dot(y, params["fc1_w"], precision=jax.lax.Precision.HIGHEST)
        + params["fc1_b"], 0.0)
    y = (jnp.dot(y, params["fc2_w"], precision=jax.lax.Precision.HIGHEST)
         + params["fc2_b"])
    return y


if __name__ == "__main__":
    key = jax.random.PRNGKey(0)
    ks = jax.random.split(key, 9)
    # Deterministic synthetic parameters (fc weights stored as (in, out)).
    params = {
        "conv1_w": 0.05 * jax.random.normal(ks[0], (10, 3, 5, 5), jnp.float32),
        "conv1_b": 0.05 * jax.random.normal(ks[1], (10,), jnp.float32),
        "conv2_w": 0.05 * jax.random.normal(ks[2], (26, 10, 5, 5), jnp.float32),
        "conv2_b": 0.05 * jax.random.normal(ks[3], (26,), jnp.float32),
        "fc1_w": 0.02 * jax.random.normal(ks[4], (26 * 13 * 13, 120), jnp.float32),
        "fc1_b": 0.02 * jax.random.normal(ks[5], (120,), jnp.float32),
        "fc2_w": 0.05 * jax.random.normal(ks[6], (120, 8), jnp.float32),
        "fc2_b": 0.05 * jax.random.normal(ks[7], (8,), jnp.float32),
    }
    # fc1 input size (26*13*13) implies 224x224 spatial input; batch kept small.
    x = jax.random.normal(ks[8], (2, 3, 224, 224), jnp.float32)

    out = jax.block_until_ready(emoji_classifier_forward(params, x))
    assert out.shape == (2, 8), out.shape

    ref = jax.block_until_ready(reference_forward(params, x))
    max_err = float(jnp.max(jnp.abs(out - ref)))
    # bf16 MXU operands (f32 accumulation) vs. an f32 HIGHEST reference:
    # expected max abs error is a few 1e-3 for these magnitudes.
    assert jnp.allclose(out, ref, atol=2e-2, rtol=2e-2), max_err

    print("KERNEL_OK")
</pallas_src>

<mosaic_0001>
module attributes {stable_mosaic.version = 11 : i64} {
  func.func @_linear_kernel(%arg0: i32, %arg1: memref<2048x75xf32, #tpu.memory_space<vmem>>, %arg2: memref<75x10xf32, #tpu.memory_space<vmem>>, %arg3: memref<1x10xf32, #tpu.memory_space<vmem>>, %arg4: memref<2048x10xf32, #tpu.memory_space<vmem>>) attributes {dimension_semantics = [#tpu.dimension_semantics<parallel>], iteration_bounds = array<i64: 12>, scalar_prefetch = 0 : i64, scratch_operands = 0 : i64, tpu.core_type = #tpu.core_type<tc>, window_params = [{transform_indices = @transform_0, window_bounds = array<i64: 2048, 75>}, {pipeline_mode = #tpu.pipeline_mode<synchronous>, transform_indices = @transform_1, window_bounds = array<i64: 75, 10>}, {pipeline_mode = #tpu.pipeline_mode<synchronous>, transform_indices = @transform_2, window_bounds = array<i64: 1, 10>}, {transform_indices = @transform_3, window_bounds = array<i64: 2048, 10>}]} {
    %c0 = arith.constant 0 : index
    %c0_0 = arith.constant 0 : index
    %0 = vector.load %arg1[%c0, %c0_0] : memref<2048x75xf32, #tpu.memory_space<vmem>>, vector<2048x75xf32>
    %1 = arith.truncf %0 : vector<2048x75xf32> to vector<2048x75xbf16>
    %c0_1 = arith.constant 0 : index
    %c0_2 = arith.constant 0 : index
    %2 = vector.load %arg2[%c0_1, %c0_2] : memref<75x10xf32, #tpu.memory_space<vmem>>, vector<75x10xf32>
    %3 = arith.truncf %2 : vector<75x10xf32> to vector<75x10xbf16>
    %cst = arith.constant dense<0.000000e+00> : vector<2048x10xf32>
    %4 = tpu.matmul %1, %3, %cst {dimension_numbers = #tpu.dot_dimension_numbers<[1], [0], [0], [1], [0, 0, 1, 1], [], []>} : vector<2048x75xbf16>, vector<75x10xbf16>, vector<2048x10xf32> -> vector<2048x10xf32>
    %c0_3 = arith.constant 0 : index
    %c0_4 = arith.constant 0 : index
    %5 = vector.load %arg3[%c0_3, %c0_4] : memref<1x10xf32, #tpu.memory_space<vmem>>, vector<1x10xf32>
    %6 = vector.broadcast %5 : vector<1x10xf32> to vector<2048x10xf32>
    %7 = arith.addf %4, %6 : vector<2048x10xf32>
    %cst_5 = arith.constant 0.000000e+00 : f32
    %8 = vector.broadcast %cst_5 : f32 to vector<2048x10xf32>
    %9 = arith.maximumf %7, %8 : vector<2048x10xf32>
    %c0_6 = arith.constant 0 : index
    %c0_7 = arith.constant 0 : index
    %10 = vector.load %arg4[%c0_6, %c0_7] : memref<2048x10xf32, #tpu.memory_space<vmem>>, vector<2048x10xf32>
    tpu.vector_store %arg4[%c0_6, %c0_7], %9 {strides = array<i32>} : memref<2048x10xf32, #tpu.memory_space<vmem>>, vector<2048x10xf32>,
    return
  }
  func.func @transform_0(%arg0: i32) -> (i32, i32) {
    %c0_i32 = arith.constant 0 : i32
    %c0_i32_0 = arith.constant 0 : i32
    return %arg0, %c0_i32 : i32, i32
  }
  func.func @transform_1(%arg0: i32) -> (i32, i32) {
    %c0_i32 = arith.constant 0 : i32
    %c0_i32_0 = arith.constant 0 : i32
    %c0_i32_1 = arith.constant 0 : i32
    return %c0_i32, %c0_i32_0 : i32, i32
  }
  func.func @transform_2(%arg0: i32) -> (i32, i32) {
    %c0_i32 = arith.constant 0 : i32
    %c0_i32_0 = arith.constant 0 : i32
    %c0_i32_1 = arith.constant 0 : i32
    return %c0_i32, %c0_i32_0 : i32, i32
  }
  func.func @transform_3(%arg0: i32) -> (i32, i32) {
    %c0_i32 = arith.constant 0 : i32
    %c0_i32_0 = arith.constant 0 : i32
    return %arg0, %c0_i32 : i32, i32
  }
}

</mosaic_0001>

<llo_original>
// kernel: tpu_custom_call.1
$region0: #{tpu_custom_call.1}
  #allocation0 [shape = 'u32[]', space=smem, size = 0x4, offset = 0x4, fixed_abs, tag = 'smem constant byte address 0x4 - core index']
  #allocation1 [shape = 'u32[144,128]{1,0:T(1,128)}', space=vmem, size = 0x12000, scoped, tag = 'internal scratch']
  %s0 = inlined_call_operand.vmem [shape: f32[24200,75], index: 0, kind: input, shape index: {}]
  %s1 = inlined_call_operand.vmem [shape: f32[75,10], index: 1, kind: input, shape index: {}]
  %s2 = inlined_call_operand.vmem [shape: f32[1,10], index: 2, kind: input, shape index: {}]
  %s3 = inlined_call_operand.vmem [shape: f32[24200,10], index: 3, kind: output, shape index: {}]
  %s4 = sld [smem:[#allocation0]]
  $region93: #{tpu_custom_call.1} parent=0
    _
  %s6 = ssub.s32 1, %s4
  %s7 = scalar_select 0, %s6, %s4
  $region1: #{tpu_custom_call.1} parent=0
    #allocation2 [shape = 'u8[2097152]{0}', space=vmem, size = 0x200000, scoped, tag = 'output window, operand 0']
    loop: start=0, step=1, limit=14
    $region2: #{tpu_custom_call.1} parent=1 // loop_pre_header
      _
    $region3: #{tpu_custom_call.1} parent=1 // loop_header
      %s9 = sphi 0, %s13
      %p10 = scmp.ge.s32.totalorder %s9, 14
      %s19 = sphi 0, %s21
      %s22 = sphi 0, %s19
      %s23 = sphi 0, %s22
      %s39 = sphi 0, %s23
      %s43 = sphi 0, %s43
      %s45 = sphi 0, %s43
      %s46 = sphi 0, %s45
      %s60 = sphi 0, %s46
      %s64 = sphi 0, %s64
      %s66 = sphi 0, %s64
      %s67 = sphi 0, %s66
      %s81 = sphi 0, %s67
      %s87 = sphi 0, %s89
      %s90 = sphi 0, %s87
      %s91 = sphi 0, %s90
      %s107 = sphi 0, %s91
    $region4: #{tpu_custom_call.1} parent=1 // loop_header_branch
      %12 = sbr.rel (%p10) target = $region8
    $region5: #{tpu_custom_call.1} parent=1 // loop_body
      %s14 = ssub.s32 %s9, 1
      %s15 = ssub.s32 %s9, 2
      %s16 = sadd.s32 %s9, 1
      %s17 = ssub.s32 %s9, %s16
      %p18 = scmp.eq.s32.totalorder %s17, 0
      %s20 = sadd.s32 %s19, 1
      %s21 = scalar_select %p18, %s19, %s20
      %p24 = pneg %p18
      %p25 = scmp.eq.s32.totalorder %s9, 11
      %p26 = por %p24, %p25
      %p27 = scmp.ne.s32.totalorder %s19, %s22
      %p28 = scmp.eq.s32.totalorder %s9, 0
      %p29 = por %p27, %p28
      %p30 = scmp.ne.s32.totalorder %s19, %s22
      %p31 = scmp.eq.s32.totalorder %s14, 11
      %p32 = por %p30, %p31
      %p33 = scmp.ne.s32.totalorder %s22, %s23
      %p34 = scmp.eq.s32.totalorder %s14, 0
      %p35 = por %p33, %p34
      %p36 = scmp.ne.s32.totalorder %s22, %s23
      %p37 = scmp.eq.s32.totalorder %s15, 11
      %p38 = por %p36, %p37
      %p40 = scmp.ne.s32.totalorder %s23, %s39
      %p41 = scmp.eq.s32.totalorder %s15, 0
      %p42 = por %p40, %p41
      %s44 = sadd.s32 %s43, 1
      %p47 = scmp.eq.s32.totalorder %s9, 11
      %p48 = scmp.ne.s32.totalorder %s43, %s45
      %p49 = scmp.eq.s32.totalorder %s9, 0
      %p50 = por %p48, %p49
      %p51 = scmp.ne.s32.totalorder %s43, %s45
      %p52 = scmp.eq.s32.totalorder %s14, 11
      %p53 = por %p51, %p52
      %p54 = scmp.ne.s32.totalorder %s45, %s46
      %p55 = scmp.eq.s32.totalorder %s14, 0
      %p56 = por %p54, %p55
      %p57 = scmp.ne.s32.totalorder %s45, %s46
      %p58 = scmp.eq.s32.totalorder %s15, 11
      %p59 = por %p57, %p58
      %p61 = scmp.ne.s32.totalorder %s46, %s60
      %p62 = scmp.eq.s32.totalorder %s15, 0
      %p63 = por %p61, %p62
      %s65 = sadd.s32 %s64, 1
      %p68 = scmp.eq.s32.totalorder %s9, 11
      %p69 = scmp.ne.s32.totalorder %s64, %s66
      %p70 = scmp.eq.s32.totalorder %s9, 0
      %p71 = por %p69, %p70
      %p72 = scmp.ne.s32.totalorder %s64, %s66
      %p73 = scmp.eq.s32.totalorder %s14, 11
      %p74 = por %p72, %p73
      %p75 = scmp.ne.s32.totalorder %s66, %s67
      %p76 = scmp.eq.s32.totalorder %s14, 0
      %p77 = por %p75, %p76
      %p78 = scmp.ne.s32.totalorder %s66, %s67
      %p79 = scmp.eq.s32.totalorder %s15, 11
      %p80 = por %p78, %p79
      %p82 = scmp.ne.s32.totalorder %s67, %s81
      %p83 = scmp.eq.s32.totalorder %s15, 0
      %p84 = por %p82, %p83
      %s85 = ssub.s32 %s9, %s16
      %p86 = scmp.eq.s32.totalorder %s85, 0
      %s88 = sadd.s32 %s87, 1
      %s89 = scalar_select %p86, %s87, %s88
      %p92 = pneg %p86
      %p93 = scmp.eq.s32.totalorder %s9, 11
      %p94 = por %p92, %p93
      %p95 = scmp.ne.s32.totalorder %s87, %s90
      %p96 = scmp.eq.s32.totalorder %s9, 0
      %p97 = por %p95, %p96
      %p98 = scmp.ne.s32.totalorder %s87, %s90
      %p99 = scmp.eq.s32.totalorder %s14, 11
      %p100 = por %p98, %p99
      %p101 = scmp.ne.s32.totalorder %s90, %s91
      %p102 = scmp.eq.s32.totalorder %s14, 0
      %p103 = por %p101, %p102
      %p104 = scmp.ne.s32.totalorder %s90, %s91
      %p105 = scmp.eq.s32.totalorder %s15, 11
      %p106 = por %p104, %p105
      %p108 = scmp.ne.s32.totalorder %s91, %s107
      %p109 = scmp.eq.s32.totalorder %s15, 0
      %p110 = por %p108, %p109
      %p111 = scmp.le.s32.totalorder 1, %s9
      %p112 = scmp.lt.s32.totalorder %s9, 13
      %p113 = pnand %p111, %p112
      %p114 = pneg %p113
      // Predicated region
      $region9: #{tpu_custom_call.1} parent=5 // pred_check
        _
      $region10: #{tpu_custom_call.1} parent=5 // pred_check_branch
        %116 = sbr.rel (%p113) target = $region12
      $region11: #{tpu_custom_call.1} parent=5 // pred_region
        %s117 = ssub.s32 %s9, 1
        // Predicated region
        $region13: #{tpu_custom_call.1} parent=11 // pred_check
          %p118 = pneg %p56
        $region14: #{tpu_custom_call.1} parent=11 // pred_check_branch
          %120 = sbr.rel (%p118) target = $region16
        $region15: #{tpu_custom_call.1} parent=11 // pred_region
          _
        $region16: #{tpu_custom_call.1} parent=11 // pred_fallthru
          _
        // Predicated region
        $region17: #{tpu_custom_call.1} parent=11 // pred_check
          %p121 = pneg %p77
        $region18: #{tpu_custom_call.1} parent=11 // pred_check_branch
          %123 = sbr.rel (%p121) target = $region20
        $region19: #{tpu_custom_call.1} parent=11 // pred_region
          _
        $region20: #{tpu_custom_call.1} parent=11 // pred_fallthru
          _
      $region12: #{tpu_custom_call.1} parent=5 // pred_fallthru
        _
      %p124 = scmp.lt.s32.totalorder %s9, 12
      // Predicated region
      $region21: #{tpu_custom_call.1} parent=5 // pred_check
        %p125 = pneg %p124
      $region22: #{tpu_custom_call.1} parent=5 // pred_check_branch
        %127 = sbr.rel (%p125) target = $region24
      $region23: #{tpu_custom_call.1} parent=5 // pred_region
        // Predicated region
        $region25: #{tpu_custom_call.1} parent=23 // pred_check
          %p128 = pneg %p29
        $region26: #{tpu_custom_call.1} parent=23 // pred_check_branch
          %130 = sbr.rel (%p128) target = $region28
        $region27: #{tpu_custom_call.1} parent=23 // pred_region
          %s131 = smul.u32 256, %s9
          %s132 = ssub.s32 3025, %s131
          %p133 = scmp.lt.s32.totalorder %s132, 256
          %s134 = scalar_select %p133, %s132, 256
          %s135 = smul.u32 128, %s134
          %p136 = scmp.lt.s32.totalorder %s131, 3024
          %s137 = scalar_select %p136, %s131, 3024
          %s138 = smul.addr %s137, 8
          %s139 = scalar_lea.vmem %s0, %s138
          %s140 = smul.u32 256, %s9
          %s141 = ssub.s32 3025, %s140
          %p142 = scmp.lt.s32.totalorder %s141, 256
          %s143 = scalar_select %p142, %s141, 256
          %s144 = smul.u32 128, %s143
        $region28: #{tpu_custom_call.1} parent=23 // pred_fallthru
          _
      $region24: #{tpu_custom_call.1} parent=5 // pred_fallthru
        _
      %p145 = scmp.le.s32.totalorder 1, %s9
      %p146 = scmp.lt.s32.totalorder %s9, 13
      %p147 = pnand %p145, %p146
      %p148 = pneg %p147
      // Predicated region
      $region29: #{tpu_custom_call.1} parent=5 // pred_check
        _
      $region30: #{tpu_custom_call.1} parent=5 // pred_check_branch
        %150 = sbr.rel (%p147) target = $region32
      $region31: #{tpu_custom_call.1} parent=5 // pred_region
        %s151 = ssub.s32 %s9, 1
        %s152 = smul.u32 256, %s14
        %s153 = ssub.s32 3025, %s152
        %p154 = scmp.lt.s32.totalorder %s153, 256
        %s155 = scalar_select %p154, %s153, 256
        %s156 = smul.u32 128, %s155
        %p157 = scmp.lt.s32.totalorder %s152, 3024
        %s158 = scalar_select %p157, %s152, 3024
        %s159 = smul.addr %s158, 8
        %s160 = scalar_lea.vmem %s0, %s159
        %p161 = pneg %p35
        %p162 = pneg %p32
        %p163 = pneg %p56
        %p164 = pneg %p53
        %p165 = pneg %p77
        %p166 = pneg %p74
        %p167 = pneg %p103
        %p168 = pneg %p100
        %s169 = sand.u32 %s90, 1
        %s170 = sand.u32 %s90, 1
        %s171 = smul.addr %s170, 2048
        %s172 = scalar_lea.vmem [#allocation2], %s171
        %s173 = smul.u32 256, %s14
        %s174 = ssub.s32 3025, %s173
        %p175 = scmp.lt.s32.totalorder %s174, 256
        %s176 = scalar_select %p175, %s174, 256
        %s177 = smul.u32 128, %s176
        %p178 = scmp.lt.s32.totalorder %s173, 3024
        %s179 = scalar_select %p178, %s173, 3024
        %s180 = smul.addr %s179, 8
        %s181 = scalar_lea.vmem %s0, %s180
        %s182 = smul.u32 256, %s14
        %s183 = ssub.s32 3025, %s182
        %p184 = scmp.lt.s32.totalorder %s183, 256
        %s185 = scalar_select %p184, %s183, 256
        %s186 = smul.u32 128, %s185
        %s187 = smul.u32 256, %s14
        %s188 = ssub.s32 3025, %s187
        %p189 = scmp.lt.s32.totalorder %s188, 256
        %s190 = scalar_select %p189, %s188, 256
        %s191 = smul.u32 128, %s190
        %v193 = vld [vmem:[%s181] sm:$0xff]
        %v194 = vld [vmem:[%s181 + $0x8] sm:$0xff]
        %v195 = vld [vmem:[%s181 + $0x10] sm:$0xff]
        %v196 = vld [vmem:[%s181 + $0x18] sm:$0xff]
        %v197 = vld [vmem:[%s181 + $0x20] sm:$0xff]
        %v198 = vld [vmem:[%s181 + $0x28] sm:$0xff]
        %v199 = vld [vmem:[%s181 + $0x30] sm:$0xff]
        %v200 = vld [vmem:[%s181 + $0x38] sm:$0xff]
        %v201 = vld [vmem:[%s181 + $0x40] sm:$0xff]
        %v202 = vld [vmem:[%s181 + $0x48] sm:$0xff]
        %v203 = vld [vmem:[%s181 + $0x50] sm:$0xff]
        %v204 = vld [vmem:[%s181 + $0x58] sm:$0xff]
        %v205 = vld [vmem:[%s181 + $0x60] sm:$0xff]
        %v206 = vld [vmem:[%s181 + $0x68] sm:$0xff]
        %v207 = vld [vmem:[%s181 + $0x70] sm:$0xff]
        %v208 = vld [vmem:[%s181 + $0x78] sm:$0xff]
        %v209 = vld [vmem:[%s181 + $0x80] sm:$0xff]
        %v210 = vld [vmem:[%s181 + $0x88] sm:$0xff]
        %v211 = vld [vmem:[%s181 + $0x90] sm:$0xff]
        %v212 = vld [vmem:[%s181 + $0x98] sm:$0xff]
        %v213 = vld [vmem:[%s181 + $0xa0] sm:$0xff]
        %v214 = vld [vmem:[%s181 + $0xa8] sm:$0xff]
        %v215 = vld [vmem:[%s181 + $0xb0] sm:$0xff]
        %v216 = vld [vmem:[%s181 + $0xb8] sm:$0xff]
        %v217 = vld [vmem:[%s181 + $0xc0] sm:$0xff]
        %v218 = vld [vmem:[%s181 + $0xc8] sm:$0xff]
        %v219 = vld [vmem:[%s181 + $0xd0] sm:$0xff]
        %v220 = vld [vmem:[%s181 + $0xd8] sm:$0xff]
        %v221 = vld [vmem:[%s181 + $0xe0] sm:$0xff]
        %v222 = vld [vmem:[%s181 + $0xe8] sm:$0xff]
        %v223 = vld [vmem:[%s181 + $0xf0] sm:$0xff]
        %v224 = vld [vmem:[%s181 + $0xf8] sm:$0xff]
        %v225 = vld [vmem:[%s181 + $0x100] sm:$0xff]
        %v226 = vld [vmem:[%s181 + $0x108] sm:$0xff]
        %v227 = vld [vmem:[%s181 + $0x110] sm:$0xff]
        %v228 = vld [vmem:[%s181 + $0x118] sm:$0xff]
        %v229 = vld [vmem:[%s181 + $0x120] sm:$0xff]
        %v230 = vld [vmem:[%s181 + $0x128] sm:$0xff]
        %v231 = vld [vmem:[%s181 + $0x130] sm:$0xff]
        %v232 = vld [vmem:[%s181 + $0x138] sm:$0xff]
        %v233 = vld [vmem:[%s181 + $0x140] sm:$0xff]
        %v234 = vld [vmem:[%s181 + $0x148] sm:$0xff]
        %v235 = vld [vmem:[%s181 + $0x150] sm:$0xff]
        %v236 = vld [vmem:[%s181 + $0x158] sm:$0xff]
        %v237 = vld [vmem:[%s181 + $0x160] sm:$0xff]
        %v238 = vld [vmem:[%s181 + $0x168] sm:$0xff]
        %v239 = vld [vmem:[%s181 + $0x170] sm:$0xff]
        %v240 = vld [vmem:[%s181 + $0x178] sm:$0xff]
        %v241 = vld [vmem:[%s181 + $0x180] sm:$0xff]
        %v242 = vld [vmem:[%s181 + $0x188] sm:$0xff]
        %v243 = vld [vmem:[%s181 + $0x190] sm:$0xff]
        %v244 = vld [vmem:[%s181 + $0x198] sm:$0xff]
        %v245 = vld [vmem:[%s181 + $0x1a0] sm:$0xff]
        %v246 = vld [vmem:[%s181 + $0x1a8] sm:$0xff]
        %v247 = vld [vmem:[%s181 + $0x1b0] sm:$0xff]
        %v248 = vld [vmem:[%s181 + $0x1b8] sm:$0xff]
        %v249 = vld [vmem:[%s181 + $0x1c0] sm:$0xff]
        %v250 = vld [vmem:[%s181 + $0x1c8] sm:$0xff]
        %v251 = vld [vmem:[%s181 + $0x1d0] sm:$0xff]
        %v252 = vld [vmem:[%s181 + $0x1d8] sm:$0xff]
        %v253 = vld [vmem:[%s181 + $0x1e0] sm:$0xff]
        %v254 = vld [vmem:[%s181 + $0x1e8] sm:$0xff]
        %v255 = vld [vmem:[%s181 + $0x1f0] sm:$0xff]
        %v256 = vld [vmem:[%s181 + $0x1f8] sm:$0xff]
        %v257 = vld [vmem:[%s181 + $0x200] sm:$0xff]
        %v258 = vld [vmem:[%s181 + $0x208] sm:$0xff]
        %v259 = vld [vmem:[%s181 + $0x210] sm:$0xff]
        %v260 = vld [vmem:[%s181 + $0x218] sm:$0xff]
        %v261 = vld [vmem:[%s181 + $0x220] sm:$0xff]
        %v262 = vld [vmem:[%s181 + $0x228] sm:$0xff]
        %v263 = vld [vmem:[%s181 + $0x230] sm:$0xff]
        %v264 = vld [vmem:[%s181 + $0x238] sm:$0xff]
        %v265 = vld [vmem:[%s181 + $0x240] sm:$0xff]
        %v266 = vld [vmem:[%s181 + $0x248] sm:$0xff]
        %v267 = vld [vmem:[%s181 + $0x250] sm:$0xff]
        %v268 = vld [vmem:[%s181 + $0x258] sm:$0xff]
        %v269 = vld [vmem:[%s181 + $0x260] sm:$0xff]
        %v270 = vld [vmem:[%s181 + $0x268] sm:$0xff]
        %v271 = vld [vmem:[%s181 + $0x270] sm:$0xff]
        %v272 = vld [vmem:[%s181 + $0x278] sm:$0xff]
        %v273 = vld [vmem:[%s181 + $0x280] sm:$0xff]
        %v274 = vld [vmem:[%s181 + $0x288] sm:$0xff]
        %v275 = vld [vmem:[%s181 + $0x290] sm:$0xff]
        %v276 = vld [vmem:[%s181 + $0x298] sm:$0xff]
        %v277 = vld [vmem:[%s181 + $0x2a0] sm:$0xff]
        %v278 = vld [vmem:[%s181 + $0x2a8] sm:$0xff]
        %v279 = vld [vmem:[%s181 + $0x2b0] sm:$0xff]
        %v280 = vld [vmem:[%s181 + $0x2b8] sm:$0xff]
        %v281 = vld [vmem:[%s181 + $0x2c0] sm:$0xff]
        %v282 = vld [vmem:[%s181 + $0x2c8] sm:$0xff]
        %v283 = vld [vmem:[%s181 + $0x2d0] sm:$0xff]
        %v284 = vld [vmem:[%s181 + $0x2d8] sm:$0xff]
        %v285 = vld [vmem:[%s181 + $0x2e0] sm:$0xff]
        %v286 = vld [vmem:[%s181 + $0x2e8] sm:$0xff]
        %v287 = vld [vmem:[%s181 + $0x2f0] sm:$0xff]
        %v288 = vld [vmem:[%s181 + $0x2f8] sm:$0xff]
        %v289 = vld [vmem:[%s181 + $0x300] sm:$0xff]
        %v290 = vld [vmem:[%s181 + $0x308] sm:$0xff]
        %v291 = vld [vmem:[%s181 + $0x310] sm:$0xff]
        %v292 = vld [vmem:[%s181 + $0x318] sm:$0xff]
        %v293 = vld [vmem:[%s181 + $0x320] sm:$0xff]
        %v294 = vld [vmem:[%s181 + $0x328] sm:$0xff]
        %v295 = vld [vmem:[%s181 + $0x330] sm:$0xff]
        %v296 = vld [vmem:[%s181 + $0x338] sm:$0xff]
        %v297 = vld [vmem:[%s181 + $0x340] sm:$0xff]
        %v298 = vld [vmem:[%s181 + $0x348] sm:$0xff]
        %v299 = vld [vmem:[%s181 + $0x350] sm:$0xff]
        %v300 = vld [vmem:[%s181 + $0x358] sm:$0xff]
        %v301 = vld [vmem:[%s181 + $0x360] sm:$0xff]
        %v302 = vld [vmem:[%s181 + $0x368] sm:$0xff]
        %v303 = vld [vmem:[%s181 + $0x370] sm:$0xff]
        %v304 = vld [vmem:[%s181 + $0x378] sm:$0xff]
        %v305 = vld [vmem:[%s181 + $0x380] sm:$0xff]
        %v306 = vld [vmem:[%s181 + $0x388] sm:$0xff]
        %v307 = vld [vmem:[%s181 + $0x390] sm:$0xff]
        %v308 = vld [vmem:[%s181 + $0x398] sm:$0xff]
        %v309 = vld [vmem:[%s181 + $0x3a0] sm:$0xff]
        %v310 = vld [vmem:[%s181 + $0x3a8] sm:$0xff]
        %v311 = vld [vmem:[%s181 + $0x3b0] sm:$0xff]
        %v312 = vld [vmem:[%s181 + $0x3b8] sm:$0xff]
        %v313 = vld [vmem:[%s181 + $0x3c0] sm:$0xff]
        %v314 = vld [vmem:[%s181 + $0x3c8] sm:$0xff]
        %v315 = vld [vmem:[%s181 + $0x3d0] sm:$0xff]
        %v316 = vld [vmem:[%s181 + $0x3d8] sm:$0xff]
        %v317 = vld [vmem:[%s181 + $0x3e0] sm:$0xff]
        %v318 = vld [vmem:[%s181 + $0x3e8] sm:$0xff]
        %v319 = vld [vmem:[%s181 + $0x3f0] sm:$0xff]
        %v320 = vld [vmem:[%s181 + $0x3f8] sm:$0xff]
        %v321 = vld [vmem:[%s181 + $0x400] sm:$0xff]
        %v322 = vld [vmem:[%s181 + $0x408] sm:$0xff]
        %v323 = vld [vmem:[%s181 + $0x410] sm:$0xff]
        %v324 = vld [vmem:[%s181 + $0x418] sm:$0xff]
        %v325 = vld [vmem:[%s181 + $0x420] sm:$0xff]
        %v326 = vld [vmem:[%s181 + $0x428] sm:$0xff]
        %v327 = vld [vmem:[%s181 + $0x430] sm:$0xff]
        %v328 = vld [vmem:[%s181 + $0x438] sm:$0xff]
        %v329 = vld [vmem:[%s181 + $0x440] sm:$0xff]
        %v330 = vld [vmem:[%s181 + $0x448] sm:$0xff]
        %v331 = vld [vmem:[%s181 + $0x450] sm:$0xff]
        %v332 = vld [vmem:[%s181 + $0x458] sm:$0xff]
        %v333 = vld [vmem:[%s181 + $0x460] sm:$0xff]
        %v334 = vld [vmem:[%s181 + $0x468] sm:$0xff]
        %v335 = vld [vmem:[%s181 + $0x470] sm:$0xff]
        %v336 = vld [vmem:[%s181 + $0x478] sm:$0xff]
        %v337 = vld [vmem:[%s181 + $0x480] sm:$0xff]
        %v338 = vld [vmem:[%s181 + $0x488] sm:$0xff]
        %v339 = vld [vmem:[%s181 + $0x490] sm:$0xff]
        %v340 = vld [vmem:[%s181 + $0x498] sm:$0xff]
        %v341 = vld [vmem:[%s181 + $0x4a0] sm:$0xff]
        %v342 = vld [vmem:[%s181 + $0x4a8] sm:$0xff]
        %v343 = vld [vmem:[%s181 + $0x4b0] sm:$0xff]
        %v344 = vld [vmem:[%s181 + $0x4b8] sm:$0xff]
        %v345 = vld [vmem:[%s181 + $0x4c0] sm:$0xff]
        %v346 = vld [vmem:[%s181 + $0x4c8] sm:$0xff]
        %v347 = vld [vmem:[%s181 + $0x4d0] sm:$0xff]
        %v348 = vld [vmem:[%s181 + $0x4d8] sm:$0xff]
        %v349 = vld [vmem:[%s181 + $0x4e0] sm:$0xff]
        %v350 = vld [vmem:[%s181 + $0x4e8] sm:$0xff]
        %v351 = vld [vmem:[%s181 + $0x4f0] sm:$0xff]
        %v352 = vld [vmem:[%s181 + $0x4f8] sm:$0xff]
        %v353 = vld [vmem:[%s181 + $0x500] sm:$0xff]
        %v354 = vld [vmem:[%s181 + $0x508] sm:$0xff]
        %v355 = vld [vmem:[%s181 + $0x510] sm:$0xff]
        %v356 = vld [vmem:[%s181 + $0x518] sm:$0xff]
        %v357 = vld [vmem:[%s181 + $0x520] sm:$0xff]
        %v358 = vld [vmem:[%s181 + $0x528] sm:$0xff]
        %v359 = vld [vmem:[%s181 + $0x530] sm:$0xff]
        %v360 = vld [vmem:[%s181 + $0x538] sm:$0xff]
        %v361 = vld [vmem:[%s181 + $0x540] sm:$0xff]
        %v362 = vld [vmem:[%s181 + $0x548] sm:$0xff]
        %v363 = vld [vmem:[%s181 + $0x550] sm:$0xff]
        %v364 = vld [vmem:[%s181 + $0x558] sm:$0xff]
        %v365 = vld [vmem:[%s181 + $0x560] sm:$0xff]
        %v366 = vld [vmem:[%s181 + $0x568] sm:$0xff]
        %v367 = vld [vmem:[%s181 + $0x570] sm:$0xff]
        %v368 = vld [vmem:[%s181 + $0x578] sm:$0xff]
        %v369 = vld [vmem:[%s181 + $0x580] sm:$0xff]
        %v370 = vld [vmem:[%s181 + $0x588] sm:$0xff]
        %v371 = vld [vmem:[%s181 + $0x590] sm:$0xff]
        %v372 = vld [vmem:[%s181 + $0x598] sm:$0xff]
        %v373 = vld [vmem:[%s181 + $0x5a0] sm:$0xff]
        %v374 = vld [vmem:[%s181 + $0x5a8] sm:$0xff]
        %v375 = vld [vmem:[%s181 + $0x5b0] sm:$0xff]
        %v376 = vld [vmem:[%s181 + $0x5b8] sm:$0xff]
        %v377 = vld [vmem:[%s181 + $0x5c0] sm:$0xff]
        %v378 = vld [vmem:[%s181 + $0x5c8] sm:$0xff]
        %v379 = vld [vmem:[%s181 + $0x5d0] sm:$0xff]
        %v380 = vld [vmem:[%s181 + $0x5d8] sm:$0xff]
        %v381 = vld [vmem:[%s181 + $0x5e0] sm:$0xff]
        %v382 = vld [vmem:[%s181 + $0x5e8] sm:$0xff]
        %v383 = vld [vmem:[%s181 + $0x5f0] sm:$0xff]
        %v384 = vld [vmem:[%s181 + $0x5f8] sm:$0xff]
        %v385 = vld [vmem:[%s181 + $0x600] sm:$0xff]
        %v386 = vld [vmem:[%s181 + $0x608] sm:$0xff]
        %v387 = vld [vmem:[%s181 + $0x610] sm:$0xff]
        %v388 = vld [vmem:[%s181 + $0x618] sm:$0xff]
        %v389 = vld [vmem:[%s181 + $0x620] sm:$0xff]
        %v390 = vld [vmem:[%s181 + $0x628] sm:$0xff]
        %v391 = vld [vmem:[%s181 + $0x630] sm:$0xff]
        %v392 = vld [vmem:[%s181 + $0x638] sm:$0xff]
        %v393 = vld [vmem:[%s181 + $0x640] sm:$0xff]
        %v394 = vld [vmem:[%s181 + $0x648] sm:$0xff]
        %v395 = vld [vmem:[%s181 + $0x650] sm:$0xff]
        %v396 = vld [vmem:[%s181 + $0x658] sm:$0xff]
        %v397 = vld [vmem:[%s181 + $0x660] sm:$0xff]
        %v398 = vld [vmem:[%s181 + $0x668] sm:$0xff]
        %v399 = vld [vmem:[%s181 + $0x670] sm:$0xff]
        %v400 = vld [vmem:[%s181 + $0x678] sm:$0xff]
        %v401 = vld [vmem:[%s181 + $0x680] sm:$0xff]
        %v402 = vld [vmem:[%s181 + $0x688] sm:$0xff]
        %v403 = vld [vmem:[%s181 + $0x690] sm:$0xff]
        %v404 = vld [vmem:[%s181 + $0x698] sm:$0xff]
        %v405 = vld [vmem:[%s181 + $0x6a0] sm:$0xff]
        %v406 = vld [vmem:[%s181 + $0x6a8] sm:$0xff]
        %v407 = vld [vmem:[%s181 + $0x6b0] sm:$0xff]
        %v408 = vld [vmem:[%s181 + $0x6b8] sm:$0xff]
        %v409 = vld [vmem:[%s181 + $0x6c0] sm:$0xff]
        %v410 = vld [vmem:[%s181 + $0x6c8] sm:$0xff]
        %v411 = vld [vmem:[%s181 + $0x6d0] sm:$0xff]
        %v412 = vld [vmem:[%s181 + $0x6d8] sm:$0xff]
        %v413 = vld [vmem:[%s181 + $0x6e0] sm:$0xff]
        %v414 = vld [vmem:[%s181 + $0x6e8] sm:$0xff]
        %v415 = vld [vmem:[%s181 + $0x6f0] sm:$0xff]
        %v416 = vld [vmem:[%s181 + $0x6f8] sm:$0xff]
        %v417 = vld [vmem:[%s181 + $0x700] sm:$0xff]
        %v418 = vld [vmem:[%s181 + $0x708] sm:$0xff]
        %v419 = vld [vmem:[%s181 + $0x710] sm:$0xff]
        %v420 = vld [vmem:[%s181 + $0x718] sm:$0xff]
        %v421 = vld [vmem:[%s181 + $0x720] sm:$0xff]
        %v422 = vld [vmem:[%s181 + $0x728] sm:$0xff]
        %v423 = vld [vmem:[%s181 + $0x730] sm:$0xff]
        %v424 = vld [vmem:[%s181 + $0x738] sm:$0xff]
        %v425 = vld [vmem:[%s181 + $0x740] sm:$0xff]
        %v426 = vld [vmem:[%s181 + $0x748] sm:$0xff]
        %v427 = vld [vmem:[%s181 + $0x750] sm:$0xff]
        %v428 = vld [vmem:[%s181 + $0x758] sm:$0xff]
        %v429 = vld [vmem:[%s181 + $0x760] sm:$0xff]
        %v430 = vld [vmem:[%s181 + $0x768] sm:$0xff]
        %v431 = vld [vmem:[%s181 + $0x770] sm:$0xff]
        %v432 = vld [vmem:[%s181 + $0x778] sm:$0xff]
        %v433 = vld [vmem:[%s181 + $0x780] sm:$0xff]
        %v434 = vld [vmem:[%s181 + $0x788] sm:$0xff]
        %v435 = vld [vmem:[%s181 + $0x790] sm:$0xff]
        %v436 = vld [vmem:[%s181 + $0x798] sm:$0xff]
        %v437 = vld [vmem:[%s181 + $0x7a0] sm:$0xff]
        %v438 = vld [vmem:[%s181 + $0x7a8] sm:$0xff]
        %v439 = vld [vmem:[%s181 + $0x7b0] sm:$0xff]
        %v440 = vld [vmem:[%s181 + $0x7b8] sm:$0xff]
        %v441 = vld [vmem:[%s181 + $0x7c0] sm:$0xff]
        %v442 = vld [vmem:[%s181 + $0x7c8] sm:$0xff]
        %v443 = vld [vmem:[%s181 + $0x7d0] sm:$0xff]
        %v444 = vld [vmem:[%s181 + $0x7d8] sm:$0xff]
        %v445 = vld [vmem:[%s181 + $0x7e0] sm:$0xff]
        %v446 = vld [vmem:[%s181 + $0x7e8] sm:$0xff]
        %v447 = vld [vmem:[%s181 + $0x7f0] sm:$0xff]
        %v448 = vld [vmem:[%s181 + $0x7f8] sm:$0xff]
        %v449 = vpack.c.bf16 %v194, %v193
        %v450 = vpack.c.bf16 %v196, %v195
        %v451 = vpack.c.bf16 %v198, %v197
        %v452 = vpack.c.bf16 %v200, %v199
        %v453 = vpack.c.bf16 %v202, %v201
        %v454 = vpack.c.bf16 %v204, %v203
        %v455 = vpack.c.bf16 %v206, %v205
        %v456 = vpack.c.bf16 %v208, %v207
        %v457 = vpack.c.bf16 %v210, %v209
        %v458 = vpack.c.bf16 %v212, %v211
        %v459 = vpack.c.bf16 %v214, %v213
        %v460 = vpack.c.bf16 %v216, %v215
        %v461 = vpack.c.bf16 %v218, %v217
        %v462 = vpack.c.bf16 %v220, %v219
        %v463 = vpack.c.bf16 %v222, %v221
        %v464 = vpack.c.bf16 %v224, %v223
        %v465 = vpack.c.bf16 %v226, %v225
        %v466 = vpack.c.bf16 %v228, %v227
        %v467 = vpack.c.bf16 %v230, %v229
        %v468 = vpack.c.bf16 %v232, %v231
        %v469 = vpack.c.bf16 %v234, %v233
        %v470 = vpack.c.bf16 %v236, %v235
        %v471 = vpack.c.bf16 %v238, %v237
        %v472 = vpack.c.bf16 %v240, %v239
        %v473 = vpack.c.bf16 %v242, %v241
        %v474 = vpack.c.bf16 %v244, %v243
        %v475 = vpack.c.bf16 %v246, %v245
        %v476 = vpack.c.bf16 %v248, %v247
        %v477 = vpack.c.bf16 %v250, %v249
        %v478 = vpack.c.bf16 %v252, %v251
        %v479 = vpack.c.bf16 %v254, %v253
        %v480 = vpack.c.bf16 %v256, %v255
        %v481 = vpack.c.bf16 %v258, %v257
        %v482 = vpack.c.bf16 %v260, %v259
        %v483 = vpack.c.bf16 %v262, %v261
        %v484 = vpack.c.bf16 %v264, %v263
        %v485 = vpack.c.bf16 %v266, %v265
        %v486 = vpack.c.bf16 %v268, %v267
        %v487 = vpack.c.bf16 %v270, %v269
        %v488 = vpack.c.bf16 %v272, %v271
        %v489 = vpack.c.bf16 %v274, %v273
        %v490 = vpack.c.bf16 %v276, %v275
        %v491 = vpack.c.bf16 %v278, %v277
        %v492 = vpack.c.bf16 %v280, %v279
        %v493 = vpack.c.bf16 %v282, %v281
        %v494 = vpack.c.bf16 %v284, %v283
        %v495 = vpack.c.bf16 %v286, %v285
        %v496 = vpack.c.bf16 %v288, %v287
        %v497 = vpack.c.bf16 %v290, %v289
        %v498 = vpack.c.bf16 %v292, %v291
        %v499 = vpack.c.bf16 %v294, %v293
        %v500 = vpack.c.bf16 %v296, %v295
        %v501 = vpack.c.bf16 %v298, %v297
        %v502 = vpack.c.bf16 %v300, %v299
        %v503 = vpack.c.bf16 %v302, %v301
        %v504 = vpack.c.bf16 %v304, %v303
        %v505 = vpack.c.bf16 %v306, %v305
        %v506 = vpack.c.bf16 %v308, %v307
        %v507 = vpack.c.bf16 %v310, %v309
        %v508 = vpack.c.bf16 %v312, %v311
        %v509 = vpack.c.bf16 %v314, %v313
        %v510 = vpack.c.bf16 %v316, %v315
        %v511 = vpack.c.bf16 %v318, %v317
        %v512 = vpack.c.bf16 %v320, %v319
        %v513 = vpack.c.bf16 %v322, %v321
        %v514 = vpack.c.bf16 %v324, %v323
        %v515 = vpack.c.bf16 %v326, %v325
        %v516 = vpack.c.bf16 %v328, %v327
        %v517 = vpack.c.bf16 %v330, %v329
        %v518 = vpack.c.bf16 %v332, %v331
        %v519 = vpack.c.bf16 %v334, %v333
        %v520 = vpack.c.bf16 %v336, %v335
        %v521 = vpack.c.bf16 %v338, %v337
        %v522 = vpack.c.bf16 %v340, %v339
        %v523 = vpack.c.bf16 %v342, %v341
        %v524 = vpack.c.bf16 %v344, %v343
        %v525 = vpack.c.bf16 %v346, %v345
        %v526 = vpack.c.bf16 %v348, %v347
        %v527 = vpack.c.bf16 %v350, %v349
        %v528 = vpack.c.bf16 %v352, %v351
        %v529 = vpack.c.bf16 %v354, %v353
        %v530 = vpack.c.bf16 %v356, %v355
        %v531 = vpack.c.bf16 %v358, %v357
        %v532 = vpack.c.bf16 %v360, %v359
        %v533 = vpack.c.bf16 %v362, %v361
        %v534 = vpack.c.bf16 %v364, %v363
        %v535 = vpack.c.bf16 %v366, %v365
        %v536 = vpack.c.bf16 %v368, %v367
        %v537 = vpack.c.bf16 %v370, %v369
        %v538 = vpack.c.bf16 %v372, %v371
        %v539 = vpack.c.bf16 %v374, %v373
        %v540 = vpack.c.bf16 %v376, %v375
        %v541 = vpack.c.bf16 %v378, %v377
        %v542 = vpack.c.bf16 %v380, %v379
        %v543 = vpack.c.bf16 %v382, %v381
        %v544 = vpack.c.bf16 %v384, %v383
        %v545 = vpack.c.bf16 %v386, %v385
        %v546 = vpack.c.bf16 %v388, %v387
        %v547 = vpack.c.bf16 %v390, %v389
        %v548 = vpack.c.bf16 %v392, %v391
        %v549 = vpack.c.bf16 %v394, %v393
        %v550 = vpack.c.bf16 %v396, %v395
        %v551 = vpack.c.bf16 %v398, %v397
        %v552 = vpack.c.bf16 %v400, %v399
        %v553 = vpack.c.bf16 %v402, %v401
        %v554 = vpack.c.bf16 %v404, %v403
        %v555 = vpack.c.bf16 %v406, %v405
        %v556 = vpack.c.bf16 %v408, %v407
        %v557 = vpack.c.bf16 %v410, %v409
        %v558 = vpack.c.bf16 %v412, %v411
        %v559 = vpack.c.bf16 %v414, %v413
        %v560 = vpack.c.bf16 %v416, %v415
        %v561 = vpack.c.bf16 %v418, %v417
        %v562 = vpack.c.bf16 %v420, %v419
        %v563 = vpack.c.bf16 %v422, %v421
        %v564 = vpack.c.bf16 %v424, %v423
        %v565 = vpack.c.bf16 %v426, %v425
        %v566 = vpack.c.bf16 %v428, %v427
        %v567 = vpack.c.bf16 %v430, %v429
        %v568 = vpack.c.bf16 %v432, %v431
        %v569 = vpack.c.bf16 %v434, %v433
        %v570 = vpack.c.bf16 %v436, %v435
        %v571 = vpack.c.bf16 %v438, %v437
        %v572 = vpack.c.bf16 %v440, %v439
        %v573 = vpack.c.bf16 %v442, %v441
        %v574 = vpack.c.bf16 %v444, %v443
        %v575 = vpack.c.bf16 %v446, %v445
        %v576 = vpack.c.bf16 %v448, %v447
        %v577 = vld [vmem:[%s1] sm:$0xff]
        %v578 = vld [vmem:[%s1 + $0x8] sm:$0xff]
        %v579 = vld [vmem:[%s1 + $0x10] sm:$0xff]
        %v580 = vld [vmem:[%s1 + $0x18] sm:$0xff]
        %v581 = vld [vmem:[%s1 + $0x20] sm:$0xff]
        %v582 = vld [vmem:[%s1 + $0x28] sm:$0xff]
        %v583 = vld [vmem:[%s1 + $0x30] sm:$0xff]
        %v584 = vld [vmem:[%s1 + $0x38] sm:$0xff]
        %v585 = vld [vmem:[%s1 + $0x40] sm:$0xff]
        %v586 = vld [vmem:[%s1 + $0x48] sm:$0x7]
        %v587 = vpack.c.bf16 %v578, %v577
        %v588 = vpack.c.bf16 %v580, %v579
        %v589 = vpack.c.bf16 %v582, %v581
        %v590 = vpack.c.bf16 %v584, %v583
        %v591 = vpack.c.bf16 %v586, %v585
        %v592 = vld [vmem:[%s2] sm:$0x1]
        %v594 = vlaneseq
        %v595 = vshrl.u32 %v594, 7
        %v596 = vsub.s32 0, %v595
        %v597 = vrot.slane %v592, %v596
        %vm599 = vcmask 613376
        %v601 = vsel %vm599, %v449, 0
        %v604 = vsel %vm599, %v450, 0
        %v607 = vsel %vm599, %v451, 0
        %v610 = vsel %vm599, %v452, 0
        %v613 = vsel %vm599, %v453, 0
        %v616 = vsel %vm599, %v454, 0
        %v619 = vsel %vm599, %v455, 0
        %v622 = vsel %vm599, %v456, 0
        %v625 = vsel %vm599, %v457, 0
        %v628 = vsel %vm599, %v458, 0
        %v631 = vsel %vm599, %v459, 0
        %v634 = vsel %vm599, %v460, 0
        %v637 = vsel %vm599, %v461, 0
        %v640 = vsel %vm599, %v462, 0
        %v643 = vsel %vm599, %v463, 0
        %v646 = vsel %vm599, %v464, 0
        %v649 = vsel %vm599, %v465, 0
        %v652 = vsel %vm599, %v466, 0
        %v655 = vsel %vm599, %v467, 0
        %v658 = vsel %vm599, %v468, 0
        %v661 = vsel %vm599, %v469, 0
        %v664 = vsel %vm599, %v470, 0
        %v667 = vsel %vm599, %v471, 0
        %v670 = vsel %vm599, %v472, 0
        %v673 = vsel %vm599, %v473, 0
        %v676 = vsel %vm599, %v474, 0
        %v679 = vsel %vm599, %v475, 0
        %v682 = vsel %vm599, %v476, 0
        %v685 = vsel %vm599, %v477, 0
        %v688 = vsel %vm599, %v478, 0
        %v691 = vsel %vm599, %v479, 0
        %v694 = vsel %vm599, %v480, 0
        %v697 = vsel %vm599, %v481, 0
        %v700 = vsel %vm599, %v482, 0
        %v703 = vsel %vm599, %v483, 0
        %v706 = vsel %vm599, %v484, 0
        %v709 = vsel %vm599, %v485, 0
        %v712 = vsel %vm599, %v486, 0
        %v715 = vsel %vm599, %v487, 0
        %v718 = vsel %vm599, %v488, 0
        %v721 = vsel %vm599, %v489, 0
        %v724 = vsel %vm599, %v490, 0
        %v727 = vsel %vm599, %v491, 0
        %v730 = vsel %vm599, %v492, 0
        %v733 = vsel %vm599, %v493, 0
        %v736 = vsel %vm599, %v494, 0
        %v739 = vsel %vm599, %v495, 0
        %v742 = vsel %vm599, %v496, 0
        %v745 = vsel %vm599, %v497, 0
        %v748 = vsel %vm599, %v498, 0
        %v751 = vsel %vm599, %v499, 0
        %v754 = vsel %vm599, %v500, 0
        %v757 = vsel %vm599, %v501, 0
        %v760 = vsel %vm599, %v502, 0
        %v763 = vsel %vm599, %v503, 0
        %v766 = vsel %vm599, %v504, 0
        %v769 = vsel %vm599, %v505, 0
        %v772 = vsel %vm599, %v506, 0
        %v775 = vsel %vm599, %v507, 0
        %v778 = vsel %vm599, %v508, 0
        %v781 = vsel %vm599, %v509, 0
        %v784 = vsel %vm599, %v510, 0
        %v787 = vsel %vm599, %v511, 0
        %v790 = vsel %vm599, %v512, 0
        %v793 = vsel %vm599, %v513, 0
        %v796 = vsel %vm599, %v514, 0
        %v799 = vsel %vm599, %v515, 0
        %v802 = vsel %vm599, %v516, 0
        %v805 = vsel %vm599, %v517, 0
        %v808 = vsel %vm599, %v518, 0
        %v811 = vsel %vm599, %v519, 0
        %v814 = vsel %vm599, %v520, 0
        %v817 = vsel %vm599, %v521, 0
        %v820 = vsel %vm599, %v522, 0
        %v823 = vsel %vm599, %v523, 0
        %v826 = vsel %vm599, %v524, 0
        %v829 = vsel %vm599, %v525, 0
        %v832 = vsel %vm599, %v526, 0
        %v835 = vsel %vm599, %v527, 0
        %v838 = vsel %vm599, %v528, 0
        %v841 = vsel %vm599, %v529, 0
        %v844 = vsel %vm599, %v530, 0
        %v847 = vsel %vm599, %v531, 0
        %v850 = vsel %vm599, %v532, 0
        %v853 = vsel %vm599, %v533, 0
        %v856 = vsel %vm599, %v534, 0
        %v859 = vsel %vm599, %v535, 0
        %v862 = vsel %vm599, %v536, 0
        %v865 = vsel %vm599, %v537, 0
        %v868 = vsel %vm599, %v538, 0
        %v871 = vsel %vm599, %v539, 0
        %v874 = vsel %vm599, %v540, 0
        %v877 = vsel %vm599, %v541, 0
        %v880 = vsel %vm599, %v542, 0
        %v883 = vsel %vm599, %v543, 0
        %v886 = vsel %vm599, %v544, 0
        %v889 = vsel %vm599, %v545, 0
        %v892 = vsel %vm599, %v546, 0
        %v895 = vsel %vm599, %v547, 0
        %v898 = vsel %vm599, %v548, 0
        %v901 = vsel %vm599, %v549, 0
        %v904 = vsel %vm599, %v550, 0
        %v907 = vsel %vm599, %v551, 0
        %v910 = vsel %vm599, %v552, 0
        %v913 = vsel %vm599, %v553, 0
        %v916 = vsel %vm599, %v554, 0
        %v919 = vsel %vm599, %v555, 0
        %v922 = vsel %vm599, %v556, 0
        %v925 = vsel %vm599, %v557, 0
        %v928 = vsel %vm599, %v558, 0
        %v931 = vsel %vm599, %v559, 0
        %v934 = vsel %vm599, %v560, 0
        %v937 = vsel %vm599, %v561, 0
        %v940 = vsel %vm599, %v562, 0
        %v943 = vsel %vm599, %v563, 0
        %v946 = vsel %vm599, %v564, 0
        %v949 = vsel %vm599, %v565, 0
        %v952 = vsel %vm599, %v566, 0
        %v955 = vsel %vm599, %v567, 0
        %v958 = vsel %vm599, %v568, 0
        %v961 = vsel %vm599, %v569, 0
        %v964 = vsel %vm599, %v570, 0
        %v967 = vsel %vm599, %v571, 0
        %v970 = vsel %vm599, %v572, 0
        %v973 = vsel %vm599, %v573, 0
        %v976 = vsel %vm599, %v574, 0
        %v979 = vsel %vm599, %v575, 0
        %v982 = vsel %vm599, %v576, 0
        %vm984 = vcmask 1044480
        %vm985 = vcmask 1045504
        %v986 = vsel %vm984, 4294967295, 65535
        %v987 = vsel %vm985, %v986, 0
        %v989 = vand.u32 %v591, %v987
        %991 = vmatprep.subr.bf16.mxu0 0
        %992 = vmatpush1.bf16.msra.mxu0 0
        %993 = vmatprep.subr.bf16.mxu0 0
        %994 = vmatpush1.bf16.msra.mxu0 0
        %995 = vmatprep.subr.bf16.mxu0 0
        %996 = vmatpush1.bf16.msra.mxu0 0
        %997 = vmatprep.subr.bf16.mxu0 0
        %998 = vmatpush1.bf16.msra.mxu0 %v989
        %999 = vmatprep.subr.bf16.mxu0 0
        %1000 = vmatpush1.bf16.msra.mxu0 %v590
        %1001 = vmatprep.subr.bf16.mxu0 0
        %1002 = vmatpush1.bf16.msra.mxu0 %v589
        %1003 = vmatprep.subr.bf16.mxu0 0
        %1004 = vmatpush1.bf16.msra.mxu0 %v588
        %1005 = vmatprep.subr.bf16.mxu0 0
        %1006 = vmatpush1.bf16.msra.mxu0 %v587
        %1007 = vmatprep.subr.bf16.mxu0 0
        %1008 = vmatpush2.bf16.msra.mxu0 0
        %1009 = vmatprep.subr.bf16.mxu0 0
        %1010 = vmatpush2.bf16.msra.mxu0 0
        %1011 = vmatprep.subr.bf16.mxu0 0
        %1012 = vmatpush2.bf16.msra.mxu0 0
        %1013 = vmatprep.subr.bf16.mxu0 0
        %1014 = vmatpush2.bf16.msra.mxu0 0
        %1015 = vmatprep.subr.bf16.mxu0 0
        %1016 = vmatpush2.bf16.msra.mxu0 0
        %1017 = vmatprep.subr.bf16.mxu0 0
        %1018 = vmatpush2.bf16.msra.mxu0 0
        %1019 = vmatprep.subr.bf16.mxu0 0
        %1020 = vmatpush2.bf16.msra.mxu0 0
        %1021 = vmatprep.subr.bf16.mxu0 0
        %1022 = vmatpush2.bf16.msra.mxu0 0
        %1023 = vmatprep.mubr.bf16.mxu0 0
        %1024 = vmatmul.mubr.bf16.gmra.mxu0 %v601
        %v1025 = vpop.f32.mrf.mxu0
        %v1026 = vadd.f32 %v597, %v1025
        %v1027 = vpop.f32.mrf.mxu0
        %v1028 = vpop.f32.mrf.mxu0
        %v1029 = vadd.f32 %v597, %v1028
        %v1030 = vpop.f32.mrf.mxu0
        %1031 = vmatprep.mubr.bf16.mxu0 0
        %1032 = vmatmul.mubr.bf16.gmra.mxu0 %v604
        %v1033 = vpop.f32.mrf.mxu0
        %v1034 = vadd.f32 %v597, %v1033
        %v1035 = vpop.f32.mrf.mxu0
        %v1036 = vpop.f32.mrf.mxu0
        %v1037 = vadd.f32 %v597, %v1036
        %v1038 = vpop.f32.mrf.mxu0
        %1039 = vmatprep.mubr.bf16.mxu0 0
        %1040 = vmatmul.mubr.bf16.gmra.mxu0 %v607
        %v1041 = vpop.f32.mrf.mxu0
        %v1042 = vadd.f32 %v597, %v1041
        %v1043 = vpop.f32.mrf.mxu0
        %v1044 = vpop.f32.mrf.mxu0
        %v1045 = vadd.f32 %v597, %v1044
        %v1046 = vpop.f32.mrf.mxu0
        %1047 = vmatprep.mubr.bf16.mxu0 0
        %1048 = vmatmul.mubr.bf16.gmra.mxu0 %v610
        %v1049 = vpop.f32.mrf.mxu0
        %v1050 = vadd.f32 %v597, %v1049
        %v1051 = vpop.f32.mrf.mxu0
        %v1052 = vpop.f32.mrf.mxu0
        %v1053 = vadd.f32 %v597, %v1052
        %v1054 = vpop.f32.mrf.mxu0
        %1055 = vmatprep.mubr.bf16.mxu0 0
        %1056 = vmatmul.mubr.bf16.gmra.mxu0 %v613
        %v1057 = vpop.f32.mrf.mxu0
        %v1058 = vadd.f32 %v597, %v1057
        %v1059 = vpop.f32.mrf.mxu0
        %v1060 = vpop.f32.mrf.mxu0
        %v1061 = vadd.f32 %v597, %v1060
        %v1062 = vpop.f32.mrf.mxu0
        %1063 = vmatprep.mubr.bf16.mxu0 0
        %1064 = vmatmul.mubr.bf16.gmra.mxu0 %v616
        %v1065 = vpop.f32.mrf.mxu0
        %v1066 = vadd.f32 %v597, %v1065
        %v1067 = vpop.f32.mrf.mxu0
        %v1068 = vpop.f32.mrf.mxu0
        %v1069 = vadd.f32 %v597, %v1068
        %v1070 = vpop.f32.mrf.mxu0
        %1071 = vmatprep.mubr.bf16.mxu0 0
        %1072 = vmatmul.mubr.bf16.gmra.mxu0 %v619
        %v1073 = vpop.f32.mrf.mxu0
        %v1074 = vadd.f32 %v597, %v1073
        %v1075 = vpop.f32.mrf.mxu0
        %v1076 = vpop.f32.mrf.mxu0
        %v1077 = vadd.f32 %v597, %v1076
        %v1078 = vpop.f32.mrf.mxu0
        %1079 = vmatprep.mubr.bf16.mxu0 0
        %1080 = vmatmul.mubr.bf16.gmra.mxu0 %v622
        %v1081 = vpop.f32.mrf.mxu0
        %v1082 = vadd.f32 %v597, %v1081
        %v1083 = vpop.f32.mrf.mxu0
        %v1084 = vpop.f32.mrf.mxu0
        %v1085 = vadd.f32 %v597, %v1084
        %v1086 = vpop.f32.mrf.mxu0
        %1087 = vmatprep.mubr.bf16.mxu0 0
        %1088 = vmatmul.mubr.bf16.gmra.mxu0 %v625
        %v1089 = vpop.f32.mrf.mxu0
        %v1090 = vadd.f32 %v597, %v1089
        %v1091 = vpop.f32.mrf.mxu0
        %v1092 = vpop.f32.mrf.mxu0
        %v1093 = vadd.f32 %v597, %v1092
        %v1094 = vpop.f32.mrf.mxu0
        %1095 = vmatprep.mubr.bf16.mxu0 0
        %1096 = vmatmul.mubr.bf16.gmra.mxu0 %v628
        %v1097 = vpop.f32.mrf.mxu0
        %v1098 = vadd.f32 %v597, %v1097
        %v1099 = vpop.f32.mrf.mxu0
        %v1100 = vpop.f32.mrf.mxu0
        %v1101 = vadd.f32 %v597, %v1100
        %v1102 = vpop.f32.mrf.mxu0
        %1103 = vmatprep.mubr.bf16.mxu0 0
        %1104 = vmatmul.mubr.bf16.gmra.mxu0 %v631
        %v1105 = vpop.f32.mrf.mxu0
        %v1106 = vadd.f32 %v597, %v1105
        %v1107 = vpop.f32.mrf.mxu0
        %v1108 = vpop.f32.mrf.mxu0
        %v1109 = vadd.f32 %v597, %v1108
        %v1110 = vpop.f32.mrf.mxu0
        %1111 = vmatprep.mubr.bf16.mxu0 0
        %1112 = vmatmul.mubr.bf16.gmra.mxu0 %v634
        %v1113 = vpop.f32.mrf.mxu0
        %v1114 = vadd.f32 %v597, %v1113
        %v1115 = vpop.f32.mrf.mxu0
        %v1116 = vpop.f32.mrf.mxu0
        %v1117 = vadd.f32 %v597, %v1116
        %v1118 = vpop.f32.mrf.mxu0
        %1119 = vmatprep.mubr.bf16.mxu0 0
        %1120 = vmatmul.mubr.bf16.gmra.mxu0 %v637
        %v1121 = vpop.f32.mrf.mxu0
        %v1122 = vadd.f32 %v597, %v1121
        %v1123 = vpop.f32.mrf.mxu0
        %v1124 = vpop.f32.mrf.mxu0
        %v1125 = vadd.f32 %v597, %v1124
        %v1126 = vpop.f32.mrf.mxu0
        %1127 = vmatprep.mubr.bf16.mxu0 0
        %1128 = vmatmul.mubr.bf16.gmra.mxu0 %v640
        %v1129 = vpop.f32.mrf.mxu0
        %v1130 = vadd.f32 %v597, %v1129
        %v1131 = vpop.f32.mrf.mxu0
        %v1132 = vpop.f32.mrf.mxu0
        %v1133 = vadd.f32 %v597, %v1132
        %v1134 = vpop.f32.mrf.mxu0
        %1135 = vmatprep.mubr.bf16.mxu0 0
        %1136 = vmatmul.mubr.bf16.gmra.mxu0 %v643
        %v1137 = vpop.f32.mrf.mxu0
        %v1138 = vadd.f32 %v597, %v1137
        %v1139 = vpop.f32.mrf.mxu0
        %v1140 = vpop.f32.mrf.mxu0
        %v1141 = vadd.f32 %v597, %v1140
        %v1142 = vpop.f32.mrf.mxu0
        %1143 = vmatprep.mubr.bf16.mxu0 0
        %1144 = vmatmul.mubr.bf16.gmra.mxu0 %v646
        %v1145 = vpop.f32.mrf.mxu0
        %v1146 = vadd.f32 %v597, %v1145
        %v1147 = vpop.f32.mrf.mxu0
        %v1148 = vpop.f32.mrf.mxu0
        %v1149 = vadd.f32 %v597, %v1148
        %v1150 = vpop.f32.mrf.mxu0
        %1151 = vmatprep.mubr.bf16.mxu0 0
        %1152 = vmatmul.mubr.bf16.gmra.mxu0 %v649
        %v1153 = vpop.f32.mrf.mxu0
        %v1154 = vadd.f32 %v597, %v1153
        %v1155 = vpop.f32.mrf.mxu0
        %v1156 = vpop.f32.mrf.mxu0
        %v1157 = vadd.f32 %v597, %v1156
        %v1158 = vpop.f32.mrf.mxu0
        %1159 = vmatprep.mubr.bf16.mxu0 0
        %1160 = vmatmul.mubr.bf16.gmra.mxu0 %v652
        %v1161 = vpop.f32.mrf.mxu0
        %v1162 = vadd.f32 %v597, %v1161
        %v1163 = vpop.f32.mrf.mxu0
        %v1164 = vpop.f32.mrf.mxu0
        %v1165 = vadd.f32 %v597, %v1164
        %v1166 = vpop.f32.mrf.mxu0
        %1167 = vmatprep.mubr.bf16.mxu0 0
        %1168 = vmatmul.mubr.bf16.gmra.mxu0 %v655
        %v1169 = vpop.f32.mrf.mxu0
        %v1170 = vadd.f32 %v597, %v1169
        %v1171 = vpop.f32.mrf.mxu0
        %v1172 = vpop.f32.mrf.mxu0
        %v1173 = vadd.f32 %v597, %v1172
        %v1174 = vpop.f32.mrf.mxu0
        %1175 = vmatprep.mubr.bf16.mxu0 0
        %1176 = vmatmul.mubr.bf16.gmra.mxu0 %v658
        %v1177 = vpop.f32.mrf.mxu0
        %v1178 = vadd.f32 %v597, %v1177
        %v1179 = vpop.f32.mrf.mxu0
        %v1180 = vpop.f32.mrf.mxu0
        %v1181 = vadd.f32 %v597, %v1180
        %v1182 = vpop.f32.mrf.mxu0
        %1183 = vmatprep.mubr.bf16.mxu0 0
        %1184 = vmatmul.mubr.bf16.gmra.mxu0 %v661
        %v1185 = vpop.f32.mrf.mxu0
        %v1186 = vadd.f32 %v597, %v1185
        %v1187 = vpop.f32.mrf.mxu0
        %v1188 = vpop.f32.mrf.mxu0
        %v1189 = vadd.f32 %v597, %v1188
        %v1190 = vpop.f32.mrf.mxu0
        %1191 = vmatprep.mubr.bf16.mxu0 0
        %1192 = vmatmul.mubr.bf16.gmra.mxu0 %v664
        %v1193 = vpop.f32.mrf.mxu0
        %v1194 = vadd.f32 %v597, %v1193
        %v1195 = vpop.f32.mrf.mxu0
        %v1196 = vpop.f32.mrf.mxu0
        %v1197 = vadd.f32 %v597, %v1196
        %v1198 = vpop.f32.mrf.mxu0
        %1199 = vmatprep.mubr.bf16.mxu0 0
        %1200 = vmatmul.mubr.bf16.gmra.mxu0 %v667
        %v1201 = vpop.f32.mrf.mxu0
        %v1202 = vadd.f32 %v597, %v1201
        %v1203 = vpop.f32.mrf.mxu0
        %v1204 = vpop.f32.mrf.mxu0
        %v1205 = vadd.f32 %v597, %v1204
        %v1206 = vpop.f32.mrf.mxu0
        %1207 = vmatprep.mubr.bf16.mxu0 0
        %1208 = vmatmul.mubr.bf16.gmra.mxu0 %v670
        %v1209 = vpop.f32.mrf.mxu0
        %v1210 = vadd.f32 %v597, %v1209
        %v1211 = vpop.f32.mrf.mxu0
        %v1212 = vpop.f32.mrf.mxu0
        %v1213 = vadd.f32 %v597, %v1212
        %v1214 = vpop.f32.mrf.mxu0
        %1215 = vmatprep.mubr.bf16.mxu0 0
        %1216 = vmatmul.mubr.bf16.gmra.mxu0 %v673
        %v1217 = vpop.f32.mrf.mxu0
        %v1218 = vadd.f32 %v597, %v1217
        %v1219 = vpop.f32.mrf.mxu0
        %v1220 = vpop.f32.mrf.mxu0
        %v1221 = vadd.f32 %v597, %v1220
        %v1222 = vpop.f32.mrf.mxu0
        %1223 = vmatprep.mubr.bf16.mxu0 0
        %1224 = vmatmul.mubr.bf16.gmra.mxu0 %v676
        %v1225 = vpop.f32.mrf.mxu0
        %v1226 = vadd.f32 %v597, %v1225
        %v1227 = vpop.f32.mrf.mxu0
        %v1228 = vpop.f32.mrf.mxu0
        %v1229 = vadd.f32 %v597, %v1228
        %v1230 = vpop.f32.mrf.mxu0
        %1231 = vmatprep.mubr.bf16.mxu0 0
        %1232 = vmatmul.mubr.bf16.gmra.mxu0 %v679
        %v1233 = vpop.f32.mrf.mxu0
        %v1234 = vadd.f32 %v597, %v1233
        %v1235 = vpop.f32.mrf.mxu0
        %v1236 = vpop.f32.mrf.mxu0
        %v1237 = vadd.f32 %v597, %v1236
        %v1238 = vpop.f32.mrf.mxu0
        %1239 = vmatprep.mubr.bf16.mxu0 0
        %1240 = vmatmul.mubr.bf16.gmra.mxu0 %v682
        %v1241 = vpop.f32.mrf.mxu0
        %v1242 = vadd.f32 %v597, %v1241
        %v1243 = vpop.f32.mrf.mxu0
        %v1244 = vpop.f32.mrf.mxu0
        %v1245 = vadd.f32 %v597, %v1244
        %v1246 = vpop.f32.mrf.mxu0
        %1247 = vmatprep.mubr.bf16.mxu0 0
        %1248 = vmatmul.mubr.bf16.gmra.mxu0 %v685
        %v1249 = vpop.f32.mrf.mxu0
        %v1250 = vadd.f32 %v597, %v1249
        %v1251 = vpop.f32.mrf.mxu0
        %v1252 = vpop.f32.mrf.mxu0
        %v1253 = vadd.f32 %v597, %v1252
        %v1254 = vpop.f32.mrf.mxu0
        %1255 = vmatprep.mubr.bf16.mxu0 0
        %1256 = vmatmul.mubr.bf16.gmra.mxu0 %v688
        %v1257 = vpop.f32.mrf.mxu0
        %v1258 = vadd.f32 %v597, %v1257
        %v1259 = vpop.f32.mrf.mxu0
        %v1260 = vpop.f32.mrf.mxu0
        %v1261 = vadd.f32 %v597, %v1260
        %v1262 = vpop.f32.mrf.mxu0
        %1263 = vmatprep.mubr.bf16.mxu0 0
        %1264 = vmatmul.mubr.bf16.gmra.mxu0 %v691
        %v1265 = vpop.f32.mrf.mxu0
        %v1266 = vadd.f32 %v597, %v1265
        %v1267 = vpop.f32.mrf.mxu0
        %v1268 = vpop.f32.mrf.mxu0
        %v1269 = vadd.f32 %v597, %v1268
        %v1270 = vpop.f32.mrf.mxu0
        %1271 = vmatprep.mubr.bf16.mxu0 0
        %1272 = vmatmul.mubr.bf16.gmra.mxu0 %v694
        %v1273 = vpop.f32.mrf.mxu0
        %v1274 = vadd.f32 %v597, %v1273
        %v1275 = vpop.f32.mrf.mxu0
        %v1276 = vpop.f32.mrf.mxu0
        %v1277 = vadd.f32 %v597, %v1276
        %v1278 = vpop.f32.mrf.mxu0
        %1279 = vmatprep.mubr.bf16.mxu0 0
        %1280 = vmatmul.mubr.bf16.gmra.mxu0 %v697
        %v1281 = vpop.f32.mrf.mxu0
        %v1282 = vadd.f32 %v597, %v1281
        %v1283 = vpop.f32.mrf.mxu0
        %v1284 = vpop.f32.mrf.mxu0
        %v1285 = vadd.f32 %v597, %v1284
        %v1286 = vpop.f32.mrf.mxu0
        %1287 = vmatprep.mubr.bf16.mxu0 0
        %1288 = vmatmul.mubr.bf16.gmra.mxu0 %v700
        %v1289 = vpop.f32.mrf.mxu0
        %v1290 = vadd.f32 %v597, %v1289
        %v1291 = vpop.f32.mrf.mxu0
        %v1292 = vpop.f32.mrf.mxu0
        %v1293 = vadd.f32 %v597, %v1292
        %v1294 = vpop.f32.mrf.mxu0
        %1295 = vmatprep.mubr.bf16.mxu0 0
        %1296 = vmatmul.mubr.bf16.gmra.mxu0 %v703
        %v1297 = vpop.f32.mrf.mxu0
        %v1298 = vadd.f32 %v597, %v1297
        %v1299 = vpop.f32.mrf.mxu0
        %v1300 = vpop.f32.mrf.mxu0
        %v1301 = vadd.f32 %v597, %v1300
        %v1302 = vpop.f32.mrf.mxu0
        %1303 = vmatprep.mubr.bf16.mxu0 0
        %1304 = vmatmul.mubr.bf16.gmra.mxu0 %v706
        %v1305 = vpop.f32.mrf.mxu0
        %v1306 = vadd.f32 %v597, %v1305
        %v1307 = vpop.f32.mrf.mxu0
        %v1308 = vpop.f32.mrf.mxu0
        %v1309 = vadd.f32 %v597, %v1308
        %v1310 = vpop.f32.mrf.mxu0
        %1311 = vmatprep.mubr.bf16.mxu0 0
        %1312 = vmatmul.mubr.bf16.gmra.mxu0 %v709
        %v1313 = vpop.f32.mrf.mxu0
        %v1314 = vadd.f32 %v597, %v1313
        %v1315 = vpop.f32.mrf.mxu0
        %v1316 = vpop.f32.mrf.mxu0
        %v1317 = vadd.f32 %v597, %v1316
        %v1318 = vpop.f32.mrf.mxu0
        %1319 = vmatprep.mubr.bf16.mxu0 0
        %1320 = vmatmul.mubr.bf16.gmra.mxu0 %v712
        %v1321 = vpop.f32.mrf.mxu0
        %v1322 = vadd.f32 %v597, %v1321
        %v1323 = vpop.f32.mrf.mxu0
        %v1324 = vpop.f32.mrf.mxu0
        %v1325 = vadd.f32 %v597, %v1324
        %v1326 = vpop.f32.mrf.mxu0
        %1327 = vmatprep.mubr.bf16.mxu0 0
        %1328 = vmatmul.mubr.bf16.gmra.mxu0 %v715
        %v1329 = vpop.f32.mrf.mxu0
        %v1330 = vadd.f32 %v597, %v1329
        %v1331 = vpop.f32.mrf.mxu0
        %v1332 = vpop.f32.mrf.mxu0
        %v1333 = vadd.f32 %v597, %v1332
        %v1334 = vpop.f32.mrf.mxu0
        %1335 = vmatprep.mubr.bf16.mxu0 0
        %1336 = vmatmul.mubr.bf16.gmra.mxu0 %v718
        %v1337 = vpop.f32.mrf.mxu0
        %v1338 = vadd.f32 %v597, %v1337
        %v1339 = vpop.f32.mrf.mxu0
        %v1340 = vpop.f32.mrf.mxu0
        %v1341 = vadd.f32 %v597, %v1340
        %v1342 = vpop.f32.mrf.mxu0
        %1343 = vmatprep.mubr.bf16.mxu0 0
        %1344 = vmatmul.mubr.bf16.gmra.mxu0 %v721
        %v1345 = vpop.f32.mrf.mxu0
        %v1346 = vadd.f32 %v597, %v1345
        %v1347 = vpop.f32.mrf.mxu0
        %v1348 = vpop.f32.mrf.mxu0
        %v1349 = vadd.f32 %v597, %v1348
        %v1350 = vpop.f32.mrf.mxu0
        %1351 = vmatprep.mubr.bf16.mxu0 0
        %1352 = vmatmul.mubr.bf16.gmra.mxu0 %v724
        %v1353 = vpop.f32.mrf.mxu0
        %v1354 = vadd.f32 %v597, %v1353
        %v1355 = vpop.f32.mrf.mxu0
        %v1356 = vpop.f32.mrf.mxu0
        %v1357 = vadd.f32 %v597, %v1356
        %v1358 = vpop.f32.mrf.mxu0
        %1359 = vmatprep.mubr.bf16.mxu0 0
        %1360 = vmatmul.mubr.bf16.gmra.mxu0 %v727
        %v1361 = vpop.f32.mrf.mxu0
        %v1362 = vadd.f32 %v597, %v1361
        %v1363 = vpop.f32.mrf.mxu0
        %v1364 = vpop.f32.mrf.mxu0
        %v1365 = vadd.f32 %v597, %v1364
        %v1366 = vpop.f32.mrf.mxu0
        %1367 = vmatprep.mubr.bf16.mxu0 0
        %1368 = vmatmul.mubr.bf16.gmra.mxu0 %v730
        %v1369 = vpop.f32.mrf.mxu0
        %v1370 = vadd.f32 %v597, %v1369
        %v1371 = vpop.f32.mrf.mxu0
        %v1372 = vpop.f32.mrf.mxu0
        %v1373 = vadd.f32 %v597, %v1372
        %v1374 = vpop.f32.mrf.mxu0
        %1375 = vmatprep.mubr.bf16.mxu0 0
        %1376 = vmatmul.mubr.bf16.gmra.mxu0 %v733
        %v1377 = vpop.f32.mrf.mxu0
        %v1378 = vadd.f32 %v597, %v1377
        %v1379 = vpop.f32.mrf.mxu0
        %v1380 = vpop.f32.mrf.mxu0
        %v1381 = vadd.f32 %v597, %v1380
        %v1382 = vpop.f32.mrf.mxu0
        %1383 = vmatprep.mubr.bf16.mxu0 0
        %1384 = vmatmul.mubr.bf16.gmra.mxu0 %v736
        %v1385 = vpop.f32.mrf.mxu0
        %v1386 = vadd.f32 %v597, %v1385
        %v1387 = vpop.f32.mrf.mxu0
        %v1388 = vpop.f32.mrf.mxu0
        %v1389 = vadd.f32 %v597, %v1388
        %v1390 = vpop.f32.mrf.mxu0
        %1391 = vmatprep.mubr.bf16.mxu0 0
        %1392 = vmatmul.mubr.bf16.gmra.mxu0 %v739
        %v1393 = vpop.f32.mrf.mxu0
        %v1394 = vadd.f32 %v597, %v1393
        %v1395 = vpop.f32.mrf.mxu0
        %v1396 = vpop.f32.mrf.mxu0
        %v1397 = vadd.f32 %v597, %v1396
        %v1398 = vpop.f32.mrf.mxu0
        %1399 = vmatprep.mubr.bf16.mxu0 0
        %1400 = vmatmul.mubr.bf16.gmra.mxu0 %v742
        %v1401 = vpop.f32.mrf.mxu0
        %v1402 = vadd.f32 %v597, %v1401
        %v1403 = vpop.f32.mrf.mxu0
        %v1404 = vpop.f32.mrf.mxu0
        %v1405 = vadd.f32 %v597, %v1404
        %v1406 = vpop.f32.mrf.mxu0
        %1407 = vmatprep.mubr.bf16.mxu0 0
        %1408 = vmatmul.mubr.bf16.gmra.mxu0 %v745
        %v1409 = vpop.f32.mrf.mxu0
        %v1410 = vadd.f32 %v597, %v1409
        %v1411 = vpop.f32.mrf.mxu0
        %v1412 = vpop.f32.mrf.mxu0
        %v1413 = vadd.f32 %v597, %v1412
        %v1414 = vpop.f32.mrf.mxu0
        %1415 = vmatprep.mubr.bf16.mxu0 0
        %1416 = vmatmul.mubr.bf16.gmra.mxu0 %v748
        %v1417 = vpop.f32.mrf.mxu0
        %v1418 = vadd.f32 %v597, %v1417
        %v1419 = vpop.f32.mrf.mxu0
        %v1420 = vpop.f32.mrf.mxu0
        %v1421 = vadd.f32 %v597, %v1420
        %v1422 = vpop.f32.mrf.mxu0
        %1423 = vmatprep.mubr.bf16.mxu0 0
        %1424 = vmatmul.mubr.bf16.gmra.mxu0 %v751
        %v1425 = vpop.f32.mrf.mxu0
        %v1426 = vadd.f32 %v597, %v1425
        %v1427 = vpop.f32.mrf.mxu0
        %v1428 = vpop.f32.mrf.mxu0
        %v1429 = vadd.f32 %v597, %v1428
        %v1430 = vpop.f32.mrf.mxu0
        %1431 = vmatprep.mubr.bf16.mxu0 0
        %1432 = vmatmul.mubr.bf16.gmra.mxu0 %v754
        %v1433 = vpop.f32.mrf.mxu0
        %v1434 = vadd.f32 %v597, %v1433
        %v1435 = vpop.f32.mrf.mxu0
        %v1436 = vpop.f32.mrf.mxu0
        %v1437 = vadd.f32 %v597, %v1436
        %v1438 = vpop.f32.mrf.mxu0
        %1439 = vmatprep.mubr.bf16.mxu0 0
        %1440 = vmatmul.mubr.bf16.gmra.mxu0 %v757
        %v1441 = vpop.f32.mrf.mxu0
        %v1442 = vadd.f32 %v597, %v1441
        %v1443 = vpop.f32.mrf.mxu0
        %v1444 = vpop.f32.mrf.mxu0
        %v1445 = vadd.f32 %v597, %v1444
        %v1446 = vpop.f32.mrf.mxu0
        %1447 = vmatprep.mubr.bf16.mxu0 0
        %1448 = vmatmul.mubr.bf16.gmra.mxu0 %v760
        %v1449 = vpop.f32.mrf.mxu0
        %v1450 = vadd.f32 %v597, %v1449
        %v1451 = vpop.f32.mrf.mxu0
        %v1452 = vpop.f32.mrf.mxu0
        %v1453 = vadd.f32 %v597, %v1452
        %v1454 = vpop.f32.mrf.mxu0
        %1455 = vmatprep.mubr.bf16.mxu0 0
        %1456 = vmatmul.mubr.bf16.gmra.mxu0 %v763
        %v1457 = vpop.f32.mrf.mxu0
        %v1458 = vadd.f32 %v597, %v1457
        %v1459 = vpop.f32.mrf.mxu0
        %v1460 = vpop.f32.mrf.mxu0
        %v1461 = vadd.f32 %v597, %v1460
        %v1462 = vpop.f32.mrf.mxu0
        %1463 = vmatprep.mubr.bf16.mxu0 0
        %1464 = vmatmul.mubr.bf16.gmra.mxu0 %v766
        %v1465 = vpop.f32.mrf.mxu0
        %v1466 = vadd.f32 %v597, %v1465
        %v1467 = vpop.f32.mrf.mxu0
        %v1468 = vpop.f32.mrf.mxu0
        %v1469 = vadd.f32 %v597, %v1468
        %v1470 = vpop.f32.mrf.mxu0
        %1471 = vmatprep.mubr.bf16.mxu0 0
        %1472 = vmatmul.mubr.bf16.gmra.mxu0 %v769
        %v1473 = vpop.f32.mrf.mxu0
        %v1474 = vadd.f32 %v597, %v1473
        %v1475 = vpop.f32.mrf.mxu0
        %v1476 = vpop.f32.mrf.mxu0
        %v1477 = vadd.f32 %v597, %v1476
        %v1478 = vpop.f32.mrf.mxu0
        %1479 = vmatprep.mubr.bf16.mxu0 0
        %1480 = vmatmul.mubr.bf16.gmra.mxu0 %v772
        %v1481 = vpop.f32.mrf.mxu0
        %v1482 = vadd.f32 %v597, %v1481
        %v1483 = vpop.f32.mrf.mxu0
        %v1484 = vpop.f32.mrf.mxu0
        %v1485 = vadd.f32 %v597, %v1484
        %v1486 = vpop.f32.mrf.mxu0
        %1487 = vmatprep.mubr.bf16.mxu0 0
        %1488 = vmatmul.mubr.bf16.gmra.mxu0 %v775
        %v1489 = vpop.f32.mrf.mxu0
        %v1490 = vadd.f32 %v597, %v1489
        %v1491 = vpop.f32.mrf.mxu0
        %v1492 = vpop.f32.mrf.mxu0
        %v1493 = vadd.f32 %v597, %v1492
        %v1494 = vpop.f32.mrf.mxu0
        %1495 = vmatprep.mubr.bf16.mxu0 0
        %1496 = vmatmul.mubr.bf16.gmra.mxu0 %v778
        %v1497 = vpop.f32.mrf.mxu0
        %v1498 = vadd.f32 %v597, %v1497
        %v1499 = vpop.f32.mrf.mxu0
        %v1500 = vpop.f32.mrf.mxu0
        %v1501 = vadd.f32 %v597, %v1500
        %v1502 = vpop.f32.mrf.mxu0
        %1503 = vmatprep.mubr.bf16.mxu0 0
        %1504 = vmatmul.mubr.bf16.gmra.mxu0 %v781
        %v1505 = vpop.f32.mrf.mxu0
        %v1506 = vadd.f32 %v597, %v1505
        %v1507 = vpop.f32.mrf.mxu0
        %v1508 = vpop.f32.mrf.mxu0
        %v1509 = vadd.f32 %v597, %v1508
        %v1510 = vpop.f32.mrf.mxu0
        %1511 = vmatprep.mubr.bf16.mxu0 0
        %1512 = vmatmul.mubr.bf16.gmra.mxu0 %v784
        %v1513 = vpop.f32.mrf.mxu0
        %v1514 = vadd.f32 %v597, %v1513
        %v1515 = vpop.f32.mrf.mxu0
        %v1516 = vpop.f32.mrf.mxu0
        %v1517 = vadd.f32 %v597, %v1516
        %v1518 = vpop.f32.mrf.mxu0
        %1519 = vmatprep.mubr.bf16.mxu0 0
        %1520 = vmatmul.mubr.bf16.gmra.mxu0 %v787
        %v1521 = vpop.f32.mrf.mxu0
        %v1522 = vadd.f32 %v597, %v1521
        %v1523 = vpop.f32.mrf.mxu0
        %v1524 = vpop.f32.mrf.mxu0
        %v1525 = vadd.f32 %v597, %v1524
        %v1526 = vpop.f32.mrf.mxu0
        %1527 = vmatprep.mubr.bf16.mxu0 0
        %1528 = vmatmul.mubr.bf16.gmra.mxu0 %v790
        %v1529 = vpop.f32.mrf.mxu0
        %v1530 = vadd.f32 %v597, %v1529
        %v1531 = vpop.f32.mrf.mxu0
        %v1532 = vpop.f32.mrf.mxu0
        %v1533 = vadd.f32 %v597, %v1532
        %v1534 = vpop.f32.mrf.mxu0
        %1535 = vmatprep.mubr.bf16.mxu0 0
        %1536 = vmatmul.mubr.bf16.gmra.mxu0 %v793
        %v1537 = vpop.f32.mrf.mxu0
        %v1538 = vadd.f32 %v597, %v1537
        %v1539 = vpop.f32.mrf.mxu0
        %v1540 = vpop.f32.mrf.mxu0
        %v1541 = vadd.f32 %v597, %v1540
        %v1542 = vpop.f32.mrf.mxu0
        %1543 = vmatprep.mubr.bf16.mxu0 0
        %1544 = vmatmul.mubr.bf16.gmra.mxu0 %v796
        %v1545 = vpop.f32.mrf.mxu0
        %v1546 = vadd.f32 %v597, %v1545
        %v1547 = vpop.f32.mrf.mxu0
        %v1548 = vpop.f32.mrf.mxu0
        %v1549 = vadd.f32 %v597, %v1548
        %v1550 = vpop.f32.mrf.mxu0
        %1551 = vmatprep.mubr.bf16.mxu0 0
        %1552 = vmatmul.mubr.bf16.gmra.mxu0 %v799
        %v1553 = vpop.f32.mrf.mxu0
        %v1554 = vadd.f32 %v597, %v1553
        %v1555 = vpop.f32.mrf.mxu0
        %v1556 = vpop.f32.mrf.mxu0
        %v1557 = vadd.f32 %v597, %v1556
        %v1558 = vpop.f32.mrf.mxu0
        %1559 = vmatprep.mubr.bf16.mxu0 0
        %1560 = vmatmul.mubr.bf16.gmra.mxu0 %v802
        %v1561 = vpop.f32.mrf.mxu0
        %v1562 = vadd.f32 %v597, %v1561
        %v1563 = vpop.f32.mrf.mxu0
        %v1564 = vpop.f32.mrf.mxu0
        %v1565 = vadd.f32 %v597, %v1564
        %v1566 = vpop.f32.mrf.mxu0
        %1567 = vmatprep.mubr.bf16.mxu0 0
        %1568 = vmatmul.mubr.bf16.gmra.mxu0 %v805
        %v1569 = vpop.f32.mrf.mxu0
        %v1570 = vadd.f32 %v597, %v1569
        %v1571 = vpop.f32.mrf.mxu0
        %v1572 = vpop.f32.mrf.mxu0
        %v1573 = vadd.f32 %v597, %v1572
        %v1574 = vpop.f32.mrf.mxu0
        %1575 = vmatprep.mubr.bf16.mxu0 0
        %1576 = vmatmul.mubr.bf16.gmra.mxu0 %v808
        %v1577 = vpop.f32.mrf.mxu0
        %v1578 = vadd.f32 %v597, %v1577
        %v1579 = vpop.f32.mrf.mxu0
        %v1580 = vpop.f32.mrf.mxu0
        %v1581 = vadd.f32 %v597, %v1580
        %v1582 = vpop.f32.mrf.mxu0
        %1583 = vmatprep.mubr.bf16.mxu0 0
        %1584 = vmatmul.mubr.bf16.gmra.mxu0 %v811
        %v1585 = vpop.f32.mrf.mxu0
        %v1586 = vadd.f32 %v597, %v1585
        %v1587 = vpop.f32.mrf.mxu0
        %v1588 = vpop.f32.mrf.mxu0
        %v1589 = vadd.f32 %v597, %v1588
        %v1590 = vpop.f32.mrf.mxu0
        %1591 = vmatprep.mubr.bf16.mxu0 0
        %1592 = vmatmul.mubr.bf16.gmra.mxu0 %v814
        %v1593 = vpop.f32.mrf.mxu0
        %v1594 = vadd.f32 %v597, %v1593
        %v1595 = vpop.f32.mrf.mxu0
        %v1596 = vpop.f32.mrf.mxu0
        %v1597 = vadd.f32 %v597, %v1596
        %v1598 = vpop.f32.mrf.mxu0
        %1599 = vmatprep.mubr.bf16.mxu0 0
        %1600 = vmatmul.mubr.bf16.gmra.mxu0 %v817
        %v1601 = vpop.f32.mrf.mxu0
        %v1602 = vadd.f32 %v597, %v1601
        %v1603 = vpop.f32.mrf.mxu0
        %v1604 = vpop.f32.mrf.mxu0
        %v1605 = vadd.f32 %v597, %v1604
        %v1606 = vpop.f32.mrf.mxu0
        %1607 = vmatprep.mubr.bf16.mxu0 0
        %1608 = vmatmul.mubr.bf16.gmra.mxu0 %v820
        %v1609 = vpop.f32.mrf.mxu0
        %v1610 = vadd.f32 %v597, %v1609
        %v1611 = vpop.f32.mrf.mxu0
        %v1612 = vpop.f32.mrf.mxu0
        %v1613 = vadd.f32 %v597, %v1612
        %v1614 = vpop.f32.mrf.mxu0
        %1615 = vmatprep.mubr.bf16.mxu0 0
        %1616 = vmatmul.mubr.bf16.gmra.mxu0 %v823
        %v1617 = vpop.f32.mrf.mxu0
        %v1618 = vadd.f32 %v597, %v1617
        %v1619 = vpop.f32.mrf.mxu0
        %v1620 = vpop.f32.mrf.mxu0
        %v1621 = vadd.f32 %v597, %v1620
        %v1622 = vpop.f32.mrf.mxu0
        %1623 = vmatprep.mubr.bf16.mxu0 0
        %1624 = vmatmul.mubr.bf16.gmra.mxu0 %v826
        %v1625 = vpop.f32.mrf.mxu0
        %v1626 = vadd.f32 %v597, %v1625
        %v1627 = vpop.f32.mrf.mxu0
        %v1628 = vpop.f32.mrf.mxu0
        %v1629 = vadd.f32 %v597, %v1628
        %v1630 = vpop.f32.mrf.mxu0
        %1631 = vmatprep.mubr.bf16.mxu0 0
        %1632 = vmatmul.mubr.bf16.gmra.mxu0 %v829
        %v1633 = vpop.f32.mrf.mxu0
        %v1634 = vadd.f32 %v597, %v1633
        %v1635 = vpop.f32.mrf.mxu0
        %v1636 = vpop.f32.mrf.mxu0
        %v1637 = vadd.f32 %v597, %v1636
        %v1638 = vpop.f32.mrf.mxu0
        %1639 = vmatprep.mubr.bf16.mxu0 0
        %1640 = vmatmul.mubr.bf16.gmra.mxu0 %v832
        %v1641 = vpop.f32.mrf.mxu0
        %v1642 = vadd.f32 %v597, %v1641
        %v1643 = vpop.f32.mrf.mxu0
        %v1644 = vpop.f32.mrf.mxu0
        %v1645 = vadd.f32 %v597, %v1644
        %v1646 = vpop.f32.mrf.mxu0
        %1647 = vmatprep.mubr.bf16.mxu0 0
        %1648 = vmatmul.mubr.bf16.gmra.mxu0 %v835
        %v1649 = vpop.f32.mrf.mxu0
        %v1650 = vadd.f32 %v597, %v1649
        %v1651 = vpop.f32.mrf.mxu0
        %v1652 = vpop.f32.mrf.mxu0
        %v1653 = vadd.f32 %v597, %v1652
        %v1654 = vpop.f32.mrf.mxu0
        %1655 = vmatprep.mubr.bf16.mxu0 0
        %1656 = vmatmul.mubr.bf16.gmra.mxu0 %v838
        %v1657 = vpop.f32.mrf.mxu0
        %v1658 = vadd.f32 %v597, %v1657
        %v1659 = vpop.f32.mrf.mxu0
        %v1660 = vpop.f32.mrf.mxu0
        %v1661 = vadd.f32 %v597, %v1660
        %v1662 = vpop.f32.mrf.mxu0
        %1663 = vmatprep.mubr.bf16.mxu0 0
        %1664 = vmatmul.mubr.bf16.gmra.mxu0 %v841
        %v1665 = vpop.f32.mrf.mxu0
        %v1666 = vadd.f32 %v597, %v1665
        %v1667 = vpop.f32.mrf.mxu0
        %v1668 = vpop.f32.mrf.mxu0
        %v1669 = vadd.f32 %v597, %v1668
        %v1670 = vpop.f32.mrf.mxu0
        %1671 = vmatprep.mubr.bf16.mxu0 0
        %1672 = vmatmul.mubr.bf16.gmra.mxu0 %v844
        %v1673 = vpop.f32.mrf.mxu0
        %v1674 = vadd.f32 %v597, %v1673
        %v1675 = vpop.f32.mrf.mxu0
        %v1676 = vpop.f32.mrf.mxu0
        %v1677 = vadd.f32 %v597, %v1676
        %v1678 = vpop.f32.mrf.mxu0
        %1679 = vmatprep.mubr.bf16.mxu0 0
        %1680 = vmatmul.mubr.bf16.gmra.mxu0 %v847
        %v1681 = vpop.f32.mrf.mxu0
        %v1682 = vadd.f32 %v597, %v1681
        %v1683 = vpop.f32.mrf.mxu0
        %v1684 = vpop.f32.mrf.mxu0
        %v1685 = vadd.f32 %v597, %v1684
        %v1686 = vpop.f32.mrf.mxu0
        %1687 = vmatprep.mubr.bf16.mxu0 0
        %1688 = vmatmul.mubr.bf16.gmra.mxu0 %v850
        %v1689 = vpop.f32.mrf.mxu0
        %v1690 = vadd.f32 %v597, %v1689
        %v1691 = vpop.f32.mrf.mxu0
        %v1692 = vpop.f32.mrf.mxu0
        %v1693 = vadd.f32 %v597, %v1692
        %v1694 = vpop.f32.mrf.mxu0
        %1695 = vmatprep.mubr.bf16.mxu0 0
        %1696 = vmatmul.mubr.bf16.gmra.mxu0 %v853
        %v1697 = vpop.f32.mrf.mxu0
        %v1698 = vadd.f32 %v597, %v1697
        %v1699 = vpop.f32.mrf.mxu0
        %v1700 = vpop.f32.mrf.mxu0
        %v1701 = vadd.f32 %v597, %v1700
        %v1702 = vpop.f32.mrf.mxu0
        %1703 = vmatprep.mubr.bf16.mxu0 0
        %1704 = vmatmul.mubr.bf16.gmra.mxu0 %v856
        %v1705 = vpop.f32.mrf.mxu0
        %v1706 = vadd.f32 %v597, %v1705
        %v1707 = vpop.f32.mrf.mxu0
        %v1708 = vpop.f32.mrf.mxu0
        %v1709 = vadd.f32 %v597, %v1708
        %v1710 = vpop.f32.mrf.mxu0
        %1711 = vmatprep.mubr.bf16.mxu0 0
        %1712 = vmatmul.mubr.bf16.gmra.mxu0 %v859
        %v1713 = vpop.f32.mrf.mxu0
        %v1714 = vadd.f32 %v597, %v1713
        %v1715 = vpop.f32.mrf.mxu0
        %v1716 = vpop.f32.mrf.mxu0
        %v1717 = vadd.f32 %v597, %v1716
        %v1718 = vpop.f32.mrf.mxu0
        %1719 = vmatprep.mubr.bf16.mxu0 0
        %1720 = vmatmul.mubr.bf16.gmra.mxu0 %v862
        %v1721 = vpop.f32.mrf.mxu0
        %v1722 = vadd.f32 %v597, %v1721
        %v1723 = vpop.f32.mrf.mxu0
        %v1724 = vpop.f32.mrf.mxu0
        %v1725 = vadd.f32 %v597, %v1724
        %v1726 = vpop.f32.mrf.mxu0
        %1727 = vmatprep.mubr.bf16.mxu0 0
        %1728 = vmatmul.mubr.bf16.gmra.mxu0 %v865
        %v1729 = vpop.f32.mrf.mxu0
        %v1730 = vadd.f32 %v597, %v1729
        %v1731 = vpop.f32.mrf.mxu0
        %v1732 = vpop.f32.mrf.mxu0
        %v1733 = vadd.f32 %v597, %v1732
        %v1734 = vpop.f32.mrf.mxu0
        %1735 = vmatprep.mubr.bf16.mxu0 0
        %1736 = vmatmul.mubr.bf16.gmra.mxu0 %v868
        %v1737 = vpop.f32.mrf.mxu0
        %v1738 = vadd.f32 %v597, %v1737
        %v1739 = vpop.f32.mrf.mxu0
        %v1740 = vpop.f32.mrf.mxu0
        %v1741 = vadd.f32 %v597, %v1740
        %v1742 = vpop.f32.mrf.mxu0
        %1743 = vmatprep.mubr.bf16.mxu0 0
        %1744 = vmatmul.mubr.bf16.gmra.mxu0 %v871
        %v1745 = vpop.f32.mrf.mxu0
        %v1746 = vadd.f32 %v597, %v1745
        %v1747 = vpop.f32.mrf.mxu0
        %v1748 = vpop.f32.mrf.mxu0
        %v1749 = vadd.f32 %v597, %v1748
        %v1750 = vpop.f32.mrf.mxu0
        %1751 = vmatprep.mubr.bf16.mxu0 0
        %1752 = vmatmul.mubr.bf16.gmra.mxu0 %v874
        %v1753 = vpop.f32.mrf.mxu0
        %v1754 = vadd.f32 %v597, %v1753
        %v1755 = vpop.f32.mrf.mxu0
        %v1756 = vpop.f32.mrf.mxu0
        %v1757 = vadd.f32 %v597, %v1756
        %v1758 = vpop.f32.mrf.mxu0
        %1759 = vmatprep.mubr.bf16.mxu0 0
        %1760 = vmatmul.mubr.bf16.gmra.mxu0 %v877
        %v1761 = vpop.f32.mrf.mxu0
        %v1762 = vadd.f32 %v597, %v1761
        %v1763 = vpop.f32.mrf.mxu0
        %v1764 = vpop.f32.mrf.mxu0
        %v1765 = vadd.f32 %v597, %v1764
        %v1766 = vpop.f32.mrf.mxu0
        %1767 = vmatprep.mubr.bf16.mxu0 0
        %1768 = vmatmul.mubr.bf16.gmra.mxu0 %v880
        %v1769 = vpop.f32.mrf.mxu0
        %v1770 = vadd.f32 %v597, %v1769
        %v1771 = vpop.f32.mrf.mxu0
        %v1772 = vpop.f32.mrf.mxu0
        %v1773 = vadd.f32 %v597, %v1772
        %v1774 = vpop.f32.mrf.mxu0
        %1775 = vmatprep.mubr.bf16.mxu0 0
        %1776 = vmatmul.mubr.bf16.gmra.mxu0 %v883
        %v1777 = vpop.f32.mrf.mxu0
        %v1778 = vadd.f32 %v597, %v1777
        %v1779 = vpop.f32.mrf.mxu0
        %v1780 = vpop.f32.mrf.mxu0
        %v1781 = vadd.f32 %v597, %v1780
        %v1782 = vpop.f32.mrf.mxu0
        %1783 = vmatprep.mubr.bf16.mxu0 0
        %1784 = vmatmul.mubr.bf16.gmra.mxu0 %v886
        %v1785 = vpop.f32.mrf.mxu0
        %v1786 = vadd.f32 %v597, %v1785
        %v1787 = vpop.f32.mrf.mxu0
        %v1788 = vpop.f32.mrf.mxu0
        %v1789 = vadd.f32 %v597, %v1788
        %v1790 = vpop.f32.mrf.mxu0
        %1791 = vmatprep.mubr.bf16.mxu0 0
        %1792 = vmatmul.mubr.bf16.gmra.mxu0 %v889
        %v1793 = vpop.f32.mrf.mxu0
        %v1794 = vadd.f32 %v597, %v1793
        %v1795 = vpop.f32.mrf.mxu0
        %v1796 = vpop.f32.mrf.mxu0
        %v1797 = vadd.f32 %v597, %v1796
        %v1798 = vpop.f32.mrf.mxu0
        %1799 = vmatprep.mubr.bf16.mxu0 0
        %1800 = vmatmul.mubr.bf16.gmra.mxu0 %v892
        %v1801 = vpop.f32.mrf.mxu0
        %v1802 = vadd.f32 %v597, %v1801
        %v1803 = vpop.f32.mrf.mxu0
        %v1804 = vpop.f32.mrf.mxu0
        %v1805 = vadd.f32 %v597, %v1804
        %v1806 = vpop.f32.mrf.mxu0
        %1807 = vmatprep.mubr.bf16.mxu0 0
        %1808 = vmatmul.mubr.bf16.gmra.mxu0 %v895
        %v1809 = vpop.f32.mrf.mxu0
        %v1810 = vadd.f32 %v597, %v1809
        %v1811 = vpop.f32.mrf.mxu0
        %v1812 = vpop.f32.mrf.mxu0
        %v1813 = vadd.f32 %v597, %v1812
        %v1814 = vpop.f32.mrf.mxu0
        %1815 = vmatprep.mubr.bf16.mxu0 0
        %1816 = vmatmul.mubr.bf16.gmra.mxu0 %v898
        %v1817 = vpop.f32.mrf.mxu0
        %v1818 = vadd.f32 %v597, %v1817
        %v1819 = vpop.f32.mrf.mxu0
        %v1820 = vpop.f32.mrf.mxu0
        %v1821 = vadd.f32 %v597, %v1820
        %v1822 = vpop.f32.mrf.mxu0
        %1823 = vmatprep.mubr.bf16.mxu0 0
        %1824 = vmatmul.mubr.bf16.gmra.mxu0 %v901
        %v1825 = vpop.f32.mrf.mxu0
        %v1826 = vadd.f32 %v597, %v1825
        %v1827 = vpop.f32.mrf.mxu0
        %v1828 = vpop.f32.mrf.mxu0
        %v1829 = vadd.f32 %v597, %v1828
        %v1830 = vpop.f32.mrf.mxu0
        %1831 = vmatprep.mubr.bf16.mxu0 0
        %1832 = vmatmul.mubr.bf16.gmra.mxu0 %v904
        %v1833 = vpop.f32.mrf.mxu0
        %v1834 = vadd.f32 %v597, %v1833
        %v1835 = vpop.f32.mrf.mxu0
        %v1836 = vpop.f32.mrf.mxu0
        %v1837 = vadd.f32 %v597, %v1836
        %v1838 = vpop.f32.mrf.mxu0
        %1839 = vmatprep.mubr.bf16.mxu0 0
        %1840 = vmatmul.mubr.bf16.gmra.mxu0 %v907
        %v1841 = vpop.f32.mrf.mxu0
        %v1842 = vadd.f32 %v597, %v1841
        %v1843 = vpop.f32.mrf.mxu0
        %v1844 = vpop.f32.mrf.mxu0
        %v1845 = vadd.f32 %v597, %v1844
        %v1846 = vpop.f32.mrf.mxu0
        %1847 = vmatprep.mubr.bf16.mxu0 0
        %1848 = vmatmul.mubr.bf16.gmra.mxu0 %v910
        %v1849 = vpop.f32.mrf.mxu0
        %v1850 = vadd.f32 %v597, %v1849
        %v1851 = vpop.f32.mrf.mxu0
        %v1852 = vpop.f32.mrf.mxu0
        %v1853 = vadd.f32 %v597, %v1852
        %v1854 = vpop.f32.mrf.mxu0
        %1855 = vmatprep.mubr.bf16.mxu0 0
        %1856 = vmatmul.mubr.bf16.gmra.mxu0 %v913
        %v1857 = vpop.f32.mrf.mxu0
        %v1858 = vadd.f32 %v597, %v1857
        %v1859 = vpop.f32.mrf.mxu0
        %v1860 = vpop.f32.mrf.mxu0
        %v1861 = vadd.f32 %v597, %v1860
        %v1862 = vpop.f32.mrf.mxu0
        %1863 = vmatprep.mubr.bf16.mxu0 0
        %1864 = vmatmul.mubr.bf16.gmra.mxu0 %v916
        %v1865 = vpop.f32.mrf.mxu0
        %v1866 = vadd.f32 %v597, %v1865
        %v1867 = vpop.f32.mrf.mxu0
        %v1868 = vpop.f32.mrf.mxu0
        %v1869 = vadd.f32 %v597, %v1868
        %v1870 = vpop.f32.mrf.mxu0
        %1871 = vmatprep.mubr.bf16.mxu0 0
        %1872 = vmatmul.mubr.bf16.gmra.mxu0 %v919
        %v1873 = vpop.f32.mrf.mxu0
        %v1874 = vadd.f32 %v597, %v1873
        %v1875 = vpop.f32.mrf.mxu0
        %v1876 = vpop.f32.mrf.mxu0
        %v1877 = vadd.f32 %v597, %v1876
        %v1878 = vpop.f32.mrf.mxu0
        %1879 = vmatprep.mubr.bf16.mxu0 0
        %1880 = vmatmul.mubr.bf16.gmra.mxu0 %v922
        %v1881 = vpop.f32.mrf.mxu0
        %v1882 = vadd.f32 %v597, %v1881
        %v1883 = vpop.f32.mrf.mxu0
        %v1884 = vpop.f32.mrf.mxu0
        %v1885 = vadd.f32 %v597, %v1884
        %v1886 = vpop.f32.mrf.mxu0
        %1887 = vmatprep.mubr.bf16.mxu0 0
        %1888 = vmatmul.mubr.bf16.gmra.mxu0 %v925
        %v1889 = vpop.f32.mrf.mxu0
        %v1890 = vadd.f32 %v597, %v1889
        %v1891 = vpop.f32.mrf.mxu0
        %v1892 = vpop.f32.mrf.mxu0
        %v1893 = vadd.f32 %v597, %v1892
        %v1894 = vpop.f32.mrf.mxu0
        %1895 = vmatprep.mubr.bf16.mxu0 0
        %1896 = vmatmul.mubr.bf16.gmra.mxu0 %v928
        %v1897 = vpop.f32.mrf.mxu0
        %v1898 = vadd.f32 %v597, %v1897
        %v1899 = vpop.f32.mrf.mxu0
        %v1900 = vpop.f32.mrf.mxu0
        %v1901 = vadd.f32 %v597, %v1900
        %v1902 = vpop.f32.mrf.mxu0
        %1903 = vmatprep.mubr.bf16.mxu0 0
        %1904 = vmatmul.mubr.bf16.gmra.mxu0 %v931
        %v1905 = vpop.f32.mrf.mxu0
        %v1906 = vadd.f32 %v597, %v1905
        %v1907 = vpop.f32.mrf.mxu0
        %v1908 = vpop.f32.mrf.mxu0
        %v1909 = vadd.f32 %v597, %v1908
        %v1910 = vpop.f32.mrf.mxu0
        %1911 = vmatprep.mubr.bf16.mxu0 0
        %1912 = vmatmul.mubr.bf16.gmra.mxu0 %v934
        %v1913 = vpop.f32.mrf.mxu0
        %v1914 = vadd.f32 %v597, %v1913
        %v1915 = vpop.f32.mrf.mxu0
        %v1916 = vpop.f32.mrf.mxu0
        %v1917 = vadd.f32 %v597, %v1916
        %v1918 = vpop.f32.mrf.mxu0
        %1919 = vmatprep.mubr.bf16.mxu0 0
        %1920 = vmatmul.mubr.bf16.gmra.mxu0 %v937
        %v1921 = vpop.f32.mrf.mxu0
        %v1922 = vadd.f32 %v597, %v1921
        %v1923 = vpop.f32.mrf.mxu0
        %v1924 = vpop.f32.mrf.mxu0
        %v1925 = vadd.f32 %v597, %v1924
        %v1926 = vpop.f32.mrf.mxu0
        %1927 = vmatprep.mubr.bf16.mxu0 0
        %1928 = vmatmul.mubr.bf16.gmra.mxu0 %v940
        %v1929 = vpop.f32.mrf.mxu0
        %v1930 = vadd.f32 %v597, %v1929
        %v1931 = vpop.f32.mrf.mxu0
        %v1932 = vpop.f32.mrf.mxu0
        %v1933 = vadd.f32 %v597, %v1932
        %v1934 = vpop.f32.mrf.mxu0
        %1935 = vmatprep.mubr.bf16.mxu0 0
        %1936 = vmatmul.mubr.bf16.gmra.mxu0 %v943
        %v1937 = vpop.f32.mrf.mxu0
        %v1938 = vadd.f32 %v597, %v1937
        %v1939 = vpop.f32.mrf.mxu0
        %v1940 = vpop.f32.mrf.mxu0
        %v1941 = vadd.f32 %v597, %v1940
        %v1942 = vpop.f32.mrf.mxu0
        %1943 = vmatprep.mubr.bf16.mxu0 0
        %1944 = vmatmul.mubr.bf16.gmra.mxu0 %v946
        %v1945 = vpop.f32.mrf.mxu0
        %v1946 = vadd.f32 %v597, %v1945
        %v1947 = vpop.f32.mrf.mxu0
        %v1948 = vpop.f32.mrf.mxu0
        %v1949 = vadd.f32 %v597, %v1948
        %v1950 = vpop.f32.mrf.mxu0
        %1951 = vmatprep.mubr.bf16.mxu0 0
        %1952 = vmatmul.mubr.bf16.gmra.mxu0 %v949
        %v1953 = vpop.f32.mrf.mxu0
        %v1954 = vadd.f32 %v597, %v1953
        %v1955 = vpop.f32.mrf.mxu0
        %v1956 = vpop.f32.mrf.mxu0
        %v1957 = vadd.f32 %v597, %v1956
        %v1958 = vpop.f32.mrf.mxu0
        %1959 = vmatprep.mubr.bf16.mxu0 0
        %1960 = vmatmul.mubr.bf16.gmra.mxu0 %v952
        %v1961 = vpop.f32.mrf.mxu0
        %v1962 = vadd.f32 %v597, %v1961
        %v1963 = vpop.f32.mrf.mxu0
        %v1964 = vpop.f32.mrf.mxu0
        %v1965 = vadd.f32 %v597, %v1964
        %v1966 = vpop.f32.mrf.mxu0
        %1967 = vmatprep.mubr.bf16.mxu0 0
        %1968 = vmatmul.mubr.bf16.gmra.mxu0 %v955
        %v1969 = vpop.f32.mrf.mxu0
        %v1970 = vadd.f32 %v597, %v1969
        %v1971 = vpop.f32.mrf.mxu0
        %v1972 = vpop.f32.mrf.mxu0
        %v1973 = vadd.f32 %v597, %v1972
        %v1974 = vpop.f32.mrf.mxu0
        %1975 = vmatprep.mubr.bf16.mxu0 0
        %1976 = vmatmul.mubr.bf16.gmra.mxu0 %v958
        %v1977 = vpop.f32.mrf.mxu0
        %v1978 = vadd.f32 %v597, %v1977
        %v1979 = vpop.f32.mrf.mxu0
        %v1980 = vpop.f32.mrf.mxu0
        %v1981 = vadd.f32 %v597, %v1980
        %v1982 = vpop.f32.mrf.mxu0
        %1983 = vmatprep.mubr.bf16.mxu0 0
        %1984 = vmatmul.mubr.bf16.gmra.mxu0 %v961
        %v1985 = vpop.f32.mrf.mxu0
        %v1986 = vadd.f32 %v597, %v1985
        %v1987 = vpop.f32.mrf.mxu0
        %v1988 = vpop.f32.mrf.mxu0
        %v1989 = vadd.f32 %v597, %v1988
        %v1990 = vpop.f32.mrf.mxu0
        %1991 = vmatprep.mubr.bf16.mxu0 0
        %1992 = vmatmul.mubr.bf16.gmra.mxu0 %v964
        %v1993 = vpop.f32.mrf.mxu0
        %v1994 = vadd.f32 %v597, %v1993
        %v1995 = vpop.f32.mrf.mxu0
        %v1996 = vpop.f32.mrf.mxu0
        %v1997 = vadd.f32 %v597, %v1996
        %v1998 = vpop.f32.mrf.mxu0
        %1999 = vmatprep.mubr.bf16.mxu0 0
        %2000 = vmatmul.mubr.bf16.gmra.mxu0 %v967
        %v2001 = vpop.f32.mrf.mxu0
        %v2002 = vadd.f32 %v597, %v2001
        %v2003 = vpop.f32.mrf.mxu0
        %v2004 = vpop.f32.mrf.mxu0
        %v2005 = vadd.f32 %v597, %v2004
        %v2006 = vpop.f32.mrf.mxu0
        %2007 = vmatprep.mubr.bf16.mxu0 0
        %2008 = vmatmul.mubr.bf16.gmra.mxu0 %v970
        %v2009 = vpop.f32.mrf.mxu0
        %v2010 = vadd.f32 %v597, %v2009
        %v2011 = vpop.f32.mrf.mxu0
        %v2012 = vpop.f32.mrf.mxu0
        %v2013 = vadd.f32 %v597, %v2012
        %v2014 = vpop.f32.mrf.mxu0
        %2015 = vmatprep.mubr.bf16.mxu0 0
        %2016 = vmatmul.mubr.bf16.gmra.mxu0 %v973
        %v2017 = vpop.f32.mrf.mxu0
        %v2018 = vadd.f32 %v597, %v2017
        %v2019 = vpop.f32.mrf.mxu0
        %v2020 = vpop.f32.mrf.mxu0
        %v2021 = vadd.f32 %v597, %v2020
        %v2022 = vpop.f32.mrf.mxu0
        %2023 = vmatprep.mubr.bf16.mxu0 0
        %2024 = vmatmul.mubr.bf16.gmra.mxu0 %v976
        %v2025 = vpop.f32.mrf.mxu0
        %v2026 = vadd.f32 %v597, %v2025
        %v2027 = vpop.f32.mrf.mxu0
        %v2028 = vpop.f32.mrf.mxu0
        %v2029 = vadd.f32 %v597, %v2028
        %v2030 = vpop.f32.mrf.mxu0
        %2031 = vmatprep.mubr.bf16.mxu0 0
        %2032 = vmatmul.mubr.bf16.gmra.mxu0 %v979
        %v2033 = vpop.f32.mrf.mxu0
        %v2034 = vadd.f32 %v597, %v2033
        %v2035 = vpop.f32.mrf.mxu0
        %v2036 = vpop.f32.mrf.mxu0
        %v2037 = vadd.f32 %v597, %v2036
        %v2038 = vpop.f32.mrf.mxu0
        %2039 = vmatprep.mubr.bf16.mxu0 0
        %2040 = vmatmul.mubr.bf16.gmra.mxu0 %v982
        %v2041 = vpop.f32.mrf.mxu0
        %v2042 = vadd.f32 %v597, %v2041
        %v2043 = vpop.f32.mrf.mxu0
        %v2044 = vpop.f32.mrf.mxu0
        %v2045 = vadd.f32 %v597, %v2044
        %v2046 = vpop.f32.mrf.mxu0
        %2047 = vdwg.mxu0
        %v2048 = vmax.f32 %v1026, 0.0
        %v2049 = vmax.f32 %v1029, 0.0
        %v2050 = vmax.f32 %v1034, 0.0
        %v2051 = vmax.f32 %v1037, 0.0
        %v2052 = vmax.f32 %v1042, 0.0
        %v2053 = vmax.f32 %v1045, 0.0
        %v2054 = vmax.f32 %v1050, 0.0
        %v2055 = vmax.f32 %v1053, 0.0
        %v2056 = vmax.f32 %v1058, 0.0
        %v2057 = vmax.f32 %v1061, 0.0
        %v2058 = vmax.f32 %v1066, 0.0
        %v2059 = vmax.f32 %v1069, 0.0
        %v2060 = vmax.f32 %v1074, 0.0
        %v2061 = vmax.f32 %v1077, 0.0
        %v2062 = vmax.f32 %v1082, 0.0
        %v2063 = vmax.f32 %v1085, 0.0
        %v2064 = vmax.f32 %v1090, 0.0
        %v2065 = vmax.f32 %v1093, 0.0
        %v2066 = vmax.f32 %v1098, 0.0
        %v2067 = vmax.f32 %v1101, 0.0
        %v2068 = vmax.f32 %v1106, 0.0
        %v2069 = vmax.f32 %v1109, 0.0
        %v2070 = vmax.f32 %v1114, 0.0
        %v2071 = vmax.f32 %v1117, 0.0
        %v2072 = vmax.f32 %v1122, 0.0
        %v2073 = vmax.f32 %v1125, 0.0
        %v2074 = vmax.f32 %v1130, 0.0
        %v2075 = vmax.f32 %v1133, 0.0
        %v2076 = vmax.f32 %v1138, 0.0
        %v2077 = vmax.f32 %v1141, 0.0
        %v2078 = vmax.f32 %v1146, 0.0
        %v2079 = vmax.f32 %v1149, 0.0
        %v2080 = vmax.f32 %v1154, 0.0
        %v2081 = vmax.f32 %v1157, 0.0
        %v2082 = vmax.f32 %v1162, 0.0
        %v2083 = vmax.f32 %v1165, 0.0
        %v2084 = vmax.f32 %v1170, 0.0
        %v2085 = vmax.f32 %v1173, 0.0
        %v2086 = vmax.f32 %v1178, 0.0
        %v2087 = vmax.f32 %v1181, 0.0
        %v2088 = vmax.f32 %v1186, 0.0
        %v2089 = vmax.f32 %v1189, 0.0
        %v2090 = vmax.f32 %v1194, 0.0
        %v2091 = vmax.f32 %v1197, 0.0
        %v2092 = vmax.f32 %v1202, 0.0
        %v2093 = vmax.f32 %v1205, 0.0
        %v2094 = vmax.f32 %v1210, 0.0
        %v2095 = vmax.f32 %v1213, 0.0
        %v2096 = vmax.f32 %v1218, 0.0
        %v2097 = vmax.f32 %v1221, 0.0
        %v2098 = vmax.f32 %v1226, 0.0
        %v2099 = vmax.f32 %v1229, 0.0
        %v2100 = vmax.f32 %v1234, 0.0
        %v2101 = vmax.f32 %v1237, 0.0
        %v2102 = vmax.f32 %v1242, 0.0
        %v2103 = vmax.f32 %v1245, 0.0
        %v2104 = vmax.f32 %v1250, 0.0
        %v2105 = vmax.f32 %v1253, 0.0
        %v2106 = vmax.f32 %v1258, 0.0
        %v2107 = vmax.f32 %v1261, 0.0
        %v2108 = vmax.f32 %v1266, 0.0
        %v2109 = vmax.f32 %v1269, 0.0
        %v2110 = vmax.f32 %v1274, 0.0
        %v2111 = vmax.f32 %v1277, 0.0
        %v2112 = vmax.f32 %v1282, 0.0
        %v2113 = vmax.f32 %v1285, 0.0
        %v2114 = vmax.f32 %v1290, 0.0
        %v2115 = vmax.f32 %v1293, 0.0
        %v2116 = vmax.f32 %v1298, 0.0
        %v2117 = vmax.f32 %v1301, 0.0
        %v2118 = vmax.f32 %v1306, 0.0
        %v2119 = vmax.f32 %v1309, 0.0
        %v2120 = vmax.f32 %v1314, 0.0
        %v2121 = vmax.f32 %v1317, 0.0
        %v2122 = vmax.f32 %v1322, 0.0
        %v2123 = vmax.f32 %v1325, 0.0
        %v2124 = vmax.f32 %v1330, 0.0
        %v2125 = vmax.f32 %v1333, 0.0
        %v2126 = vmax.f32 %v1338, 0.0
        %v2127 = vmax.f32 %v1341, 0.0
        %v2128 = vmax.f32 %v1346, 0.0
        %v2129 = vmax.f32 %v1349, 0.0
        %v2130 = vmax.f32 %v1354, 0.0
        %v2131 = vmax.f32 %v1357, 0.0
        %v2132 = vmax.f32 %v1362, 0.0
        %v2133 = vmax.f32 %v1365, 0.0
        %v2134 = vmax.f32 %v1370, 0.0
        %v2135 = vmax.f32 %v1373, 0.0
        %v2136 = vmax.f32 %v1378, 0.0
        %v2137 = vmax.f32 %v1381, 0.0
        %v2138 = vmax.f32 %v1386, 0.0
        %v2139 = vmax.f32 %v1389, 0.0
        %v2140 = vmax.f32 %v1394, 0.0
        %v2141 = vmax.f32 %v1397, 0.0
        %v2142 = vmax.f32 %v1402, 0.0
        %v2143 = vmax.f32 %v1405, 0.0
        %v2144 = vmax.f32 %v1410, 0.0
        %v2145 = vmax.f32 %v1413, 0.0
        %v2146 = vmax.f32 %v1418, 0.0
        %v2147 = vmax.f32 %v1421, 0.0
        %v2148 = vmax.f32 %v1426, 0.0
        %v2149 = vmax.f32 %v1429, 0.0
        %v2150 = vmax.f32 %v1434, 0.0
        %v2151 = vmax.f32 %v1437, 0.0
        %v2152 = vmax.f32 %v1442, 0.0
        %v2153 = vmax.f32 %v1445, 0.0
        %v2154 = vmax.f32 %v1450, 0.0
        %v2155 = vmax.f32 %v1453, 0.0
        %v2156 = vmax.f32 %v1458, 0.0
        %v2157 = vmax.f32 %v1461, 0.0
        %v2158 = vmax.f32 %v1466, 0.0
        %v2159 = vmax.f32 %v1469, 0.0
        %v2160 = vmax.f32 %v1474, 0.0
        %v2161 = vmax.f32 %v1477, 0.0
        %v2162 = vmax.f32 %v1482, 0.0
        %v2163 = vmax.f32 %v1485, 0.0
        %v2164 = vmax.f32 %v1490, 0.0
        %v2165 = vmax.f32 %v1493, 0.0
        %v2166 = vmax.f32 %v1498, 0.0
        %v2167 = vmax.f32 %v1501, 0.0
        %v2168 = vmax.f32 %v1506, 0.0
        %v2169 = vmax.f32 %v1509, 0.0
        %v2170 = vmax.f32 %v1514, 0.0
        %v2171 = vmax.f32 %v1517, 0.0
        %v2172 = vmax.f32 %v1522, 0.0
        %v2173 = vmax.f32 %v1525, 0.0
        %v2174 = vmax.f32 %v1530, 0.0
        %v2175 = vmax.f32 %v1533, 0.0
        %v2176 = vmax.f32 %v1538, 0.0
        %v2177 = vmax.f32 %v1541, 0.0
        %v2178 = vmax.f32 %v1546, 0.0
        %v2179 = vmax.f32 %v1549, 0.0
        %v2180 = vmax.f32 %v1554, 0.0
        %v2181 = vmax.f32 %v1557, 0.0
        %v2182 = vmax.f32 %v1562, 0.0
        %v2183 = vmax.f32 %v1565, 0.0
        %v2184 = vmax.f32 %v1570, 0.0
        %v2185 = vmax.f32 %v1573, 0.0
        %v2186 = vmax.f32 %v1578, 0.0
        %v2187 = vmax.f32 %v1581, 0.0
        %v2188 = vmax.f32 %v1586, 0.0
        %v2189 = vmax.f32 %v1589, 0.0
        %v2190 = vmax.f32 %v1594, 0.0
        %v2191 = vmax.f32 %v1597, 0.0
        %v2192 = vmax.f32 %v1602, 0.0
        %v2193 = vmax.f32 %v1605, 0.0
        %v2194 = vmax.f32 %v1610, 0.0
        %v2195 = vmax.f32 %v1613, 0.0
        %v2196 = vmax.f32 %v1618, 0.0
        %v2197 = vmax.f32 %v1621, 0.0
        %v2198 = vmax.f32 %v1626, 0.0
        %v2199 = vmax.f32 %v1629, 0.0
        %v2200 = vmax.f32 %v1634, 0.0
        %v2201 = vmax.f32 %v1637, 0.0
        %v2202 = vmax.f32 %v1642, 0.0
        %v2203 = vmax.f32 %v1645, 0.0
        %v2204 = vmax.f32 %v1650, 0.0
        %v2205 = vmax.f32 %v1653, 0.0
        %v2206 = vmax.f32 %v1658, 0.0
        %v2207 = vmax.f32 %v1661, 0.0
        %v2208 = vmax.f32 %v1666, 0.0
        %v2209 = vmax.f32 %v1669, 0.0
        %v2210 = vmax.f32 %v1674, 0.0
        %v2211 = vmax.f32 %v1677, 0.0
        %v2212 = vmax.f32 %v1682, 0.0
        %v2213 = vmax.f32 %v1685, 0.0
        %v2214 = vmax.f32 %v1690, 0.0
        %v2215 = vmax.f32 %v1693, 0.0
        %v2216 = vmax.f32 %v1698, 0.0
        %v2217 = vmax.f32 %v1701, 0.0
        %v2218 = vmax.f32 %v1706, 0.0
        %v2219 = vmax.f32 %v1709, 0.0
        %v2220 = vmax.f32 %v1714, 0.0
        %v2221 = vmax.f32 %v1717, 0.0
        %v2222 = vmax.f32 %v1722, 0.0
        %v2223 = vmax.f32 %v1725, 0.0
        %v2224 = vmax.f32 %v1730, 0.0
        %v2225 = vmax.f32 %v1733, 0.0
        %v2226 = vmax.f32 %v1738, 0.0
        %v2227 = vmax.f32 %v1741, 0.0
        %v2228 = vmax.f32 %v1746, 0.0
        %v2229 = vmax.f32 %v1749, 0.0
        %v2230 = vmax.f32 %v1754, 0.0
        %v2231 = vmax.f32 %v1757, 0.0
        %v2232 = vmax.f32 %v1762, 0.0
        %v2233 = vmax.f32 %v1765, 0.0
        %v2234 = vmax.f32 %v1770, 0.0
        %v2235 = vmax.f32 %v1773, 0.0
        %v2236 = vmax.f32 %v1778, 0.0
        %v2237 = vmax.f32 %v1781, 0.0
        %v2238 = vmax.f32 %v1786, 0.0
        %v2239 = vmax.f32 %v1789, 0.0
        %v2240 = vmax.f32 %v1794, 0.0
        %v2241 = vmax.f32 %v1797, 0.0
        %v2242 = vmax.f32 %v1802, 0.0
        %v2243 = vmax.f32 %v1805, 0.0
        %v2244 = vmax.f32 %v1810, 0.0
        %v2245 = vmax.f32 %v1813, 0.0
        %v2246 = vmax.f32 %v1818, 0.0
        %v2247 = vmax.f32 %v1821, 0.0
        %v2248 = vmax.f32 %v1826, 0.0
        %v2249 = vmax.f32 %v1829, 0.0
        %v2250 = vmax.f32 %v1834, 0.0
        %v2251 = vmax.f32 %v1837, 0.0
        %v2252 = vmax.f32 %v1842, 0.0
        %v2253 = vmax.f32 %v1845, 0.0
        %v2254 = vmax.f32 %v1850, 0.0
        %v2255 = vmax.f32 %v1853, 0.0
        %v2256 = vmax.f32 %v1858, 0.0
        %v2257 = vmax.f32 %v1861, 0.0
        %v2258 = vmax.f32 %v1866, 0.0
        %v2259 = vmax.f32 %v1869, 0.0
        %v2260 = vmax.f32 %v1874, 0.0
        %v2261 = vmax.f32 %v1877, 0.0
        %v2262 = vmax.f32 %v1882, 0.0
        %v2263 = vmax.f32 %v1885, 0.0
        %v2264 = vmax.f32 %v1890, 0.0
        %v2265 = vmax.f32 %v1893, 0.0
        %v2266 = vmax.f32 %v1898, 0.0
        %v2267 = vmax.f32 %v1901, 0.0
        %v2268 = vmax.f32 %v1906, 0.0
        %v2269 = vmax.f32 %v1909, 0.0
        %v2270 = vmax.f32 %v1914, 0.0
        %v2271 = vmax.f32 %v1917, 0.0
        %v2272 = vmax.f32 %v1922, 0.0
        %v2273 = vmax.f32 %v1925, 0.0
        %v2274 = vmax.f32 %v1930, 0.0
        %v2275 = vmax.f32 %v1933, 0.0
        %v2276 = vmax.f32 %v1938, 0.0
        %v2277 = vmax.f32 %v1941, 0.0
        %v2278 = vmax.f32 %v1946, 0.0
        %v2279 = vmax.f32 %v1949, 0.0
        %v2280 = vmax.f32 %v1954, 0.0
        %v2281 = vmax.f32 %v1957, 0.0
        %v2282 = vmax.f32 %v1962, 0.0
        %v2283 = vmax.f32 %v1965, 0.0
        %v2284 = vmax.f32 %v1970, 0.0
        %v2285 = vmax.f32 %v1973, 0.0
        %v2286 = vmax.f32 %v1978, 0.0
        %v2287 = vmax.f32 %v1981, 0.0
        %v2288 = vmax.f32 %v1986, 0.0
        %v2289 = vmax.f32 %v1989, 0.0
        %v2290 = vmax.f32 %v1994, 0.0
        %v2291 = vmax.f32 %v1997, 0.0
        %v2292 = vmax.f32 %v2002, 0.0
        %v2293 = vmax.f32 %v2005, 0.0
        %v2294 = vmax.f32 %v2010, 0.0
        %v2295 = vmax.f32 %v2013, 0.0
        %v2296 = vmax.f32 %v2018, 0.0
        %v2297 = vmax.f32 %v2021, 0.0
        %v2298 = vmax.f32 %v2026, 0.0
        %v2299 = vmax.f32 %v2029, 0.0
        %v2300 = vmax.f32 %v2034, 0.0
        %v2301 = vmax.f32 %v2037, 0.0
        %v2302 = vmax.f32 %v2042, 0.0
        %v2303 = vmax.f32 %v2045, 0.0
        %vm2304 = vcmask 80896
        %2305 = vst.msk [vmem:[%s172] sm:$0xff] %vm2304, %v2048
        %2306 = vst.msk [vmem:[%s172 + $0x8] sm:$0xff] %vm2304, %v2049
        %2307 = vst.msk [vmem:[%s172 + $0x10] sm:$0xff] %vm2304, %v2050
        %2308 = vst.msk [vmem:[%s172 + $0x18] sm:$0xff] %vm2304, %v2051
        %2309 = vst.msk [vmem:[%s172 + $0x20] sm:$0xff] %vm2304, %v2052
        %2310 = vst.msk [vmem:[%s172 + $0x28] sm:$0xff] %vm2304, %v2053
        %2311 = vst.msk [vmem:[%s172 + $0x30] sm:$0xff] %vm2304, %v2054
        %2312 = vst.msk [vmem:[%s172 + $0x38] sm:$0xff] %vm2304, %v2055
        %2313 = vst.msk [vmem:[%s172 + $0x40] sm:$0xff] %vm2304, %v2056
        %2314 = vst.msk [vmem:[%s172 + $0x48] sm:$0xff] %vm2304, %v2057
        %2315 = vst.msk [vmem:[%s172 + $0x50] sm:$0xff] %vm2304, %v2058
        %2316 = vst.msk [vmem:[%s172 + $0x58] sm:$0xff] %vm2304, %v2059
        %2317 = vst.msk [vmem:[%s172 + $0x60] sm:$0xff] %vm2304, %v2060
        %2318 = vst.msk [vmem:[%s172 + $0x68] sm:$0xff] %vm2304, %v2061
        %2319 = vst.msk [vmem:[%s172 + $0x70] sm:$0xff] %vm2304, %v2062
        %2320 = vst.msk [vmem:[%s172 + $0x78] sm:$0xff] %vm2304, %v2063
        %2321 = vst.msk [vmem:[%s172 + $0x80] sm:$0xff] %vm2304, %v2064
        %2322 = vst.msk [vmem:[%s172 + $0x88] sm:$0xff] %vm2304, %v2065
        %2323 = vst.msk [vmem:[%s172 + $0x90] sm:$0xff] %vm2304, %v2066
        %2324 = vst.msk [vmem:[%s172 + $0x98] sm:$0xff] %vm2304, %v2067
        %2325 = vst.msk [vmem:[%s172 + $0xa0] sm:$0xff] %vm2304, %v2068
        %2326 = vst.msk [vmem:[%s172 + $0xa8] sm:$0xff] %vm2304, %v2069
        %2327 = vst.msk [vmem:[%s172 + $0xb0] sm:$0xff] %vm2304, %v2070
        %2328 = vst.msk [vmem:[%s172 + $0xb8] sm:$0xff] %vm2304, %v2071
        %2329 = vst.msk [vmem:[%s172 + $0xc0] sm:$0xff] %vm2304, %v2072
        %2330 = vst.msk [vmem:[%s172 + $0xc8] sm:$0xff] %vm2304, %v2073
        %2331 = vst.msk [vmem:[%s172 + $0xd0] sm:$0xff] %vm2304, %v2074
        %2332 = vst.msk [vmem:[%s172 + $0xd8] sm:$0xff] %vm2304, %v2075
        %2333 = vst.msk [vmem:[%s172 + $0xe0] sm:$0xff] %vm2304, %v2076
        %2334 = vst.msk [vmem:[%s172 + $0xe8] sm:$0xff] %vm2304, %v2077
        %2335 = vst.msk [vmem:[%s172 + $0xf0] sm:$0xff] %vm2304, %v2078
        %2336 = vst.msk [vmem:[%s172 + $0xf8] sm:$0xff] %vm2304, %v2079
        %2337 = vst.msk [vmem:[%s172 + $0x100] sm:$0xff] %vm2304, %v2080
        %2338 = vst.msk [vmem:[%s172 + $0x108] sm:$0xff] %vm2304, %v2081
        %2339 = vst.msk [vmem:[%s172 + $0x110] sm:$0xff] %vm2304, %v2082
        %2340 = vst.msk [vmem:[%s172 + $0x118] sm:$0xff] %vm2304, %v2083
        %2341 = vst.msk [vmem:[%s172 + $0x120] sm:$0xff] %vm2304, %v2084
        %2342 = vst.msk [vmem:[%s172 + $0x128] sm:$0xff] %vm2304, %v2085
        %2343 = vst.msk [vmem:[%s172 + $0x130] sm:$0xff] %vm2304, %v2086
        %2344 = vst.msk [vmem:[%s172 + $0x138] sm:$0xff] %vm2304, %v2087
        %2345 = vst.msk [vmem:[%s172 + $0x140] sm:$0xff] %vm2304, %v2088
        %2346 = vst.msk [vmem:[%s172 + $0x148] sm:$0xff] %vm2304, %v2089
        %2347 = vst.msk [vmem:[%s172 + $0x150] sm:$0xff] %vm2304, %v2090
        %2348 = vst.msk [vmem:[%s172 + $0x158] sm:$0xff] %vm2304, %v2091
        %2349 = vst.msk [vmem:[%s172 + $0x160] sm:$0xff] %vm2304, %v2092
        %2350 = vst.msk [vmem:[%s172 + $0x168] sm:$0xff] %vm2304, %v2093
        %2351 = vst.msk [vmem:[%s172 + $0x170] sm:$0xff] %vm2304, %v2094
        %2352 = vst.msk [vmem:[%s172 + $0x178] sm:$0xff] %vm2304, %v2095
        %2353 = vst.msk [vmem:[%s172 + $0x180] sm:$0xff] %vm2304, %v2096
        %2354 = vst.msk [vmem:[%s172 + $0x188] sm:$0xff] %vm2304, %v2097
        %2355 = vst.msk [vmem:[%s172 + $0x190] sm:$0xff] %vm2304, %v2098
        %2356 = vst.msk [vmem:[%s172 + $0x198] sm:$0xff] %vm2304, %v2099
        %2357 = vst.msk [vmem:[%s172 + $0x1a0] sm:$0xff] %vm2304, %v2100
        %2358 = vst.msk [vmem:[%s172 + $0x1a8] sm:$0xff] %vm2304, %v2101
        %2359 = vst.msk [vmem:[%s172 + $0x1b0] sm:$0xff] %vm2304, %v2102
        %2360 = vst.msk [vmem:[%s172 + $0x1b8] sm:$0xff] %vm2304, %v2103
        %2361 = vst.msk [vmem:[%s172 + $0x1c0] sm:$0xff] %vm2304, %v2104
        %2362 = vst.msk [vmem:[%s172 + $0x1c8] sm:$0xff] %vm2304, %v2105
        %2363 = vst.msk [vmem:[%s172 + $0x1d0] sm:$0xff] %vm2304, %v2106
        %2364 = vst.msk [vmem:[%s172 + $0x1d8] sm:$0xff] %vm2304, %v2107
        %2365 = vst.msk [vmem:[%s172 + $0x1e0] sm:$0xff] %vm2304, %v2108
        %2366 = vst.msk [vmem:[%s172 + $0x1e8] sm:$0xff] %vm2304, %v2109
        %2367 = vst.msk [vmem:[%s172 + $0x1f0] sm:$0xff] %vm2304, %v2110
        %2368 = vst.msk [vmem:[%s172 + $0x1f8] sm:$0xff] %vm2304, %v2111
        %2369 = vst.msk [vmem:[%s172 + $0x200] sm:$0xff] %vm2304, %v2112
        %2370 = vst.msk [vmem:[%s172 + $0x208] sm:$0xff] %vm2304, %v2113
        %2371 = vst.msk [vmem:[%s172 + $0x210] sm:$0xff] %vm2304, %v2114
        %2372 = vst.msk [vmem:[%s172 + $0x218] sm:$0xff] %vm2304, %v2115
        %2373 = vst.msk [vmem:[%s172 + $0x220] sm:$0xff] %vm2304, %v2116
        %2374 = vst.msk [vmem:[%s172 + $0x228] sm:$0xff] %vm2304, %v2117
        %2375 = vst.msk [vmem:[%s172 + $0x230] sm:$0xff] %vm2304, %v2118
        %2376 = vst.msk [vmem:[%s172 + $0x238] sm:$0xff] %vm2304, %v2119
        %2377 = vst.msk [vmem:[%s172 + $0x240] sm:$0xff] %vm2304, %v2120
        %2378 = vst.msk [vmem:[%s172 + $0x248] sm:$0xff] %vm2304, %v2121
        %2379 = vst.msk [vmem:[%s172 + $0x250] sm:$0xff] %vm2304, %v2122
        %2380 = vst.msk [vmem:[%s172 + $0x258] sm:$0xff] %vm2304, %v2123
        %2381 = vst.msk [vmem:[%s172 + $0x260] sm:$0xff] %vm2304, %v2124
        %2382 = vst.msk [vmem:[%s172 + $0x268] sm:$0xff] %vm2304, %v2125
        %2383 = vst.msk [vmem:[%s172 + $0x270] sm:$0xff] %vm2304, %v2126
        %2384 = vst.msk [vmem:[%s172 + $0x278] sm:$0xff] %vm2304, %v2127
        %2385 = vst.msk [vmem:[%s172 + $0x280] sm:$0xff] %vm2304, %v2128
        %2386 = vst.msk [vmem:[%s172 + $0x288] sm:$0xff] %vm2304, %v2129
        %2387 = vst.msk [vmem:[%s172 + $0x290] sm:$0xff] %vm2304, %v2130
        %2388 = vst.msk [vmem:[%s172 + $0x298] sm:$0xff] %vm2304, %v2131
        %2389 = vst.msk [vmem:[%s172 + $0x2a0] sm:$0xff] %vm2304, %v2132
        %2390 = vst.msk [vmem:[%s172 + $0x2a8] sm:$0xff] %vm2304, %v2133
        %2391 = vst.msk [vmem:[%s172 + $0x2b0] sm:$0xff] %vm2304, %v2134
        %2392 = vst.msk [vmem:[%s172 + $0x2b8] sm:$0xff] %vm2304, %v2135
        %2393 = vst.msk [vmem:[%s172 + $0x2c0] sm:$0xff] %vm2304, %v2136
        %2394 = vst.msk [vmem:[%s172 + $0x2c8] sm:$0xff] %vm2304, %v2137
        %2395 = vst.msk [vmem:[%s172 + $0x2d0] sm:$0xff] %vm2304, %v2138
        %2396 = vst.msk [vmem:[%s172 + $0x2d8] sm:$0xff] %vm2304, %v2139
        %2397 = vst.msk [vmem:[%s172 + $0x2e0] sm:$0xff] %vm2304, %v2140
        %2398 = vst.msk [vmem:[%s172 + $0x2e8] sm:$0xff] %vm2304, %v2141
        %2399 = vst.msk [vmem:[%s172 + $0x2f0] sm:$0xff] %vm2304, %v2142
        %2400 = vst.msk [vmem:[%s172 + $0x2f8] sm:$0xff] %vm2304, %v2143
        %2401 = vst.msk [vmem:[%s172 + $0x300] sm:$0xff] %vm2304, %v2144
        %2402 = vst.msk [vmem:[%s172 + $0x308] sm:$0xff] %vm2304, %v2145
        %2403 = vst.msk [vmem:[%s172 + $0x310] sm:$0xff] %vm2304, %v2146
        %2404 = vst.msk [vmem:[%s172 + $0x318] sm:$0xff] %vm2304, %v2147
        %2405 = vst.msk [vmem:[%s172 + $0x320] sm:$0xff] %vm2304, %v2148
        %2406 = vst.msk [vmem:[%s172 + $0x328] sm:$0xff] %vm2304, %v2149
        %2407 = vst.msk [vmem:[%s172 + $0x330] sm:$0xff] %vm2304, %v2150
        %2408 = vst.msk [vmem:[%s172 + $0x338] sm:$0xff] %vm2304, %v2151
        %2409 = vst.msk [vmem:[%s172 + $0x340] sm:$0xff] %vm2304, %v2152
        %2410 = vst.msk [vmem:[%s172 + $0x348] sm:$0xff] %vm2304, %v2153
        %2411 = vst.msk [vmem:[%s172 + $0x350] sm:$0xff] %vm2304, %v2154
        %2412 = vst.msk [vmem:[%s172 + $0x358] sm:$0xff] %vm2304, %v2155
        %2413 = vst.msk [vmem:[%s172 + $0x360] sm:$0xff] %vm2304, %v2156
        %2414 = vst.msk [vmem:[%s172 + $0x368] sm:$0xff] %vm2304, %v2157
        %2415 = vst.msk [vmem:[%s172 + $0x370] sm:$0xff] %vm2304, %v2158
        %2416 = vst.msk [vmem:[%s172 + $0x378] sm:$0xff] %vm2304, %v2159
        %2417 = vst.msk [vmem:[%s172 + $0x380] sm:$0xff] %vm2304, %v2160
        %2418 = vst.msk [vmem:[%s172 + $0x388] sm:$0xff] %vm2304, %v2161
        %2419 = vst.msk [vmem:[%s172 + $0x390] sm:$0xff] %vm2304, %v2162
        %2420 = vst.msk [vmem:[%s172 + $0x398] sm:$0xff] %vm2304, %v2163
        %2421 = vst.msk [vmem:[%s172 + $0x3a0] sm:$0xff] %vm2304, %v2164
        %2422 = vst.msk [vmem:[%s172 + $0x3a8] sm:$0xff] %vm2304, %v2165
        %2423 = vst.msk [vmem:[%s172 + $0x3b0] sm:$0xff] %vm2304, %v2166
        %2424 = vst.msk [vmem:[%s172 + $0x3b8] sm:$0xff] %vm2304, %v2167
        %2425 = vst.msk [vmem:[%s172 + $0x3c0] sm:$0xff] %vm2304, %v2168
        %2426 = vst.msk [vmem:[%s172 + $0x3c8] sm:$0xff] %vm2304, %v2169
        %2427 = vst.msk [vmem:[%s172 + $0x3d0] sm:$0xff] %vm2304, %v2170
        %2428 = vst.msk [vmem:[%s172 + $0x3d8] sm:$0xff] %vm2304, %v2171
        %2429 = vst.msk [vmem:[%s172 + $0x3e0] sm:$0xff] %vm2304, %v2172
        %2430 = vst.msk [vmem:[%s172 + $0x3e8] sm:$0xff] %vm2304, %v2173
        %2431 = vst.msk [vmem:[%s172 + $0x3f0] sm:$0xff] %vm2304, %v2174
        %2432 = vst.msk [vmem:[%s172 + $0x3f8] sm:$0xff] %vm2304, %v2175
        %2433 = vst.msk [vmem:[%s172 + $0x400] sm:$0xff] %vm2304, %v2176
        %2434 = vst.msk [vmem:[%s172 + $0x408] sm:$0xff] %vm2304, %v2177
        %2435 = vst.msk [vmem:[%s172 + $0x410] sm:$0xff] %vm2304, %v2178
        %2436 = vst.msk [vmem:[%s172 + $0x418] sm:$0xff] %vm2304, %v2179
        %2437 = vst.msk [vmem:[%s172 + $0x420] sm:$0xff] %vm2304, %v2180
        %2438 = vst.msk [vmem:[%s172 + $0x428] sm:$0xff] %vm2304, %v2181
        %2439 = vst.msk [vmem:[%s172 + $0x430] sm:$0xff] %vm2304, %v2182
        %2440 = vst.msk [vmem:[%s172 + $0x438] sm:$0xff] %vm2304, %v2183
        %2441 = vst.msk [vmem:[%s172 + $0x440] sm:$0xff] %vm2304, %v2184
        %2442 = vst.msk [vmem:[%s172 + $0x448] sm:$0xff] %vm2304, %v2185
        %2443 = vst.msk [vmem:[%s172 + $0x450] sm:$0xff] %vm2304, %v2186
        %2444 = vst.msk [vmem:[%s172 + $0x458] sm:$0xff] %vm2304, %v2187
        %2445 = vst.msk [vmem:[%s172 + $0x460] sm:$0xff] %vm2304, %v2188
        %2446 = vst.msk [vmem:[%s172 + $0x468] sm:$0xff] %vm2304, %v2189
        %2447 = vst.msk [vmem:[%s172 + $0x470] sm:$0xff] %vm2304, %v2190
        %2448 = vst.msk [vmem:[%s172 + $0x478] sm:$0xff] %vm2304, %v2191
        %2449 = vst.msk [vmem:[%s172 + $0x480] sm:$0xff] %vm2304, %v2192
        %2450 = vst.msk [vmem:[%s172 + $0x488] sm:$0xff] %vm2304, %v2193
        %2451 = vst.msk [vmem:[%s172 + $0x490] sm:$0xff] %vm2304, %v2194
        %2452 = vst.msk [vmem:[%s172 + $0x498] sm:$0xff] %vm2304, %v2195
        %2453 = vst.msk [vmem:[%s172 + $0x4a0] sm:$0xff] %vm2304, %v2196
        %2454 = vst.msk [vmem:[%s172 + $0x4a8] sm:$0xff] %vm2304, %v2197
        %2455 = vst.msk [vmem:[%s172 + $0x4b0] sm:$0xff] %vm2304, %v2198
        %2456 = vst.msk [vmem:[%s172 + $0x4b8] sm:$0xff] %vm2304, %v2199
        %2457 = vst.msk [vmem:[%s172 + $0x4c0] sm:$0xff] %vm2304, %v2200
        %2458 = vst.msk [vmem:[%s172 + $0x4c8] sm:$0xff] %vm2304, %v2201
        %2459 = vst.msk [vmem:[%s172 + $0x4d0] sm:$0xff] %vm2304, %v2202
        %2460 = vst.msk [vmem:[%s172 + $0x4d8] sm:$0xff] %vm2304, %v2203
        %2461 = vst.msk [vmem:[%s172 + $0x4e0] sm:$0xff] %vm2304, %v2204
        %2462 = vst.msk [vmem:[%s172 + $0x4e8] sm:$0xff] %vm2304, %v2205
        %2463 = vst.msk [vmem:[%s172 + $0x4f0] sm:$0xff] %vm2304, %v2206
        %2464 = vst.msk [vmem:[%s172 + $0x4f8] sm:$0xff] %vm2304, %v2207
        %2465 = vst.msk [vmem:[%s172 + $0x500] sm:$0xff] %vm2304, %v2208
        %2466 = vst.msk [vmem:[%s172 + $0x508] sm:$0xff] %vm2304, %v2209
        %2467 = vst.msk [vmem:[%s172 + $0x510] sm:$0xff] %vm2304, %v2210
        %2468 = vst.msk [vmem:[%s172 + $0x518] sm:$0xff] %vm2304, %v2211
        %2469 = vst.msk [vmem:[%s172 + $0x520] sm:$0xff] %vm2304, %v2212
        %2470 = vst.msk [vmem:[%s172 + $0x528] sm:$0xff] %vm2304, %v2213
        %2471 = vst.msk [vmem:[%s172 + $0x530] sm:$0xff] %vm2304, %v2214
        %2472 = vst.msk [vmem:[%s172 + $0x538] sm:$0xff] %vm2304, %v2215
        %2473 = vst.msk [vmem:[%s172 + $0x540] sm:$0xff] %vm2304, %v2216
        %2474 = vst.msk [vmem:[%s172 + $0x548] sm:$0xff] %vm2304, %v2217
        %2475 = vst.msk [vmem:[%s172 + $0x550] sm:$0xff] %vm2304, %v2218
        %2476 = vst.msk [vmem:[%s172 + $0x558] sm:$0xff] %vm2304, %v2219
        %2477 = vst.msk [vmem:[%s172 + $0x560] sm:$0xff] %vm2304, %v2220
        %2478 = vst.msk [vmem:[%s172 + $0x568] sm:$0xff] %vm2304, %v2221
        %2479 = vst.msk [vmem:[%s172 + $0x570] sm:$0xff] %vm2304, %v2222
        %2480 = vst.msk [vmem:[%s172 + $0x578] sm:$0xff] %vm2304, %v2223
        %2481 = vst.msk [vmem:[%s172 + $0x580] sm:$0xff] %vm2304, %v2224
        %2482 = vst.msk [vmem:[%s172 + $0x588] sm:$0xff] %vm2304, %v2225
        %2483 = vst.msk [vmem:[%s172 + $0x590] sm:$0xff] %vm2304, %v2226
        %2484 = vst.msk [vmem:[%s172 + $0x598] sm:$0xff] %vm2304, %v2227
        %2485 = vst.msk [vmem:[%s172 + $0x5a0] sm:$0xff] %vm2304, %v2228
        %2486 = vst.msk [vmem:[%s172 + $0x5a8] sm:$0xff] %vm2304, %v2229
        %2487 = vst.msk [vmem:[%s172 + $0x5b0] sm:$0xff] %vm2304, %v2230
        %2488 = vst.msk [vmem:[%s172 + $0x5b8] sm:$0xff] %vm2304, %v2231
        %2489 = vst.msk [vmem:[%s172 + $0x5c0] sm:$0xff] %vm2304, %v2232
        %2490 = vst.msk [vmem:[%s172 + $0x5c8] sm:$0xff] %vm2304, %v2233
        %2491 = vst.msk [vmem:[%s172 + $0x5d0] sm:$0xff] %vm2304, %v2234
        %2492 = vst.msk [vmem:[%s172 + $0x5d8] sm:$0xff] %vm2304, %v2235
        %2493 = vst.msk [vmem:[%s172 + $0x5e0] sm:$0xff] %vm2304, %v2236
        %2494 = vst.msk [vmem:[%s172 + $0x5e8] sm:$0xff] %vm2304, %v2237
        %2495 = vst.msk [vmem:[%s172 + $0x5f0] sm:$0xff] %vm2304, %v2238
        %2496 = vst.msk [vmem:[%s172 + $0x5f8] sm:$0xff] %vm2304, %v2239
        %2497 = vst.msk [vmem:[%s172 + $0x600] sm:$0xff] %vm2304, %v2240
        %2498 = vst.msk [vmem:[%s172 + $0x608] sm:$0xff] %vm2304, %v2241
        %2499 = vst.msk [vmem:[%s172 + $0x610] sm:$0xff] %vm2304, %v2242
        %2500 = vst.msk [vmem:[%s172 + $0x618] sm:$0xff] %vm2304, %v2243
        %2501 = vst.msk [vmem:[%s172 + $0x620] sm:$0xff] %vm2304, %v2244
        %2502 = vst.msk [vmem:[%s172 + $0x628] sm:$0xff] %vm2304, %v2245
        %2503 = vst.msk [vmem:[%s172 + $0x630] sm:$0xff] %vm2304, %v2246
        %2504 = vst.msk [vmem:[%s172 + $0x638] sm:$0xff] %vm2304, %v2247
        %2505 = vst.msk [vmem:[%s172 + $0x640] sm:$0xff] %vm2304, %v2248
        %2506 = vst.msk [vmem:[%s172 + $0x648] sm:$0xff] %vm2304, %v2249
        %2507 = vst.msk [vmem:[%s172 + $0x650] sm:$0xff] %vm2304, %v2250
        %2508 = vst.msk [vmem:[%s172 + $0x658] sm:$0xff] %vm2304, %v2251
        %2509 = vst.msk [vmem:[%s172 + $0x660] sm:$0xff] %vm2304, %v2252
        %2510 = vst.msk [vmem:[%s172 + $0x668] sm:$0xff] %vm2304, %v2253
        %2511 = vst.msk [vmem:[%s172 + $0x670] sm:$0xff] %vm2304, %v2254
        %2512 = vst.msk [vmem:[%s172 + $0x678] sm:$0xff] %vm2304, %v2255
        %2513 = vst.msk [vmem:[%s172 + $0x680] sm:$0xff] %vm2304, %v2256
        %2514 = vst.msk [vmem:[%s172 + $0x688] sm:$0xff] %vm2304, %v2257
        %2515 = vst.msk [vmem:[%s172 + $0x690] sm:$0xff] %vm2304, %v2258
        %2516 = vst.msk [vmem:[%s172 + $0x698] sm:$0xff] %vm2304, %v2259
        %2517 = vst.msk [vmem:[%s172 + $0x6a0] sm:$0xff] %vm2304, %v2260
        %2518 = vst.msk [vmem:[%s172 + $0x6a8] sm:$0xff] %vm2304, %v2261
        %2519 = vst.msk [vmem:[%s172 + $0x6b0] sm:$0xff] %vm2304, %v2262
        %2520 = vst.msk [vmem:[%s172 + $0x6b8] sm:$0xff] %vm2304, %v2263
        %2521 = vst.msk [vmem:[%s172 + $0x6c0] sm:$0xff] %vm2304, %v2264
        %2522 = vst.msk [vmem:[%s172 + $0x6c8] sm:$0xff] %vm2304, %v2265
        %2523 = vst.msk [vmem:[%s172 + $0x6d0] sm:$0xff] %vm2304, %v2266
        %2524 = vst.msk [vmem:[%s172 + $0x6d8] sm:$0xff] %vm2304, %v2267
        %2525 = vst.msk [vmem:[%s172 + $0x6e0] sm:$0xff] %vm2304, %v2268
        %2526 = vst.msk [vmem:[%s172 + $0x6e8] sm:$0xff] %vm2304, %v2269
        %2527 = vst.msk [vmem:[%s172 + $0x6f0] sm:$0xff] %vm2304, %v2270
        %2528 = vst.msk [vmem:[%s172 + $0x6f8] sm:$0xff] %vm2304, %v2271
        %2529 = vst.msk [vmem:[%s172 + $0x700] sm:$0xff] %vm2304, %v2272
        %2530 = vst.msk [vmem:[%s172 + $0x708] sm:$0xff] %vm2304, %v2273
        %2531 = vst.msk [vmem:[%s172 + $0x710] sm:$0xff] %vm2304, %v2274
        %2532 = vst.msk [vmem:[%s172 + $0x718] sm:$0xff] %vm2304, %v2275
        %2533 = vst.msk [vmem:[%s172 + $0x720] sm:$0xff] %vm2304, %v2276
        %2534 = vst.msk [vmem:[%s172 + $0x728] sm:$0xff] %vm2304, %v2277
        %2535 = vst.msk [vmem:[%s172 + $0x730] sm:$0xff] %vm2304, %v2278
        %2536 = vst.msk [vmem:[%s172 + $0x738] sm:$0xff] %vm2304, %v2279
        %2537 = vst.msk [vmem:[%s172 + $0x740] sm:$0xff] %vm2304, %v2280
        %2538 = vst.msk [vmem:[%s172 + $0x748] sm:$0xff] %vm2304, %v2281
        %2539 = vst.msk [vmem:[%s172 + $0x750] sm:$0xff] %vm2304, %v2282
        %2540 = vst.msk [vmem:[%s172 + $0x758] sm:$0xff] %vm2304, %v2283
        %2541 = vst.msk [vmem:[%s172 + $0x760] sm:$0xff] %vm2304, %v2284
        %2542 = vst.msk [vmem:[%s172 + $0x768] sm:$0xff] %vm2304, %v2285
        %2543 = vst.msk [vmem:[%s172 + $0x770] sm:$0xff] %vm2304, %v2286
        %2544 = vst.msk [vmem:[%s172 + $0x778] sm:$0xff] %vm2304, %v2287
        %2545 = vst.msk [vmem:[%s172 + $0x780] sm:$0xff] %vm2304, %v2288
        %2546 = vst.msk [vmem:[%s172 + $0x788] sm:$0xff] %vm2304, %v2289
        %2547 = vst.msk [vmem:[%s172 + $0x790] sm:$0xff] %vm2304, %v2290
        %2548 = vst.msk [vmem:[%s172 + $0x798] sm:$0xff] %vm2304, %v2291
        %2549 = vst.msk [vmem:[%s172 + $0x7a0] sm:$0xff] %vm2304, %v2292
        %2550 = vst.msk [vmem:[%s172 + $0x7a8] sm:$0xff] %vm2304, %v2293
        %2551 = vst.msk [vmem:[%s172 + $0x7b0] sm:$0xff] %vm2304, %v2294
        %2552 = vst.msk [vmem:[%s172 + $0x7b8] sm:$0xff] %vm2304, %v2295
        %2553 = vst.msk [vmem:[%s172 + $0x7c0] sm:$0xff] %vm2304, %v2296
        %2554 = vst.msk [vmem:[%s172 + $0x7c8] sm:$0xff] %vm2304, %v2297
        %2555 = vst.msk [vmem:[%s172 + $0x7d0] sm:$0xff] %vm2304, %v2298
        %2556 = vst.msk [vmem:[%s172 + $0x7d8] sm:$0xff] %vm2304, %v2299
        %2557 = vst.msk [vmem:[%s172 + $0x7e0] sm:$0xff] %vm2304, %v2300
        %2558 = vst.msk [vmem:[%s172 + $0x7e8] sm:$0xff] %vm2304, %v2301
        %2559 = vst.msk [vmem:[%s172 + $0x7f0] sm:$0xff] %vm2304, %v2302
        %2560 = vst.msk [vmem:[%s172 + $0x7f8] sm:$0xff] %vm2304, %v2303
        %s2561 = sand.u32 %s90, 1
        %s2562 = sand.u32 %s90, 1
        %s2563 = smul.addr %s2562, 2048
        %s2564 = scalar_lea.vmem [#allocation2], %s2563
        // Predicated region
        $region33: #{tpu_custom_call.1} parent=31 // pred_check
          %p2565 = pneg %p100
        $region34: #{tpu_custom_call.1} parent=31 // pred_check_branch
          %2567 = sbr.rel (%p2565) target = $region36
        $region35: #{tpu_custom_call.1} parent=31 // pred_region
          %s2568 = smul.u32 256, %s14
          %s2569 = ssub.s32 3025, %s2568
          %p2570 = scmp.lt.s32.totalorder %s2569, 256
          %s2571 = scalar_select %p2570, %s2569, 256
          %s2572 = smul.u32 128, %s2571
          %p2573 = scmp.ne.s32.totalorder 0, %s2572
          %s2574 = smul.addr %s2568, 8
          %s2575 = scalar_lea.vmem %s3, %s2574
          // Predicated region
          $region37: #{tpu_custom_call.1} parent=35 // pred_check
            %p2576 = pneg %p2573
          $region38: #{tpu_custom_call.1} parent=35 // pred_check_branch
            %2578 = sbr.rel (%p2576) target = $region40
          $region39: #{tpu_custom_call.1} parent=35 // pred_region
            // Predicated region
            $region41: #{tpu_custom_call.1} parent=39 // pred_check
              _
            $region42: #{tpu_custom_call.1} parent=39 // pred_check_branch
              %2580 = sbr.rel (0) target = $region44
            $region43: #{tpu_custom_call.1} parent=39 // pred_region
              // Predicated region
              $region63: #{tpu_custom_call.1} parent=43 // pred_check
                _
              $region64: #{tpu_custom_call.1} parent=43 // pred_check_branch
                %2756 = sbr.rel (0) target = $region66
              $region65: #{tpu_custom_call.1} parent=43 // pred_region
                %s2757 = sshrl.u32 %s2571, 6
                // While loop
                $region67: #{tpu_custom_call.1} parent=65 // loop_pre_header
                  _
                $region68: #{tpu_custom_call.1} parent=65 // loop_header
                  %s2759 = sphi 0, %s2761
                  %p2760 = scmp.ge.s32.totalorder %s2759, %s2757
                  %s2764 = sphi 0, %s2897
                  %s2765 = sphi %s2564, %s2900
                  %s2766 = sphi %s2575, %s2901
                $region69: #{tpu_custom_call.1} parent=65 // loop_header_branch
                  %2763 = sbr.rel (%p2760) target = $region73
                $region70: #{tpu_custom_call.1} parent=65 // loop_body
                  %v2767 = vld [vmem:[%s2765] sm:$0xff]
                  %2768 = vst [vmem:[%s2766] sm:$0xff] %v2767
                  %v2769 = vld [vmem:[%s2765 + $0x8] sm:$0xff]
                  %2770 = vst [vmem:[%s2766 + $0x8] sm:$0xff] %v2769
                  %v2771 = vld [vmem:[%s2765 + $0x10] sm:$0xff]
                  %2772 = vst [vmem:[%s2766 + $0x10] sm:$0xff] %v2771
                  %v2773 = vld [vmem:[%s2765 + $0x18] sm:$0xff]
                  %2774 = vst [vmem:[%s2766 + $0x18] sm:$0xff] %v2773
                  %v2775 = vld [vmem:[%s2765 + $0x20] sm:$0xff]
                  %2776 = vst [vmem:[%s2766 + $0x20] sm:$0xff] %v2775
                  %v2777 = vld [vmem:[%s2765 + $0x28] sm:$0xff]
                  %2778 = vst [vmem:[%s2766 + $0x28] sm:$0xff] %v2777
                  %v2779 = vld [vmem:[%s2765 + $0x30] sm:$0xff]
                  %2780 = vst [vmem:[%s2766 + $0x30] sm:$0xff] %v2779
                  %v2781 = vld [vmem:[%s2765 + $0x38] sm:$0xff]
                  %2782 = vst [vmem:[%s2766 + $0x38] sm:$0xff] %v2781
                  %v2783 = vld [vmem:[%s2765 + $0x40] sm:$0xff]
                  %2784 = vst [vmem:[%s2766 + $0x40] sm:$0xff] %v2783
                  %v2785 = vld [vmem:[%s2765 + $0x48] sm:$0xff]
                  %2786 = vst [vmem:[%s2766 + $0x48] sm:$0xff] %v2785
                  %v2787 = vld [vmem:[%s2765 + $0x50] sm:$0xff]
                  %2788 = vst [vmem:[%s2766 + $0x50] sm:$0xff] %v2787
                  %v2789 = vld [vmem:[%s2765 + $0x58] sm:$0xff]
                  %2790 = vst [vmem:[%s2766 + $0x58] sm:$0xff] %v2789
                  %v2791 = vld [vmem:[%s2765 + $0x60] sm:$0xff]
                  %2792 = vst [vmem:[%s2766 + $0x60] sm:$0xff] %v2791
                  %v2793 = vld [vmem:[%s2765 + $0x68] sm:$0xff]
                  %2794 = vst [vmem:[%s2766 + $0x68] sm:$0xff] %v2793
                  %v2795 = vld [vmem:[%s2765 + $0x70] sm:$0xff]
                  %2796 = vst [vmem:[%s2766 + $0x70] sm:$0xff] %v2795
                  %v2797 = vld [vmem:[%s2765 + $0x78] sm:$0xff]
                  %2798 = vst [vmem:[%s2766 + $0x78] sm:$0xff] %v2797
                  %v2799 = vld [vmem:[%s2765 + $0x80] sm:$0xff]
                  %2800 = vst [vmem:[%s2766 + $0x80] sm:$0xff] %v2799
                  %v2801 = vld [vmem:[%s2765 + $0x88] sm:$0xff]
                  %2802 = vst [vmem:[%s2766 + $0x88] sm:$0xff] %v2801
                  %v2803 = vld [vmem:[%s2765 + $0x90] sm:$0xff]
                  %2804 = vst [vmem:[%s2766 + $0x90] sm:$0xff] %v2803
                  %v2805 = vld [vmem:[%s2765 + $0x98] sm:$0xff]
                  %2806 = vst [vmem:[%s2766 + $0x98] sm:$0xff] %v2805
                  %v2807 = vld [vmem:[%s2765 + $0xa0] sm:$0xff]
                  %2808 = vst [vmem:[%s2766 + $0xa0] sm:$0xff] %v2807
                  %v2809 = vld [vmem:[%s2765 + $0xa8] sm:$0xff]
                  %2810 = vst [vmem:[%s2766 + $0xa8] sm:$0xff] %v2809
                  %v2811 = vld [vmem:[%s2765 + $0xb0] sm:$0xff]
                  %2812 = vst [vmem:[%s2766 + $0xb0] sm:$0xff] %v2811
                  %v2813 = vld [vmem:[%s2765 + $0xb8] sm:$0xff]
                  %2814 = vst [vmem:[%s2766 + $0xb8] sm:$0xff] %v2813
                  %v2815 = vld [vmem:[%s2765 + $0xc0] sm:$0xff]
                  %2816 = vst [vmem:[%s2766 + $0xc0] sm:$0xff] %v2815
                  %v2817 = vld [vmem:[%s2765 + $0xc8] sm:$0xff]
                  %2818 = vst [vmem:[%s2766 + $0xc8] sm:$0xff] %v2817
                  %v2819 = vld [vmem:[%s2765 + $0xd0] sm:$0xff]
                  %2820 = vst [vmem:[%s2766 + $0xd0] sm:$0xff] %v2819
                  %v2821 = vld [vmem:[%s2765 + $0xd8] sm:$0xff]
                  %2822 = vst [vmem:[%s2766 + $0xd8] sm:$0xff] %v2821
                  %v2823 = vld [vmem:[%s2765 + $0xe0] sm:$0xff]
                  %2824 = vst [vmem:[%s2766 + $0xe0] sm:$0xff] %v2823
                  %v2825 = vld [vmem:[%s2765 + $0xe8] sm:$0xff]
                  %2826 = vst [vmem:[%s2766 + $0xe8] sm:$0xff] %v2825
                  %v2827 = vld [vmem:[%s2765 + $0xf0] sm:$0xff]
                  %2828 = vst [vmem:[%s2766 + $0xf0] sm:$0xff] %v2827
                  %v2829 = vld [vmem:[%s2765 + $0xf8] sm:$0xff]
                  %2830 = vst [vmem:[%s2766 + $0xf8] sm:$0xff] %v2829
                  %v2831 = vld [vmem:[%s2765 + $0x100] sm:$0xff]
                  %2832 = vst [vmem:[%s2766 + $0x100] sm:$0xff] %v2831
                  %v2833 = vld [vmem:[%s2765 + $0x108] sm:$0xff]
                  %2834 = vst [vmem:[%s2766 + $0x108] sm:$0xff] %v2833
                  %v2835 = vld [vmem:[%s2765 + $0x110] sm:$0xff]
                  %2836 = vst [vmem:[%s2766 + $0x110] sm:$0xff] %v2835
                  %v2837 = vld [vmem:[%s2765 + $0x118] sm:$0xff]
                  %2838 = vst [vmem:[%s2766 + $0x118] sm:$0xff] %v2837
                  %v2839 = vld [vmem:[%s2765 + $0x120] sm:$0xff]
                  %2840 = vst [vmem:[%s2766 + $0x120] sm:$0xff] %v2839
                  %v2841 = vld [vmem:[%s2765 + $0x128] sm:$0xff]
                  %2842 = vst [vmem:[%s2766 + $0x128] sm:$0xff] %v2841
                  %v2843 = vld [vmem:[%s2765 + $0x130] sm:$0xff]
                  %2844 = vst [vmem:[%s2766 + $0x130] sm:$0xff] %v2843
                  %v2845 = vld [vmem:[%s2765 + $0x138] sm:$0xff]
                  %2846 = vst [vmem:[%s2766 + $0x138] sm:$0xff] %v2845
                  %v2847 = vld [vmem:[%s2765 + $0x140] sm:$0xff]
                  %2848 = vst [vmem:[%s2766 + $0x140] sm:$0xff] %v2847
                  %v2849 = vld [vmem:[%s2765 + $0x148] sm:$0xff]
                  %2850 = vst [vmem:[%s2766 + $0x148] sm:$0xff] %v2849
                  %v2851 = vld [vmem:[%s2765 + $0x150] sm:$0xff]
                  %2852 = vst [vmem:[%s2766 + $0x150] sm:$0xff] %v2851
                  %v2853 = vld [vmem:[%s2765 + $0x158] sm:$0xff]
                  %2854 = vst [vmem:[%s2766 + $0x158] sm:$0xff] %v2853
                  %v2855 = vld [vmem:[%s2765 + $0x160] sm:$0xff]
                  %2856 = vst [vmem:[%s2766 + $0x160] sm:$0xff] %v2855
                  %v2857 = vld [vmem:[%s2765 + $0x168] sm:$0xff]
                  %2858 = vst [vmem:[%s2766 + $0x168] sm:$0xff] %v2857
                  %v2859 = vld [vmem:[%s2765 + $0x170] sm:$0xff]
                  %2860 = vst [vmem:[%s2766 + $0x170] sm:$0xff] %v2859
                  %v2861 = vld [vmem:[%s2765 + $0x178] sm:$0xff]
                  %2862 = vst [vmem:[%s2766 + $0x178] sm:$0xff] %v2861
                  %v2863 = vld [vmem:[%s2765 + $0x180] sm:$0xff]
                  %2864 = vst [vmem:[%s2766 + $0x180] sm:$0xff] %v2863
                  %v2865 = vld [vmem:[%s2765 + $0x188] sm:$0xff]
                  %2866 = vst [vmem:[%s2766 + $0x188] sm:$0xff] %v2865
                  %v2867 = vld [vmem:[%s2765 + $0x190] sm:$0xff]
                  %2868 = vst [vmem:[%s2766 + $0x190] sm:$0xff] %v2867
                  %v2869 = vld [vmem:[%s2765 + $0x198] sm:$0xff]
                  %2870 = vst [vmem:[%s2766 + $0x198] sm:$0xff] %v2869
                  %v2871 = vld [vmem:[%s2765 + $0x1a0] sm:$0xff]
                  %2872 = vst [vmem:[%s2766 + $0x1a0] sm:$0xff] %v2871
                  %v2873 = vld [vmem:[%s2765 + $0x1a8] sm:$0xff]
                  %2874 = vst [vmem:[%s2766 + $0x1a8] sm:$0xff] %v2873
                  %v2875 = vld [vmem:[%s2765 + $0x1b0] sm:$0xff]
                  %2876 = vst [vmem:[%s2766 + $0x1b0] sm:$0xff] %v2875
                  %v2877 = vld [vmem:[%s2765 + $0x1b8] sm:$0xff]
                  %2878 = vst [vmem:[%s2766 + $0x1b8] sm:$0xff] %v2877
                  %v2879 = vld [vmem:[%s2765 + $0x1c0] sm:$0xff]
                  %2880 = vst [vmem:[%s2766 + $0x1c0] sm:$0xff] %v2879
                  %v2881 = vld [vmem:[%s2765 + $0x1c8] sm:$0xff]
                  %2882 = vst [vmem:[%s2766 + $0x1c8] sm:$0xff] %v2881
                  %v2883 = vld [vmem:[%s2765 + $0x1d0] sm:$0xff]
                  %2884 = vst [vmem:[%s2766 + $0x1d0] sm:$0xff] %v2883
                  %v2885 = vld [vmem:[%s2765 + $0x1d8] sm:$0xff]
                  %2886 = vst [vmem:[%s2766 + $0x1d8] sm:$0xff] %v2885
                  %v2887 = vld [vmem:[%s2765 + $0x1e0] sm:$0xff]
                  %2888 = vst [vmem:[%s2766 + $0x1e0] sm:$0xff] %v2887
                  %v2889 = vld [vmem:[%s2765 + $0x1e8] sm:$0xff]
                  %2890 = vst [vmem:[%s2766 + $0x1e8] sm:$0xff] %v2889
                  %v2891 = vld [vmem:[%s2765 + $0x1f0] sm:$0xff]
                  %2892 = vst [vmem:[%s2766 + $0x1f0] sm:$0xff] %v2891
                  %v2893 = vld [vmem:[%s2765 + $0x1f8] sm:$0xff]
                  %2894 = vst [vmem:[%s2766 + $0x1f8] sm:$0xff] %v2893
                  %s2895 = sadd.s32 1, %s2764
                  %p2896 = scmp.ge.s32.totalorder %s2895, %s2757
                  %s2897 = scalar_select %p2896, 0, %s2895
                  %s2898 = smul.u32 %s2897, 512
                  %s2899 = smul.u32 %s2897, 512
                  %s2900 = scalar_lea.vmem %s2564, %s2898 [#allocation2]
                  %s2901 = scalar_lea.vmem %s2575, %s2899
                $region71: #{tpu_custom_call.1} parent=65 // loop_footer
                  %s2761 = sadd.s32 %s2759, 1
                $region72: #{tpu_custom_call.1} parent=65 // loop_footer_branch
                  %2758 = sbr.rel target = $region68
                $region73: #{tpu_custom_call.1} parent=65 // loop_exit
                  _
                %s2902 = sshrl.u32 %s2571, 6
                %s2903 = sand.u32 %s2571, 63
                %s2904 = smul.u32 %s2902, 64
                %s2905 = smul.u32 8, %s2904
                %s2906 = scalar_lea.vmem %s2564, %s2905 [#allocation2]
                %s2907 = smul.u32 8, %s2904
                %s2908 = scalar_lea.vmem %s2575, %s2907
                // While loop
                $region74: #{tpu_custom_call.1} parent=65 // loop_pre_header
                  _
                $region75: #{tpu_custom_call.1} parent=65 // loop_header
                  %s2910 = sphi 0, %s2912
                  %p2911 = scmp.ge.s32.totalorder %s2910, %s2903
                  %s2915 = sphi 0, %s2922
                  %s2916 = sphi %s2906, %s2925
                  %s2917 = sphi %s2908, %s2926
                $region76: #{tpu_custom_call.1} parent=65 // loop_header_branch
                  %2914 = sbr.rel (%p2911) target = $region80
                $region77: #{tpu_custom_call.1} parent=65 // loop_body
                  %v2918 = vld [vmem:[%s2916] sm:$0xff]
                  %2919 = vst [vmem:[%s2917] sm:$0xff] %v2918
                  %s2920 = sadd.s32 1, %s2915
                  %p2921 = scmp.ge.s32.totalorder %s2920, %s2903
                  %s2922 = scalar_select %p2921, 0, %s2920
                  %s2923 = smul.u32 %s2922, 8
                  %s2924 = smul.u32 %s2922, 8
                  %s2925 = scalar_lea.vmem %s2906, %s2923 [#allocation2]
                  %s2926 = scalar_lea.vmem %s2908, %s2924
                $region78: #{tpu_custom_call.1} parent=65 // loop_footer
                  %s2912 = sadd.s32 %s2910, 1
                $region79: #{tpu_custom_call.1} parent=65 // loop_footer_branch
                  %2909 = sbr.rel target = $region75
                $region80: #{tpu_custom_call.1} parent=65 // loop_exit
                  _
              $region66: #{tpu_custom_call.1} parent=43 // pred_fallthru
                _
              // Predicated region
              $region81: #{tpu_custom_call.1} parent=43 // pred_check
                _
              $region82: #{tpu_custom_call.1} parent=43 // pred_check_branch
                %2928 = sbr.rel target = $region84
              $region83: #{tpu_custom_call.1} parent=43 // pred_region
                _
              $region84: #{tpu_custom_call.1} parent=43 // pred_fallthru
                _
            $region44: #{tpu_custom_call.1} parent=39 // pred_fallthru
              _
            // Predicated region
            $region45: #{tpu_custom_call.1} parent=39 // pred_check
              _
            $region46: #{tpu_custom_call.1} parent=39 // pred_check_branch
              %2582 = sbr.rel target = $region48
            $region47: #{tpu_custom_call.1} parent=39 // pred_region
              %s2584 = ssub.s32 256, 1
              %s2585 = sshrl.u32 %s2571, 6
              // While loop
              $region49: #{tpu_custom_call.1} parent=47 // loop_pre_header
                _
              $region50: #{tpu_custom_call.1} parent=47 // loop_header
                %s2587 = sphi 0, %s2589
                %p2588 = scmp.ge.s32.totalorder %s2587, %s2585
                %s2592 = sphi 0, %s2725
                %s2593 = sphi %s2564, %s2728
                %s2594 = sphi %s2575, %s2729
              $region51: #{tpu_custom_call.1} parent=47 // loop_header_branch
                %2591 = sbr.rel (%p2588) target = $region55
              $region52: #{tpu_custom_call.1} parent=47 // loop_body
                %v2595 = vld [vmem:[%s2593] sm:%s2584]
                %2596 = vst [vmem:[%s2594] sm:%s2584] %v2595
                %v2597 = vld [vmem:[%s2593 + $0x8] sm:%s2584]
                %2598 = vst [vmem:[%s2594 + $0x8] sm:%s2584] %v2597
                %v2599 = vld [vmem:[%s2593 + $0x10] sm:%s2584]
                %2600 = vst [vmem:[%s2594 + $0x10] sm:%s2584] %v2599
                %v2601 = vld [vmem:[%s2593 + $0x18] sm:%s2584]
                %2602 = vst [vmem:[%s2594 + $0x18] sm:%s2584] %v2601
                %v2603 = vld [vmem:[%s2593 + $0x20] sm:%s2584]
                %2604 = vst [vmem:[%s2594 + $0x20] sm:%s2584] %v2603
                %v2605 = vld [vmem:[%s2593 + $0x28] sm:%s2584]
                %2606 = vst [vmem:[%s2594 + $0x28] sm:%s2584] %v2605
                %v2607 = vld [vmem:[%s2593 + $0x30] sm:%s2584]
                %2608 = vst [vmem:[%s2594 + $0x30] sm:%s2584] %v2607
                %v2609 = vld [vmem:[%s2593 + $0x38] sm:%s2584]
                %2610 = vst [vmem:[%s2594 + $0x38] sm:%s2584] %v2609
                %v2611 = vld [vmem:[%s2593 + $0x40] sm:%s2584]
                %2612 = vst [vmem:[%s2594 + $0x40] sm:%s2584] %v2611
                %v2613 = vld [vmem:[%s2593 + $0x48] sm:%s2584]
                %2614 = vst [vmem:[%s2594 + $0x48] sm:%s2584] %v2613
                %v2615 = vld [vmem:[%s2593 + $0x50] sm:%s2584]
                %2616 = vst [vmem:[%s2594 + $0x50] sm:%s2584] %v2615
                %v2617 = vld [vmem:[%s2593 + $0x58] sm:%s2584]
                %2618 = vst [vmem:[%s2594 + $0x58] sm:%s2584] %v2617
                %v2619 = vld [vmem:[%s2593 + $0x60] sm:%s2584]
                %2620 = vst [vmem:[%s2594 + $0x60] sm:%s2584] %v2619
                %v2621 = vld [vmem:[%s2593 + $0x68] sm:%s2584]
                %2622 = vst [vmem:[%s2594 + $0x68] sm:%s2584] %v2621
                %v2623 = vld [vmem:[%s2593 + $0x70] sm:%s2584]
                %2624 = vst [vmem:[%s2594 + $0x70] sm:%s2584] %v2623
                %v2625 = vld [vmem:[%s2593 + $0x78] sm:%s2584]
                %2626 = vst [vmem:[%s2594 + $0x78] sm:%s2584] %v2625
                %v2627 = vld [vmem:[%s2593 + $0x80] sm:%s2584]
                %2628 = vst [vmem:[%s2594 + $0x80] sm:%s2584] %v2627
                %v2629 = vld [vmem:[%s2593 + $0x88] sm:%s2584]
                %2630 = vst [vmem:[%s2594 + $0x88] sm:%s2584] %v2629
                %v2631 = vld [vmem:[%s2593 + $0x90] sm:%s2584]
                %2632 = vst [vmem:[%s2594 + $0x90] sm:%s2584] %v2631
                %v2633 = vld [vmem:[%s2593 + $0x98] sm:%s2584]
                %2634 = vst [vmem:[%s2594 + $0x98] sm:%s2584] %v2633
                %v2635 = vld [vmem:[%s2593 + $0xa0] sm:%s2584]
                %2636 = vst [vmem:[%s2594 + $0xa0] sm:%s2584] %v2635
                %v2637 = vld [vmem:[%s2593 + $0xa8] sm:%s2584]
                %2638 = vst [vmem:[%s2594 + $0xa8] sm:%s2584] %v2637
                %v2639 = vld [vmem:[%s2593 + $0xb0] sm:%s2584]
                %2640 = vst [vmem:[%s2594 + $0xb0] sm:%s2584] %v2639
                %v2641 = vld [vmem:[%s2593 + $0xb8] sm:%s2584]
                %2642 = vst [vmem:[%s2594 + $0xb8] sm:%s2584] %v2641
                %v2643 = vld [vmem:[%s2593 + $0xc0] sm:%s2584]
                %2644 = vst [vmem:[%s2594 + $0xc0] sm:%s2584] %v2643
                %v2645 = vld [vmem:[%s2593 + $0xc8] sm:%s2584]
                %2646 = vst [vmem:[%s2594 + $0xc8] sm:%s2584] %v2645
                %v2647 = vld [vmem:[%s2593 + $0xd0] sm:%s2584]
                %2648 = vst [vmem:[%s2594 + $0xd0] sm:%s2584] %v2647
                %v2649 = vld [vmem:[%s2593 + $0xd8] sm:%s2584]
                %2650 = vst [vmem:[%s2594 + $0xd8] sm:%s2584] %v2649
                %v2651 = vld [vmem:[%s2593 + $0xe0] sm:%s2584]
                %2652 = vst [vmem:[%s2594 + $0xe0] sm:%s2584] %v2651
                %v2653 = vld [vmem:[%s2593 + $0xe8] sm:%s2584]
                %2654 = vst [vmem:[%s2594 + $0xe8] sm:%s2584] %v2653
                %v2655 = vld [vmem:[%s2593 + $0xf0] sm:%s2584]
                %2656 = vst [vmem:[%s2594 + $0xf0] sm:%s2584] %v2655
                %v2657 = vld [vmem:[%s2593 + $0xf8] sm:%s2584]
                %2658 = vst [vmem:[%s2594 + $0xf8] sm:%s2584] %v2657
                %v2659 = vld [vmem:[%s2593 + $0x100] sm:%s2584]
                %2660 = vst [vmem:[%s2594 + $0x100] sm:%s2584] %v2659
                %v2661 = vld [vmem:[%s2593 + $0x108] sm:%s2584]
                %2662 = vst [vmem:[%s2594 + $0x108] sm:%s2584] %v2661
                %v2663 = vld [vmem:[%s2593 + $0x110] sm:%s2584]
                %2664 = vst [vmem:[%s2594 + $0x110] sm:%s2584] %v2663
                %v2665 = vld [vmem:[%s2593 + $0x118] sm:%s2584]
                %2666 = vst [vmem:[%s2594 + $0x118] sm:%s2584] %v2665
                %v2667 = vld [vmem:[%s2593 + $0x120] sm:%s2584]
                %2668 = vst [vmem:[%s2594 + $0x120] sm:%s2584] %v2667
                %v2669 = vld [vmem:[%s2593 + $0x128] sm:%s2584]
                %2670 = vst [vmem:[%s2594 + $0x128] sm:%s2584] %v2669
                %v2671 = vld [vmem:[%s2593 + $0x130] sm:%s2584]
                %2672 = vst [vmem:[%s2594 + $0x130] sm:%s2584] %v2671
                %v2673 = vld [vmem:[%s2593 + $0x138] sm:%s2584]
                %2674 = vst [vmem:[%s2594 + $0x138] sm:%s2584] %v2673
                %v2675 = vld [vmem:[%s2593 + $0x140] sm:%s2584]
                %2676 = vst [vmem:[%s2594 + $0x140] sm:%s2584] %v2675
                %v2677 = vld [vmem:[%s2593 + $0x148] sm:%s2584]
                %2678 = vst [vmem:[%s2594 + $0x148] sm:%s2584] %v2677
                %v2679 = vld [vmem:[%s2593 + $0x150] sm:%s2584]
                %2680 = vst [vmem:[%s2594 + $0x150] sm:%s2584] %v2679
                %v2681 = vld [vmem:[%s2593 + $0x158] sm:%s2584]
                %2682 = vst [vmem:[%s2594 + $0x158] sm:%s2584] %v2681
                %v2683 = vld [vmem:[%s2593 + $0x160] sm:%s2584]
                %2684 = vst [vmem:[%s2594 + $0x160] sm:%s2584] %v2683
                %v2685 = vld [vmem:[%s2593 + $0x168] sm:%s2584]
                %2686 = vst [vmem:[%s2594 + $0x168] sm:%s2584] %v2685
                %v2687 = vld [vmem:[%s2593 + $0x170] sm:%s2584]
                %2688 = vst [vmem:[%s2594 + $0x170] sm:%s2584] %v2687
                %v2689 = vld [vmem:[%s2593 + $0x178] sm:%s2584]
                %2690 = vst [vmem:[%s2594 + $0x178] sm:%s2584] %v2689
                %v2691 = vld [vmem:[%s2593 + $0x180] sm:%s2584]
                %2692 = vst [vmem:[%s2594 + $0x180] sm:%s2584] %v2691
                %v2693 = vld [vmem:[%s2593 + $0x188] sm:%s2584]
                %2694 = vst [vmem:[%s2594 + $0x188] sm:%s2584] %v2693
                %v2695 = vld [vmem:[%s2593 + $0x190] sm:%s2584]
                %2696 = vst [vmem:[%s2594 + $0x190] sm:%s2584] %v2695
                %v2697 = vld [vmem:[%s2593 + $0x198] sm:%s2584]
                %2698 = vst [vmem:[%s2594 + $0x198] sm:%s2584] %v2697
                %v2699 = vld [vmem:[%s2593 + $0x1a0] sm:%s2584]
                %2700 = vst [vmem:[%s2594 + $0x1a0] sm:%s2584] %v2699
                %v2701 = vld [vmem:[%s2593 + $0x1a8] sm:%s2584]
                %2702 = vst [vmem:[%s2594 + $0x1a8] sm:%s2584] %v2701
                %v2703 = vld [vmem:[%s2593 + $0x1b0] sm:%s2584]
                %2704 = vst [vmem:[%s2594 + $0x1b0] sm:%s2584] %v2703
                %v2705 = vld [vmem:[%s2593 + $0x1b8] sm:%s2584]
                %2706 = vst [vmem:[%s2594 + $0x1b8] sm:%s2584] %v2705
                %v2707 = vld [vmem:[%s2593 + $0x1c0] sm:%s2584]
                %2708 = vst [vmem:[%s2594 + $0x1c0] sm:%s2584] %v2707
                %v2709 = vld [vmem:[%s2593 + $0x1c8] sm:%s2584]
                %2710 = vst [vmem:[%s2594 + $0x1c8] sm:%s2584] %v2709
                %v2711 = vld [vmem:[%s2593 + $0x1d0] sm:%s2584]
                %2712 = vst [vmem:[%s2594 + $0x1d0] sm:%s2584] %v2711
                %v2713 = vld [vmem:[%s2593 + $0x1d8] sm:%s2584]
                %2714 = vst [vmem:[%s2594 + $0x1d8] sm:%s2584] %v2713
                %v2715 = vld [vmem:[%s2593 + $0x1e0] sm:%s2584]
                %2716 = vst [vmem:[%s2594 + $0x1e0] sm:%s2584] %v2715
                %v2717 = vld [vmem:[%s2593 + $0x1e8] sm:%s2584]
                %2718 = vst [vmem:[%s2594 + $0x1e8] sm:%s2584] %v2717
                %v2719 = vld [vmem:[%s2593 + $0x1f0] sm:%s2584]
                %2720 = vst [vmem:[%s2594 + $0x1f0] sm:%s2584] %v2719
                %v2721 = vld [vmem:[%s2593 + $0x1f8] sm:%s2584]
                %2722 = vst [vmem:[%s2594 + $0x1f8] sm:%s2584] %v2721
                %s2723 = sadd.s32 1, %s2592
                %p2724 = scmp.ge.s32.totalorder %s2723, %s2585
                %s2725 = scalar_select %p2724, 0, %s2723
                %s2726 = smul.u32 %s2725, 512
                %s2727 = smul.u32 %s2725, 512
                %s2728 = scalar_lea.vmem %s2564, %s2726 [#allocation2]
                %s2729 = scalar_lea.vmem %s2575, %s2727
              $region53: #{tpu_custom_call.1} parent=47 // loop_footer
                %s2589 = sadd.s32 %s2587, 1
              $region54: #{tpu_custom_call.1} parent=47 // loop_footer_branch
                %2586 = sbr.rel target = $region50
              $region55: #{tpu_custom_call.1} parent=47 // loop_exit
                _
              %s2730 = sshrl.u32 %s2571, 6
              %s2731 = sand.u32 %s2571, 63
              %s2732 = smul.u32 %s2730, 64
              %s2733 = smul.u32 8, %s2732
              %s2734 = scalar_lea.vmem %s2564, %s2733 [#allocation2]
              %s2735 = smul.u32 8, %s2732
              %s2736 = scalar_lea.vmem %s2575, %s2735
              // While loop
              $region56: #{tpu_custom_call.1} parent=47 // loop_pre_header
                _
              $region57: #{tpu_custom_call.1} parent=47 // loop_header
                %s2738 = sphi 0, %s2740
                %p2739 = scmp.ge.s32.totalorder %s2738, %s2731
                %s2743 = sphi 0, %s2750
                %s2744 = sphi %s2734, %s2753
                %s2745 = sphi %s2736, %s2754
              $region58: #{tpu_custom_call.1} parent=47 // loop_header_branch
                %2742 = sbr.rel (%p2739) target = $region62
              $region59: #{tpu_custom_call.1} parent=47 // loop_body
                %v2746 = vld [vmem:[%s2744] sm:%s2584]
                %2747 = vst [vmem:[%s2745] sm:%s2584] %v2746
                %s2748 = sadd.s32 1, %s2743
                %p2749 = scmp.ge.s32.totalorder %s2748, %s2731
                %s2750 = scalar_select %p2749, 0, %s2748
                %s2751 = smul.u32 %s2750, 8
                %s2752 = smul.u32 %s2750, 8
                %s2753 = scalar_lea.vmem %s2734, %s2751 [#allocation2]
                %s2754 = scalar_lea.vmem %s2736, %s2752
              $region60: #{tpu_custom_call.1} parent=47 // loop_footer
                %s2740 = sadd.s32 %s2738, 1
              $region61: #{tpu_custom_call.1} parent=47 // loop_footer_branch
                %2737 = sbr.rel target = $region57
              $region62: #{tpu_custom_call.1} parent=47 // loop_exit
                _
            $region48: #{tpu_custom_call.1} parent=39 // pred_fallthru
              _
          $region40: #{tpu_custom_call.1} parent=35 // pred_fallthru
            _
          %2929 = vnop
        $region36: #{tpu_custom_call.1} parent=31 // pred_fallthru
          _
      $region32: #{tpu_custom_call.1} parent=5 // pred_fallthru
        _
      %p2930 = scmp.le.s32.totalorder 2, %s9
      // Predicated region
      $region85: #{tpu_custom_call.1} parent=5 // pred_check
        %p2931 = pneg %p2930
      $region86: #{tpu_custom_call.1} parent=5 // pred_check_branch
        %2933 = sbr.rel (%p2931) target = $region88
      $region87: #{tpu_custom_call.1} parent=5 // pred_region
        %s2934 = ssub.s32 %s9, 2
        // Predicated region
        $region89: #{tpu_custom_call.1} parent=87 // pred_check
          %p2935 = pneg %p106
        $region90: #{tpu_custom_call.1} parent=87 // pred_check_branch
          %2937 = sbr.rel (%p2935) target = $region92
        $region91: #{tpu_custom_call.1} parent=87 // pred_region
          %s2938 = sand.u32 %s91, 1
          %s2939 = sand.u32 %s91, 1
          %s2940 = smul.addr %s2939, 2048
          %s2941 = scalar_lea.vmem [#allocation2], %s2940
        $region92: #{tpu_custom_call.1} parent=87 // pred_fallthru
          _
      $region88: #{tpu_custom_call.1} parent=5 // pred_fallthru
        _
    $region6: #{tpu_custom_call.1} parent=1 // loop_footer
      %s13 = sadd.s32 1, %s9
    $region7: #{tpu_custom_call.1} parent=1 // loop_footer_branch
      %8 = sbr.rel target = $region3
    $region8: #{tpu_custom_call.1} parent=1 // loop_exit
      _

</llo_original>
